<compile_context>
chip_gen: v7x
topology: tpu7x:2x2x1
jax: 0.10.0
libtpu: 0.0.40
codegen_flags: <defaults>
</compile_context>

<pallas_src>
import functools

import jax
import jax.numpy as jnp
from jax.experimental import pallas as pl
from jax.experimental.pallas import tpu as pltpu

# ----------------------------- scaled-down dims ------------------------------
T       = 8            # frames kept (module caps at 32)
IMG_DIM = 16 * 16 * 3  # flattened frame (scaled from 3*224*224)
V_HID   = 256          # vision-encoder hidden (scaled from 1024)
FEAT    = 768          # NTLBG feature_dim (kept)
SEL_HID = 256          # NTLBG selector hidden_dim (kept)
K       = 4            # num_representatives
N_EMBD  = 256          # language_model.config.n_embd (scaled from 1024)
N_CLS   = 4            # classifier output


def _vmem():
    """Whole-array VMEM operand for a grid-less pallas_call."""
    return pl.BlockSpec(memory_space=pltpu.MemorySpace.VMEM)


# ------------------------------ fused Pallas kernel ---------------------------
def _fused_kernel(frames_ref, text_ref,
                  vw1_ref, vb1_ref, vw2_ref, vb2_ref,
                  qw1_ref, qb1_ref, qw2_ref, qb2_ref,
                  hw_ref, hb_ref,
                  logits_ref, idx_ref):
    f32 = jnp.float32
    bf16 = jnp.bfloat16

    # ---- 1) vision_encoder: Linear -> ReLU -> Linear (bf16 weights, f32 acc)
    x = frames_ref[...]                                              # [T, IMG] f32
    h = jnp.dot(x.astype(bf16), vw1_ref[...],
                preferred_element_type=f32) + vb1_ref[...]           # [T, V_HID]
    h = jnp.maximum(h, 0.0)
    v = jnp.dot(h.astype(bf16), vw2_ref[...],
                preferred_element_type=f32) + vb2_ref[...]           # [T, FEAT]

    # ---- 2) ntlbg_selector: text features -> query vector (MLP)
    t = text_ref[...]                                                # [1, FEAT]
    q = jnp.dot(t.astype(bf16), qw1_ref[...],
                preferred_element_type=f32) + qb1_ref[...]
    q = jnp.maximum(q, 0.0)
    q = jnp.dot(q.astype(bf16), qw2_ref[...],
                preferred_element_type=f32) + qb2_ref[...]           # [1, FEAT]

    # Text-conditioned attention weights over frames (softmax over T).
    scores = jnp.sum(v * q, axis=1, keepdims=True) * (1.0 / (FEAT ** 0.5))
    scores = scores - jnp.max(scores, axis=0, keepdims=True)          # [T, 1]
    e = jnp.exp(scores)
    w = e * pl.reciprocal(jnp.sum(e, axis=0, keepdims=True), approx=True)

    # Weighted Gaussian statistics (diagonal covariance) + Mahalanobis dists.
    mu = jnp.sum(w * v, axis=0, keepdims=True)                       # [1, FEAT]
    diff = v - mu
    sigma = jnp.sum(w * diff * diff, axis=0, keepdims=True) + 1e-6   # [1, FEAT]
    dist = jnp.sum(diff * diff / sigma, axis=1, keepdims=True)       # [T, 1]

    # ---- 3) in-kernel top-K (smallest distance): K unrolled argmin passes.
    # TODO(synk): NTLBGVideoSelector source was not provided; iso-contour
    # representative selection is approximated by smallest-distance top-K
    # (temporal order preserved), same as the reference implementation above.
    iota_t = jax.lax.broadcasted_iota(jnp.int32, (T, 1), 0).astype(f32)
    sel = jnp.zeros((T, 1), f32)                                     # 0/1 mask
    d = dist
    picked = []
    for _ in range(K):                                               # K=4 unrolled
        m = jnp.min(d, axis=0, keepdims=True)                        # [1, 1]
        cand = jnp.where(d <= m, iota_t, float(T))
        ik = jnp.min(cand, axis=0, keepdims=True)                    # first argmin
        hit = iota_t == ik                                           # one True
        sel = jnp.where(hit, 1.0, sel)
        d = jnp.where(hit, jnp.inf, d)
        picked.append(ik)

    # Sort the K=4 indices ascending (temporal order): 5-comparator network.
    i0, i1, i2, i3 = picked
    a_lo, a_hi = jnp.minimum(i0, i1), jnp.maximum(i0, i1)
    b_lo, b_hi = jnp.minimum(i2, i3), jnp.maximum(i2, i3)
    s0, m_a = jnp.minimum(a_lo, b_lo), jnp.maximum(a_lo, b_lo)
    m_b, s3 = jnp.minimum(a_hi, b_hi), jnp.maximum(a_hi, b_hi)
    s1, s2 = jnp.minimum(m_a, m_b), jnp.maximum(m_a, m_b)

    lane = jax.lax.broadcasted_iota(jnp.int32, (1, K), 1)            # [1, K]
    idx_row = (jnp.where(lane == 0, s0, 0.0) + jnp.where(lane == 1, s1, 0.0)
               + jnp.where(lane == 2, s2, 0.0) + jnp.where(lane == 3, s3, 0.0))
    idx_ref[...] = idx_row.astype(jnp.int32)                         # [1, K]

    # ---- 4) mean of the K selected frame features (mask-pool, no gather),
    #         then the folded projector+classifier head.
    pooled = jnp.sum(sel * v, axis=0, keepdims=True) * (1.0 / K)     # [1, FEAT]
    logits_ref[...] = (jnp.dot(pooled, hw_ref[...],
                               preferred_element_type=f32) + hb_ref[...])


def _fused_forward(video_frames, text_features, kp):
    return pl.pallas_call(
        _fused_kernel,
        in_specs=[_vmem() for _ in range(12)],
        out_specs=(_vmem(), _vmem()),
        out_shape=(jax.ShapeDtypeStruct((1, N_CLS), jnp.float32),
                   jax.ShapeDtypeStruct((1, K), jnp.int32)),
    )(video_frames, text_features,
      kp["v_w1"], kp["v_b1"], kp["v_w2"], kp["v_b2"],
      kp["q_w1"], kp["q_b1"], kp["q_w2"], kp["q_b2"],
      kp["h_w"], kp["h_b"])


# ------------------------------- model forward --------------------------------
@functools.partial(jax.jit, static_argnames=("return_loss",))
def ntlbg_forward(video_frames, text_features, kernel_params, labels,
                  return_loss=True):
    logits, indices = _fused_forward(video_frames, text_features, kernel_params)

    outputs = {
        "logits": logits,
        "classification_logits": logits,
        "representative_indices": indices,                           # [1, K]
    }
    if return_loss:
        logp = jax.nn.log_softmax(logits, axis=-1)
        loss = -jnp.mean(jnp.take_along_axis(logp, labels[:, None], axis=1))
        outputs["loss"] = loss
    return outputs


# ------------------------------ parameter init --------------------------------
def init_module_params(key):
    """f32 parameters, laid out exactly like the PyTorch module."""
    ks = jax.random.split(key, 12)
    n = lambda k, shp: (0.02 * jax.random.normal(k, shp)).astype(jnp.float32)
    return {
        # vision_encoder: Linear(IMG_DIM, V_HID) -> ReLU -> Linear(V_HID, FEAT)
        "v_w1": n(ks[0], (IMG_DIM, V_HID)), "v_b1": n(ks[1], (1, V_HID)),
        "v_w2": n(ks[2], (V_HID, FEAT)),    "v_b2": n(ks[3], (1, FEAT)),
        # ntlbg_selector query projector: Linear(FEAT, SEL_HID) -> ReLU ->
        # Linear(SEL_HID, FEAT)
        "q_w1": n(ks[4], (FEAT, SEL_HID)),  "q_b1": n(ks[5], (1, SEL_HID)),
        "q_w2": n(ks[6], (SEL_HID, FEAT)),  "q_b2": n(ks[7], (1, FEAT)),
        # multimodal_projector: Linear(FEAT, N_EMBD)
        "p_w": n(ks[8], (FEAT, N_EMBD)),    "p_b": n(ks[9], (1, N_EMBD)),
        # classifier: Linear(N_EMBD, N_CLS)
        "c_w": n(ks[10], (N_EMBD, N_CLS)),  "c_b": n(ks[11], (1, N_CLS)),
    }


def prepare_kernel_params(p):
    """Offline prep: fold projector+classifier; cast large weights to bf16.

    Valid because the projector output is never exposed by the module
    (mean-pool commutes with the Linear; two Linears compose).
    """
    h_w = (p["p_w"] @ p["c_w"]).astype(jnp.float32)                  # [FEAT, N_CLS]
    h_b = (p["p_b"] @ p["c_w"] + p["c_b"]).astype(jnp.float32)       # [1, N_CLS]
    bf16 = jnp.bfloat16
    return {
        "v_w1": p["v_w1"].astype(bf16), "v_b1": p["v_b1"],
        "v_w2": p["v_w2"].astype(bf16), "v_b2": p["v_b2"],
        "q_w1": p["q_w1"].astype(bf16), "q_b1": p["q_b1"],
        "q_w2": p["q_w2"].astype(bf16), "q_b2": p["q_b2"],
        "h_w": h_w, "h_b": h_b,
    }


# ----------------------------------- main --------------------------------------
if __name__ == "__main__":
    key = jax.random.PRNGKey(0)
    k_frames, k_text, k_params = jax.random.split(key, 3)

    # Frames already resized + flattened + /255 (as in the PyTorch forward).
    video_frames = jax.random.uniform(k_frames, (T, IMG_DIM), jnp.float32)
    # The reference forward uses torch.randn(1, 768) text features.
    text_features = jax.random.normal(k_text, (1, FEAT), jnp.float32)
    labels = jnp.array([1], dtype=jnp.int32)

    module_params = init_module_params(k_params)
    kernel_params = prepare_kernel_params(module_params)

    out = ntlbg_forward(video_frames, text_features, kernel_params, labels,
                        return_loss=True)
    out = jax.block_until_ready(out)

    logits = out["logits"]
    idx = out["representative_indices"]
    assert logits.shape == (1, N_CLS)
    assert idx.shape == (1, K)
    assert bool(jnp.all(jnp.isfinite(logits)))
    assert bool(jnp.all((idx >= 0) & (idx < T)))
    assert bool(jnp.all(idx[:, 1:] > idx[:, :-1]))   # distinct, temporally sorted
    assert bool(jnp.isfinite(out["loss"]))
    print("KERNEL_OK")
</pallas_src>

<mosaic_0001>
module attributes {stable_mosaic.version = 11 : i64} {
  func.func @_fused_kernel(%arg0: memref<8x768xf32, #tpu.memory_space<vmem>>, %arg1: memref<1x768xf32, #tpu.memory_space<vmem>>, %arg2: memref<768x256xbf16, #tpu.memory_space<vmem>>, %arg3: memref<1x256xf32, #tpu.memory_space<vmem>>, %arg4: memref<256x768xbf16, #tpu.memory_space<vmem>>, %arg5: memref<1x768xf32, #tpu.memory_space<vmem>>, %arg6: memref<768x256xbf16, #tpu.memory_space<vmem>>, %arg7: memref<1x256xf32, #tpu.memory_space<vmem>>, %arg8: memref<256x768xbf16, #tpu.memory_space<vmem>>, %arg9: memref<1x768xf32, #tpu.memory_space<vmem>>, %arg10: memref<768x4xf32, #tpu.memory_space<vmem>>, %arg11: memref<1x4xf32, #tpu.memory_space<vmem>>, %arg12: memref<1x4xf32, #tpu.memory_space<vmem>>, %arg13: memref<1x4xi32, #tpu.memory_space<vmem>>) attributes {dimension_semantics = [], scalar_prefetch = 0 : i64, scratch_operands = 0 : i64, tpu.core_type = #tpu.core_type<tc>} {
    %c0 = arith.constant 0 : index
    %c0_0 = arith.constant 0 : index
    %0 = vector.load %arg0[%c0, %c0_0] : memref<8x768xf32, #tpu.memory_space<vmem>>, vector<8x768xf32>
    %1 = arith.truncf %0 : vector<8x768xf32> to vector<8x768xbf16>
    %c0_1 = arith.constant 0 : index
    %c0_2 = arith.constant 0 : index
    %2 = vector.load %arg2[%c0_1, %c0_2] : memref<768x256xbf16, #tpu.memory_space<vmem>>, vector<768x256xbf16>
    %cst = arith.constant dense<0.000000e+00> : vector<8x256xf32>
    %3 = tpu.matmul %1, %2, %cst {dimension_numbers = #tpu.dot_dimension_numbers<[1], [0], [0], [1], [0, 0, 1, 1], [], []>} : vector<8x768xbf16>, vector<768x256xbf16>, vector<8x256xf32> -> vector<8x256xf32>
    %c0_3 = arith.constant 0 : index
    %c0_4 = arith.constant 0 : index
    %4 = vector.load %arg3[%c0_3, %c0_4] : memref<1x256xf32, #tpu.memory_space<vmem>>, vector<1x256xf32>
    %5 = vector.broadcast %4 : vector<1x256xf32> to vector<8x256xf32>
    %6 = arith.addf %3, %5 : vector<8x256xf32>
    %cst_5 = arith.constant 0.000000e+00 : f32
    %7 = vector.broadcast %cst_5 : f32 to vector<8x256xf32>
    %8 = arith.maximumf %6, %7 : vector<8x256xf32>
    %9 = arith.truncf %8 : vector<8x256xf32> to vector<8x256xbf16>
    %c0_6 = arith.constant 0 : index
    %c0_7 = arith.constant 0 : index
    %10 = vector.load %arg4[%c0_6, %c0_7] : memref<256x768xbf16, #tpu.memory_space<vmem>>, vector<256x768xbf16>
    %cst_8 = arith.constant dense<0.000000e+00> : vector<8x768xf32>
    %11 = tpu.matmul %9, %10, %cst_8 {dimension_numbers = #tpu.dot_dimension_numbers<[1], [0], [0], [1], [0, 0, 1, 1], [], []>} : vector<8x256xbf16>, vector<256x768xbf16>, vector<8x768xf32> -> vector<8x768xf32>
    %c0_9 = arith.constant 0 : index
    %c0_10 = arith.constant 0 : index
    %12 = vector.load %arg5[%c0_9, %c0_10] : memref<1x768xf32, #tpu.memory_space<vmem>>, vector<1x768xf32>
    %13 = vector.broadcast %12 : vector<1x768xf32> to vector<8x768xf32>
    %14 = arith.addf %11, %13 : vector<8x768xf32>
    %c0_11 = arith.constant 0 : index
    %c0_12 = arith.constant 0 : index
    %15 = vector.load %arg1[%c0_11, %c0_12] : memref<1x768xf32, #tpu.memory_space<vmem>>, vector<1x768xf32>
    %16 = arith.truncf %15 : vector<1x768xf32> to vector<1x768xbf16>
    %c0_13 = arith.constant 0 : index
    %c0_14 = arith.constant 0 : index
    %17 = vector.load %arg6[%c0_13, %c0_14] : memref<768x256xbf16, #tpu.memory_space<vmem>>, vector<768x256xbf16>
    %cst_15 = arith.constant dense<0.000000e+00> : vector<1x256xf32>
    %18 = tpu.matmul %16, %17, %cst_15 {dimension_numbers = #tpu.dot_dimension_numbers<[1], [0], [0], [1], [0, 0, 1, 1], [], []>} : vector<1x768xbf16>, vector<768x256xbf16>, vector<1x256xf32> -> vector<1x256xf32>
    %c0_16 = arith.constant 0 : index
    %c0_17 = arith.constant 0 : index
    %19 = vector.load %arg7[%c0_16, %c0_17] : memref<1x256xf32, #tpu.memory_space<vmem>>, vector<1x256xf32>
    %20 = arith.addf %18, %19 : vector<1x256xf32>
    %cst_18 = arith.constant 0.000000e+00 : f32
    %21 = vector.broadcast %cst_18 : f32 to vector<1x256xf32>
    %22 = arith.maximumf %20, %21 : vector<1x256xf32>
    %23 = arith.truncf %22 : vector<1x256xf32> to vector<1x256xbf16>
    %c0_19 = arith.constant 0 : index
    %c0_20 = arith.constant 0 : index
    %24 = vector.load %arg8[%c0_19, %c0_20] : memref<256x768xbf16, #tpu.memory_space<vmem>>, vector<256x768xbf16>
    %cst_21 = arith.constant dense<0.000000e+00> : vector<1x768xf32>
    %25 = tpu.matmul %23, %24, %cst_21 {dimension_numbers = #tpu.dot_dimension_numbers<[1], [0], [0], [1], [0, 0, 1, 1], [], []>} : vector<1x256xbf16>, vector<256x768xbf16>, vector<1x768xf32> -> vector<1x768xf32>
    %c0_22 = arith.constant 0 : index
    %c0_23 = arith.constant 0 : index
    %26 = vector.load %arg9[%c0_22, %c0_23] : memref<1x768xf32, #tpu.memory_space<vmem>>, vector<1x768xf32>
    %27 = arith.addf %25, %26 : vector<1x768xf32>
    %28 = vector.broadcast %27 : vector<1x768xf32> to vector<8x768xf32>
    %29 = arith.mulf %14, %28 : vector<8x768xf32>
    %cst_24 = arith.constant dense<0.000000e+00> : vector<8xf32>
    %30 = vector.multi_reduction <add>, %29, %cst_24 [1] : vector<8x768xf32> to vector<8xf32>
    %31 = vector.shape_cast %30 : vector<8xf32> to vector<8x1xf32>
    %cst_25 = arith.constant 0.0360843912 : f32
    %32 = vector.broadcast %cst_25 : f32 to vector<8x1xf32>
    %33 = arith.mulf %31, %32 : vector<8x1xf32>
    %cst_26 = arith.constant dense<0xFF800000> : vector<1xf32>
    %34 = vector.multi_reduction <maximumf>, %33, %cst_26 [0] : vector<8x1xf32> to vector<1xf32>
    %35 = vector.shape_cast %34 : vector<1xf32> to vector<1x1xf32>
    %36 = vector.broadcast %35 : vector<1x1xf32> to vector<8x1xf32>
    %37 = arith.subf %33, %36 : vector<8x1xf32>
    %38 = math.exp %37 : vector<8x1xf32>
    %cst_27 = arith.constant dense<0.000000e+00> : vector<1xf32>
    %39 = vector.multi_reduction <add>, %38, %cst_27 [0] : vector<8x1xf32> to vector<1xf32>
    %40 = vector.shape_cast %39 : vector<1xf32> to vector<1x1xf32>
    %41 = tpu.reciprocal %40 {approx = true} : vector<1x1xf32> -> vector<1x1xf32>
    %42 = vector.broadcast %41 : vector<1x1xf32> to vector<8x1xf32>
    %43 = arith.mulf %38, %42 : vector<8x1xf32>
    %44 = vector.broadcast %43 : vector<8x1xf32> to vector<8x768xf32>
    %45 = arith.mulf %44, %14 : vector<8x768xf32>
    %cst_28 = arith.constant dense<0.000000e+00> : vector<768xf32>
    %46 = vector.multi_reduction <add>, %45, %cst_28 [0] : vector<8x768xf32> to vector<768xf32>
    %47 = vector.shape_cast %46 : vector<768xf32> to vector<1x768xf32>
    %48 = vector.broadcast %47 : vector<1x768xf32> to vector<8x768xf32>
    %49 = arith.subf %14, %48 : vector<8x768xf32>
    %50 = vector.broadcast %43 : vector<8x1xf32> to vector<8x768xf32>
    %51 = arith.mulf %50, %49 : vector<8x768xf32>
    %52 = arith.mulf %51, %49 : vector<8x768xf32>
    %cst_29 = arith.constant dense<0.000000e+00> : vector<768xf32>
    %53 = vector.multi_reduction <add>, %52, %cst_29 [0] : vector<8x768xf32> to vector<768xf32>
    %54 = vector.shape_cast %53 : vector<768xf32> to vector<1x768xf32>
    %cst_30 = arith.constant 9.99999997E-7 : f32
    %55 = vector.broadcast %cst_30 : f32 to vector<1x768xf32>
    %56 = arith.addf %54, %55 : vector<1x768xf32>
    %57 = arith.mulf %49, %49 : vector<8x768xf32>
    %58 = vector.broadcast %56 : vector<1x768xf32> to vector<8x768xf32>
    %59 = arith.divf %57, %58 : vector<8x768xf32>
    %cst_31 = arith.constant dense<0.000000e+00> : vector<8xf32>
    %60 = vector.multi_reduction <add>, %59, %cst_31 [1] : vector<8x768xf32> to vector<8xf32>
    %61 = vector.shape_cast %60 : vector<8xf32> to vector<8x1xf32>
    %62 = tpu.iota {dimensions = array<i32: 0>} : vector<8x1xi32>
    %63 = arith.sitofp %62 : vector<8x1xi32> to vector<8x1xf32>
    %cst_32 = arith.constant 0.000000e+00 : f32
    %64 = vector.broadcast %cst_32 : f32 to vector<8x1xf32>
    %cst_33 = arith.constant dense<0x7F800000> : vector<1xf32>
    %65 = vector.multi_reduction <minimumf>, %61, %cst_33 [0] : vector<8x1xf32> to vector<1xf32>
    %66 = vector.shape_cast %65 : vector<1xf32> to vector<1x1xf32>
    %67 = vector.broadcast %66 : vector<1x1xf32> to vector<8x1xf32>
    %68 = arith.cmpf ole, %61, %67 : vector<8x1xf32>
    %cst_34 = arith.constant 8.000000e+00 : f32
    %69 = vector.broadcast %cst_34 : f32 to vector<8x1xf32>
    %70 = arith.select %68, %63, %69 : vector<8x1xi1>, vector<8x1xf32>
    %cst_35 = arith.constant dense<0x7F800000> : vector<1xf32>
    %71 = vector.multi_reduction <minimumf>, %70, %cst_35 [0] : vector<8x1xf32> to vector<1xf32>
    %72 = vector.shape_cast %71 : vector<1xf32> to vector<1x1xf32>
    %73 = vector.broadcast %72 : vector<1x1xf32> to vector<8x1xf32>
    %74 = arith.cmpf oeq, %63, %73 : vector<8x1xf32>
    %cst_36 = arith.constant 1.000000e+00 : f32
    %75 = vector.broadcast %cst_36 : f32 to vector<8x1xf32>
    %76 = arith.select %74, %75, %64 : vector<8x1xi1>, vector<8x1xf32>
    %cst_37 = arith.constant 0x7F800000 : f32
    %77 = vector.broadcast %cst_37 : f32 to vector<8x1xf32>
    %78 = arith.select %74, %77, %61 : vector<8x1xi1>, vector<8x1xf32>
    %cst_38 = arith.constant dense<0x7F800000> : vector<1xf32>
    %79 = vector.multi_reduction <minimumf>, %78, %cst_38 [0] : vector<8x1xf32> to vector<1xf32>
    %80 = vector.shape_cast %79 : vector<1xf32> to vector<1x1xf32>
    %81 = vector.broadcast %80 : vector<1x1xf32> to vector<8x1xf32>
    %82 = arith.cmpf ole, %78, %81 : vector<8x1xf32>
    %cst_39 = arith.constant 8.000000e+00 : f32
    %83 = vector.broadcast %cst_39 : f32 to vector<8x1xf32>
    %84 = arith.select %82, %63, %83 : vector<8x1xi1>, vector<8x1xf32>
    %cst_40 = arith.constant dense<0x7F800000> : vector<1xf32>
    %85 = vector.multi_reduction <minimumf>, %84, %cst_40 [0] : vector<8x1xf32> to vector<1xf32>
    %86 = vector.shape_cast %85 : vector<1xf32> to vector<1x1xf32>
    %87 = vector.broadcast %86 : vector<1x1xf32> to vector<8x1xf32>
    %88 = arith.cmpf oeq, %63, %87 : vector<8x1xf32>
    %cst_41 = arith.constant 1.000000e+00 : f32
    %89 = vector.broadcast %cst_41 : f32 to vector<8x1xf32>
    %90 = arith.select %88, %89, %76 : vector<8x1xi1>, vector<8x1xf32>
    %cst_42 = arith.constant 0x7F800000 : f32
    %91 = vector.broadcast %cst_42 : f32 to vector<8x1xf32>
    %92 = arith.select %88, %91, %78 : vector<8x1xi1>, vector<8x1xf32>
    %cst_43 = arith.constant dense<0x7F800000> : vector<1xf32>
    %93 = vector.multi_reduction <minimumf>, %92, %cst_43 [0] : vector<8x1xf32> to vector<1xf32>
    %94 = vector.shape_cast %93 : vector<1xf32> to vector<1x1xf32>
    %95 = vector.broadcast %94 : vector<1x1xf32> to vector<8x1xf32>
    %96 = arith.cmpf ole, %92, %95 : vector<8x1xf32>
    %cst_44 = arith.constant 8.000000e+00 : f32
    %97 = vector.broadcast %cst_44 : f32 to vector<8x1xf32>
    %98 = arith.select %96, %63, %97 : vector<8x1xi1>, vector<8x1xf32>
    %cst_45 = arith.constant dense<0x7F800000> : vector<1xf32>
    %99 = vector.multi_reduction <minimumf>, %98, %cst_45 [0] : vector<8x1xf32> to vector<1xf32>
    %100 = vector.shape_cast %99 : vector<1xf32> to vector<1x1xf32>
    %101 = vector.broadcast %100 : vector<1x1xf32> to vector<8x1xf32>
    %102 = arith.cmpf oeq, %63, %101 : vector<8x1xf32>
    %cst_46 = arith.constant 1.000000e+00 : f32
    %103 = vector.broadcast %cst_46 : f32 to vector<8x1xf32>
    %104 = arith.select %102, %103, %90 : vector<8x1xi1>, vector<8x1xf32>
    %cst_47 = arith.constant 0x7F800000 : f32
    %105 = vector.broadcast %cst_47 : f32 to vector<8x1xf32>
    %106 = arith.select %102, %105, %92 : vector<8x1xi1>, vector<8x1xf32>
    %cst_48 = arith.constant dense<0x7F800000> : vector<1xf32>
    %107 = vector.multi_reduction <minimumf>, %106, %cst_48 [0] : vector<8x1xf32> to vector<1xf32>
    %108 = vector.shape_cast %107 : vector<1xf32> to vector<1x1xf32>
    %109 = vector.broadcast %108 : vector<1x1xf32> to vector<8x1xf32>
    %110 = arith.cmpf ole, %106, %109 : vector<8x1xf32>
    %cst_49 = arith.constant 8.000000e+00 : f32
    %111 = vector.broadcast %cst_49 : f32 to vector<8x1xf32>
    %112 = arith.select %110, %63, %111 : vector<8x1xi1>, vector<8x1xf32>
    %cst_50 = arith.constant dense<0x7F800000> : vector<1xf32>
    %113 = vector.multi_reduction <minimumf>, %112, %cst_50 [0] : vector<8x1xf32> to vector<1xf32>
    %114 = vector.shape_cast %113 : vector<1xf32> to vector<1x1xf32>
    %115 = vector.broadcast %114 : vector<1x1xf32> to vector<8x1xf32>
    %116 = arith.cmpf oeq, %63, %115 : vector<8x1xf32>
    %cst_51 = arith.constant 1.000000e+00 : f32
    %117 = vector.broadcast %cst_51 : f32 to vector<8x1xf32>
    %118 = arith.select %116, %117, %104 : vector<8x1xi1>, vector<8x1xf32>
    %119 = arith.minimumf %72, %86 : vector<1x1xf32>
    %120 = arith.maximumf %72, %86 : vector<1x1xf32>
    %121 = arith.minimumf %100, %114 : vector<1x1xf32>
    %122 = arith.maximumf %100, %114 : vector<1x1xf32>
    %123 = arith.minimumf %119, %121 : vector<1x1xf32>
    %124 = arith.maximumf %119, %121 : vector<1x1xf32>
    %125 = arith.minimumf %120, %122 : vector<1x1xf32>
    %126 = arith.maximumf %120, %122 : vector<1x1xf32>
    %127 = arith.minimumf %124, %125 : vector<1x1xf32>
    %128 = arith.maximumf %124, %125 : vector<1x1xf32>
    %129 = tpu.iota {dimensions = array<i32: 1>} : vector<1x4xi32>
    %c0_i32 = arith.constant 0 : i32
    %130 = vector.broadcast %c0_i32 : i32 to vector<1x4xi32>
    %131 = arith.cmpi eq, %129, %130 : vector<1x4xi32>
    %cst_52 = arith.constant 0.000000e+00 : f32
    %132 = vector.shape_cast %123 : vector<1x1xf32> to vector<1x1xf32>
    %133 = vector.broadcast %132 : vector<1x1xf32> to vector<1x4xf32>
    %134 = vector.broadcast %cst_52 : f32 to vector<1x4xf32>
    %135 = arith.select %131, %133, %134 : vector<1x4xi1>, vector<1x4xf32>
    %c1_i32 = arith.constant 1 : i32
    %136 = vector.broadcast %c1_i32 : i32 to vector<1x4xi32>
    %137 = arith.cmpi eq, %129, %136 : vector<1x4xi32>
    %cst_53 = arith.constant 0.000000e+00 : f32
    %138 = vector.shape_cast %127 : vector<1x1xf32> to vector<1x1xf32>
    %139 = vector.broadcast %138 : vector<1x1xf32> to vector<1x4xf32>
    %140 = vector.broadcast %cst_53 : f32 to vector<1x4xf32>
    %141 = arith.select %137, %139, %140 : vector<1x4xi1>, vector<1x4xf32>
    %142 = arith.addf %135, %141 : vector<1x4xf32>
    %c2_i32 = arith.constant 2 : i32
    %143 = vector.broadcast %c2_i32 : i32 to vector<1x4xi32>
    %144 = arith.cmpi eq, %129, %143 : vector<1x4xi32>
    %cst_54 = arith.constant 0.000000e+00 : f32
    %145 = vector.shape_cast %128 : vector<1x1xf32> to vector<1x1xf32>
    %146 = vector.broadcast %145 : vector<1x1xf32> to vector<1x4xf32>
    %147 = vector.broadcast %cst_54 : f32 to vector<1x4xf32>
    %148 = arith.select %144, %146, %147 : vector<1x4xi1>, vector<1x4xf32>
    %149 = arith.addf %142, %148 : vector<1x4xf32>
    %c3_i32 = arith.constant 3 : i32
    %150 = vector.broadcast %c3_i32 : i32 to vector<1x4xi32>
    %151 = arith.cmpi eq, %129, %150 : vector<1x4xi32>
    %cst_55 = arith.constant 0.000000e+00 : f32
    %152 = vector.shape_cast %126 : vector<1x1xf32> to vector<1x1xf32>
    %153 = vector.broadcast %152 : vector<1x1xf32> to vector<1x4xf32>
    %154 = vector.broadcast %cst_55 : f32 to vector<1x4xf32>
    %155 = arith.select %151, %153, %154 : vector<1x4xi1>, vector<1x4xf32>
    %156 = arith.addf %149, %155 : vector<1x4xf32>
    %157 = arith.fptosi %156 : vector<1x4xf32> to vector<1x4xi32>
    %c0_56 = arith.constant 0 : index
    %c0_57 = arith.constant 0 : index
    %158 = vector.load %arg13[%c0_56, %c0_57] : memref<1x4xi32, #tpu.memory_space<vmem>>, vector<1x4xi32>
    tpu.vector_store %arg13[%c0_56, %c0_57], %157 {strides = array<i32>} : memref<1x4xi32, #tpu.memory_space<vmem>>, vector<1x4xi32>,
    %159 = vector.broadcast %118 : vector<8x1xf32> to vector<8x768xf32>
    %160 = arith.mulf %159, %14 : vector<8x768xf32>
    %cst_58 = arith.constant dense<0.000000e+00> : vector<768xf32>
    %161 = vector.multi_reduction <add>, %160, %cst_58 [0] : vector<8x768xf32> to vector<768xf32>
    %162 = vector.shape_cast %161 : vector<768xf32> to vector<1x768xf32>
    %cst_59 = arith.constant 2.500000e-01 : f32
    %163 = vector.broadcast %cst_59 : f32 to vector<1x768xf32>
    %164 = arith.mulf %162, %163 : vector<1x768xf32>
    %c0_60 = arith.constant 0 : index
    %c0_61 = arith.constant 0 : index
    %165 = vector.load %arg10[%c0_60, %c0_61] : memref<768x4xf32, #tpu.memory_space<vmem>>, vector<768x4xf32>
    %cst_62 = arith.constant dense<0.000000e+00> : vector<1x4xf32>
    %166 = tpu.matmul %164, %165, %cst_62 {dimension_numbers = #tpu.dot_dimension_numbers<[1], [0], [0], [1], [0, 0, 1, 1], [], []>} : vector<1x768xf32>, vector<768x4xf32>, vector<1x4xf32> -> vector<1x4xf32>
    %c0_63 = arith.constant 0 : index
    %c0_64 = arith.constant 0 : index
    %167 = vector.load %arg11[%c0_63, %c0_64] : memref<1x4xf32, #tpu.memory_space<vmem>>, vector<1x4xf32>
    %168 = arith.addf %166, %167 : vector<1x4xf32>
    %c0_65 = arith.constant 0 : index
    %c0_66 = arith.constant 0 : index
    %169 = vector.load %arg12[%c0_65, %c0_66] : memref<1x4xf32, #tpu.memory_space<vmem>>, vector<1x4xf32>
    tpu.vector_store %arg12[%c0_65, %c0_66], %168 {strides = array<i32>} : memref<1x4xf32, #tpu.memory_space<vmem>>, vector<1x4xf32>,
    return
  }
}

</mosaic_0001>

<llo_original>
// kernel: ntlbg_forward.1
$region0: #{ntlbg_forward.1}
  #allocation0 [shape = 'u32[]', space=smem, size = 0x4, offset = 0x4, fixed_abs, tag = 'smem constant byte address 0x4 - core index']
  #allocation1 [shape = 'u32[144,128]{1,0:T(1,128)}', space=vmem, size = 0x12000, scoped, tag = 'internal scratch']
  %s0 = inlined_call_operand.hbm [shape: f32[8,768], index: 0, kind: input, shape index: {}]
  %s1 = inlined_call_operand.vmem [shape: f32[1,768], index: 1, kind: input, shape index: {}]
  %s2 = inlined_call_operand.vmem [shape: bf16[768,256], index: 2, kind: input, shape index: {}]
  %s3 = inlined_call_operand.vmem [shape: f32[1,256], index: 3, kind: input, shape index: {}]
  %s4 = inlined_call_operand.hbm [shape: bf16[256,768], index: 4, kind: input, shape index: {}]
  %s5 = inlined_call_operand.vmem [shape: f32[1,768], index: 5, kind: input, shape index: {}]
  %s6 = inlined_call_operand.hbm [shape: bf16[768,256], index: 6, kind: input, shape index: {}]
  %s7 = inlined_call_operand.vmem [shape: f32[1,256], index: 7, kind: input, shape index: {}]
  %s8 = inlined_call_operand.hbm [shape: bf16[256,768], index: 8, kind: input, shape index: {}]
  %s9 = inlined_call_operand.vmem [shape: f32[1,768], index: 9, kind: input, shape index: {}]
  %s10 = inlined_call_operand.vmem [shape: f32[768,4], index: 10, kind: input, shape index: {}]
  %s11 = inlined_call_operand.vmem [shape: f32[1,4], index: 11, kind: input, shape index: {}]
  %s12 = inlined_call_operand.vmem [shape: f32[1,4], index: 12, kind: output, shape index: {0}]
  %s13 = inlined_call_operand.hbm [shape: s32[1,4], index: 13, kind: output, shape index: {1}]
  %14 = xla_tuple %s12, %s13
  %s15 = sld [smem:[#allocation0]]
  $region82: #{ntlbg_forward.1} parent=0
    _
  %s17 = ssub.s32 1, %s15
  %s18 = scalar_select 0, %s17, %s15
  $region1: #{ntlbg_forward.1} parent=0
    #allocation2 [shape = 'u8[24576]{0}', space=vmem, size = 0x6000, scoped, tag = 'input window, operand 0, single buffered']
    #allocation3 [shape = 's32[1]{0}', space=sflag, size = 0x4, scoped, tag = 'scoped memory for ntlbg_forward.1']
    #allocation4 [shape = 's32[1]{0}', space=sflag, size = 0x4, scoped, tag = 'scoped memory for ntlbg_forward.1']
    #allocation5 [shape = 'u8[393216]{0}', space=vmem, size = 0x60000, scoped, tag = 'input window, operand 4, single buffered']
    #allocation6 [shape = 's32[1]{0}', space=sflag, size = 0x4, scoped, tag = 'scoped memory for ntlbg_forward.1']
    #allocation7 [shape = 'u8[393216]{0}', space=vmem, size = 0x60000, scoped, tag = 'input window, operand 6, single buffered']
    #allocation8 [shape = 'u8[393216]{0}', space=vmem, size = 0x60000, scoped, tag = 'input window, operand 8, single buffered']
    #allocation9 [shape = 's32[1]{0}', space=sflag, size = 0x4, scoped, tag = 'scoped memory for ntlbg_forward.1']
    #allocation10 [shape = 'u8[512]{0}', space=vmem, size = 0x400, scoped, tag = 'output window, operand 1, single buffered']
    %19 = vsyncpa [#allocation3], 0
    %20 = vsyncpa [#allocation6], 0
    %21 = vsyncpa [#allocation9], 0
    %22 = vsyncpa [#allocation4], 0
    // Predicated region
    $region2: #{ntlbg_forward.1} parent=1 // pred_check
      _
    $region3: #{ntlbg_forward.1} parent=1 // pred_check_branch
      %24 = sbr.rel (0) target = $region5
    $region4: #{ntlbg_forward.1} parent=1 // pred_region
      %s26 = ssub.s32 768, 768
      %27 = vsyncadd [#allocation3], %s26
      %s29 = sshll.u32 [#allocation2], 4
      %s30 = int_to_ptr.vmem [resolvable:$true] %s29
      %32 = dma.hbm_to_vmem [thread:$0]  %s0, 768, %s30, [#allocation3]
    $region5: #{ntlbg_forward.1} parent=1 // pred_fallthru
      _
    // Predicated region
    $region6: #{ntlbg_forward.1} parent=1 // pred_check
      _
    $region7: #{ntlbg_forward.1} parent=1 // pred_check_branch
      %34 = sbr.rel (0) target = $region9
    $region8: #{ntlbg_forward.1} parent=1 // pred_region
      _
    $region9: #{ntlbg_forward.1} parent=1 // pred_fallthru
      _
    // Predicated region
    $region10: #{ntlbg_forward.1} parent=1 // pred_check
      _
    $region11: #{ntlbg_forward.1} parent=1 // pred_check_branch
      %36 = sbr.rel (0) target = $region13
    $region12: #{ntlbg_forward.1} parent=1 // pred_region
      _
    $region13: #{ntlbg_forward.1} parent=1 // pred_fallthru
      _
    // Predicated region
    $region14: #{ntlbg_forward.1} parent=1 // pred_check
      _
    $region15: #{ntlbg_forward.1} parent=1 // pred_check_branch
      %38 = sbr.rel (0) target = $region17
    $region16: #{ntlbg_forward.1} parent=1 // pred_region
      _
    $region17: #{ntlbg_forward.1} parent=1 // pred_fallthru
      _
    // Predicated region
    $region18: #{ntlbg_forward.1} parent=1 // pred_check
      _
    $region19: #{ntlbg_forward.1} parent=1 // pred_check_branch
      %40 = sbr.rel (0) target = $region21
    $region20: #{ntlbg_forward.1} parent=1 // pred_region
      %s42 = ssub.s32 12288, 12288
      %43 = vsyncadd [#allocation6], %s42
      %s44 = sshll.u32 [#allocation5], 4
      %s45 = int_to_ptr.vmem [resolvable:$true] %s44
      %50 = dma.hbm_to_vmem [thread:$0]  %s4, 12288, %s45, [#allocation6], 384, 384, 24
    $region21: #{ntlbg_forward.1} parent=1 // pred_fallthru
      _
    // Predicated region
    $region22: #{ntlbg_forward.1} parent=1 // pred_check
      _
    $region23: #{ntlbg_forward.1} parent=1 // pred_check_branch
      %52 = sbr.rel (0) target = $region25
    $region24: #{ntlbg_forward.1} parent=1 // pred_region
      _
    $region25: #{ntlbg_forward.1} parent=1 // pred_fallthru
      _
    // Predicated region
    $region26: #{ntlbg_forward.1} parent=1 // pred_check
      _
    $region27: #{ntlbg_forward.1} parent=1 // pred_check_branch
      %54 = sbr.rel (0) target = $region29
    $region28: #{ntlbg_forward.1} parent=1 // pred_region
      %s56 = ssub.s32 12288, 12288
      %57 = vsyncadd [#allocation6], %s56
      %s58 = sshll.u32 [#allocation7], 4
      %s59 = int_to_ptr.vmem [resolvable:$true] %s58
      %64 = dma.hbm_to_vmem [thread:$0]  %s6, 12288, %s59, [#allocation6], 128, 128, 8
    $region29: #{ntlbg_forward.1} parent=1 // pred_fallthru
      _
    // Predicated region
    $region30: #{ntlbg_forward.1} parent=1 // pred_check
      _
    $region31: #{ntlbg_forward.1} parent=1 // pred_check_branch
      %66 = sbr.rel (0) target = $region33
    $region32: #{ntlbg_forward.1} parent=1 // pred_region
      _
    $region33: #{ntlbg_forward.1} parent=1 // pred_fallthru
      _
    // Predicated region
    $region34: #{ntlbg_forward.1} parent=1 // pred_check
      _
    $region35: #{ntlbg_forward.1} parent=1 // pred_check_branch
      %68 = sbr.rel (0) target = $region37
    $region36: #{ntlbg_forward.1} parent=1 // pred_region
      %s70 = ssub.s32 12288, 12288
      %71 = vsyncadd [#allocation9], %s70
      %s72 = sshll.u32 [#allocation8], 4
      %s73 = int_to_ptr.vmem [resolvable:$true] %s72
      %78 = dma.hbm_to_vmem [thread:$0]  %s8, 12288, %s73, [#allocation9], 384, 384, 24
    $region37: #{ntlbg_forward.1} parent=1 // pred_fallthru
      _
    // Predicated region
    $region38: #{ntlbg_forward.1} parent=1 // pred_check
      _
    $region39: #{ntlbg_forward.1} parent=1 // pred_check_branch
      %80 = sbr.rel (0) target = $region41
    $region40: #{ntlbg_forward.1} parent=1 // pred_region
      _
    $region41: #{ntlbg_forward.1} parent=1 // pred_fallthru
      _
    // Predicated region
    $region42: #{ntlbg_forward.1} parent=1 // pred_check
      _
    $region43: #{ntlbg_forward.1} parent=1 // pred_check_branch
      %82 = sbr.rel (0) target = $region45
    $region44: #{ntlbg_forward.1} parent=1 // pred_region
      _
    $region45: #{ntlbg_forward.1} parent=1 // pred_fallthru
      _
    // Predicated region
    $region46: #{ntlbg_forward.1} parent=1 // pred_check
      _
    $region47: #{ntlbg_forward.1} parent=1 // pred_check_branch
      %84 = sbr.rel (0) target = $region49
    $region48: #{ntlbg_forward.1} parent=1 // pred_region
      _
    $region49: #{ntlbg_forward.1} parent=1 // pred_fallthru
      _
    // Predicated region
    $region50: #{ntlbg_forward.1} parent=1 // pred_check
      _
    $region51: #{ntlbg_forward.1} parent=1 // pred_check_branch
      %86 = sbr.rel (0) target = $region53
    $region52: #{ntlbg_forward.1} parent=1 // pred_region
      %87 = dma.done [#allocation3], 768
    $region53: #{ntlbg_forward.1} parent=1 // pred_fallthru
      _
    // Predicated region
    $region54: #{ntlbg_forward.1} parent=1 // pred_check
      _
    $region55: #{ntlbg_forward.1} parent=1 // pred_check_branch
      %89 = sbr.rel (0) target = $region57
    $region56: #{ntlbg_forward.1} parent=1 // pred_region
      %90 = dma.done [#allocation6], 12288
    $region57: #{ntlbg_forward.1} parent=1 // pred_fallthru
      _
    // Predicated region
    $region58: #{ntlbg_forward.1} parent=1 // pred_check
      _
    $region59: #{ntlbg_forward.1} parent=1 // pred_check_branch
      %92 = sbr.rel (0) target = $region61
    $region60: #{ntlbg_forward.1} parent=1 // pred_region
      %93 = dma.done [#allocation6], 12288
    $region61: #{ntlbg_forward.1} parent=1 // pred_fallthru
      _
    // Predicated region
    $region62: #{ntlbg_forward.1} parent=1 // pred_check
      _
    $region63: #{ntlbg_forward.1} parent=1 // pred_check_branch
      %95 = sbr.rel (0) target = $region65
    $region64: #{ntlbg_forward.1} parent=1 // pred_region
      %96 = dma.done [#allocation9], 12288
    $region65: #{ntlbg_forward.1} parent=1 // pred_fallthru
      _
    %v97 = vld [vmem:[#allocation2] sm:$0xff]
    %v98 = vld [vmem:[#allocation2 + $0x8] sm:$0xff]
    %v99 = vld [vmem:[#allocation2 + $0x10] sm:$0xff]
    %v100 = vld [vmem:[#allocation2 + $0x18] sm:$0xff]
    %v101 = vld [vmem:[#allocation2 + $0x20] sm:$0xff]
    %v102 = vld [vmem:[#allocation2 + $0x28] sm:$0xff]
    %v103 = vpack.c.bf16 %v97, %v97
    %v104 = vpack.c.bf16 %v98, %v98
    %v105 = vpack.c.bf16 %v99, %v99
    %v106 = vpack.c.bf16 %v100, %v100
    %v107 = vpack.c.bf16 %v101, %v101
    %v108 = vpack.c.bf16 %v102, %v102
    %v109 = vld [vmem:[%s2] sm:$0xff]
    %v110 = vld [vmem:[%s2 + $0x8] sm:$0xff]
    %v111 = vld [vmem:[%s2 + $0x10] sm:$0xff]
    %v112 = vld [vmem:[%s2 + $0x18] sm:$0xff]
    %v113 = vld [vmem:[%s2 + $0x20] sm:$0xff]
    %v114 = vld [vmem:[%s2 + $0x28] sm:$0xff]
    %v115 = vld [vmem:[%s2 + $0x30] sm:$0xff]
    %v116 = vld [vmem:[%s2 + $0x38] sm:$0xff]
    %v117 = vld [vmem:[%s2 + $0x40] sm:$0xff]
    %v118 = vld [vmem:[%s2 + $0x48] sm:$0xff]
    %v119 = vld [vmem:[%s2 + $0x50] sm:$0xff]
    %v120 = vld [vmem:[%s2 + $0x58] sm:$0xff]
    %v121 = vld [vmem:[%s2 + $0x60] sm:$0xff]
    %v122 = vld [vmem:[%s2 + $0x68] sm:$0xff]
    %v123 = vld [vmem:[%s2 + $0x70] sm:$0xff]
    %v124 = vld [vmem:[%s2 + $0x78] sm:$0xff]
    %v125 = vld [vmem:[%s2 + $0x80] sm:$0xff]
    %v126 = vld [vmem:[%s2 + $0x88] sm:$0xff]
    %v127 = vld [vmem:[%s2 + $0x90] sm:$0xff]
    %v128 = vld [vmem:[%s2 + $0x98] sm:$0xff]
    %v129 = vld [vmem:[%s2 + $0xa0] sm:$0xff]
    %v130 = vld [vmem:[%s2 + $0xa8] sm:$0xff]
    %v131 = vld [vmem:[%s2 + $0xb0] sm:$0xff]
    %v132 = vld [vmem:[%s2 + $0xb8] sm:$0xff]
    %v133 = vld [vmem:[%s2 + $0xc0] sm:$0xff]
    %v134 = vld [vmem:[%s2 + $0xc8] sm:$0xff]
    %v135 = vld [vmem:[%s2 + $0xd0] sm:$0xff]
    %v136 = vld [vmem:[%s2 + $0xd8] sm:$0xff]
    %v137 = vld [vmem:[%s2 + $0xe0] sm:$0xff]
    %v138 = vld [vmem:[%s2 + $0xe8] sm:$0xff]
    %v139 = vld [vmem:[%s2 + $0xf0] sm:$0xff]
    %v140 = vld [vmem:[%s2 + $0xf8] sm:$0xff]
    %v141 = vld [vmem:[%s2 + $0x100] sm:$0xff]
    %v142 = vld [vmem:[%s2 + $0x108] sm:$0xff]
    %v143 = vld [vmem:[%s2 + $0x110] sm:$0xff]
    %v144 = vld [vmem:[%s2 + $0x118] sm:$0xff]
    %v145 = vld [vmem:[%s2 + $0x120] sm:$0xff]
    %v146 = vld [vmem:[%s2 + $0x128] sm:$0xff]
    %v147 = vld [vmem:[%s2 + $0x130] sm:$0xff]
    %v148 = vld [vmem:[%s2 + $0x138] sm:$0xff]
    %v149 = vld [vmem:[%s2 + $0x140] sm:$0xff]
    %v150 = vld [vmem:[%s2 + $0x148] sm:$0xff]
    %v151 = vld [vmem:[%s2 + $0x150] sm:$0xff]
    %v152 = vld [vmem:[%s2 + $0x158] sm:$0xff]
    %v153 = vld [vmem:[%s2 + $0x160] sm:$0xff]
    %v154 = vld [vmem:[%s2 + $0x168] sm:$0xff]
    %v155 = vld [vmem:[%s2 + $0x170] sm:$0xff]
    %v156 = vld [vmem:[%s2 + $0x178] sm:$0xff]
    %v157 = vld [vmem:[%s2 + $0x180] sm:$0xff]
    %v158 = vld [vmem:[%s2 + $0x188] sm:$0xff]
    %v159 = vld [vmem:[%s2 + $0x190] sm:$0xff]
    %v160 = vld [vmem:[%s2 + $0x198] sm:$0xff]
    %v161 = vld [vmem:[%s2 + $0x1a0] sm:$0xff]
    %v162 = vld [vmem:[%s2 + $0x1a8] sm:$0xff]
    %v163 = vld [vmem:[%s2 + $0x1b0] sm:$0xff]
    %v164 = vld [vmem:[%s2 + $0x1b8] sm:$0xff]
    %v165 = vld [vmem:[%s2 + $0x1c0] sm:$0xff]
    %v166 = vld [vmem:[%s2 + $0x1c8] sm:$0xff]
    %v167 = vld [vmem:[%s2 + $0x1d0] sm:$0xff]
    %v168 = vld [vmem:[%s2 + $0x1d8] sm:$0xff]
    %v169 = vld [vmem:[%s2 + $0x1e0] sm:$0xff]
    %v170 = vld [vmem:[%s2 + $0x1e8] sm:$0xff]
    %v171 = vld [vmem:[%s2 + $0x1f0] sm:$0xff]
    %v172 = vld [vmem:[%s2 + $0x1f8] sm:$0xff]
    %v173 = vld [vmem:[%s2 + $0x200] sm:$0xff]
    %v174 = vld [vmem:[%s2 + $0x208] sm:$0xff]
    %v175 = vld [vmem:[%s2 + $0x210] sm:$0xff]
    %v176 = vld [vmem:[%s2 + $0x218] sm:$0xff]
    %v177 = vld [vmem:[%s2 + $0x220] sm:$0xff]
    %v178 = vld [vmem:[%s2 + $0x228] sm:$0xff]
    %v179 = vld [vmem:[%s2 + $0x230] sm:$0xff]
    %v180 = vld [vmem:[%s2 + $0x238] sm:$0xff]
    %v181 = vld [vmem:[%s2 + $0x240] sm:$0xff]
    %v182 = vld [vmem:[%s2 + $0x248] sm:$0xff]
    %v183 = vld [vmem:[%s2 + $0x250] sm:$0xff]
    %v184 = vld [vmem:[%s2 + $0x258] sm:$0xff]
    %v185 = vld [vmem:[%s2 + $0x260] sm:$0xff]
    %v186 = vld [vmem:[%s2 + $0x268] sm:$0xff]
    %v187 = vld [vmem:[%s2 + $0x270] sm:$0xff]
    %v188 = vld [vmem:[%s2 + $0x278] sm:$0xff]
    %v189 = vld [vmem:[%s2 + $0x280] sm:$0xff]
    %v190 = vld [vmem:[%s2 + $0x288] sm:$0xff]
    %v191 = vld [vmem:[%s2 + $0x290] sm:$0xff]
    %v192 = vld [vmem:[%s2 + $0x298] sm:$0xff]
    %v193 = vld [vmem:[%s2 + $0x2a0] sm:$0xff]
    %v194 = vld [vmem:[%s2 + $0x2a8] sm:$0xff]
    %v195 = vld [vmem:[%s2 + $0x2b0] sm:$0xff]
    %v196 = vld [vmem:[%s2 + $0x2b8] sm:$0xff]
    %v197 = vld [vmem:[%s2 + $0x2c0] sm:$0xff]
    %v198 = vld [vmem:[%s2 + $0x2c8] sm:$0xff]
    %v199 = vld [vmem:[%s2 + $0x2d0] sm:$0xff]
    %v200 = vld [vmem:[%s2 + $0x2d8] sm:$0xff]
    %v201 = vld [vmem:[%s2 + $0x2e0] sm:$0xff]
    %v202 = vld [vmem:[%s2 + $0x2e8] sm:$0xff]
    %v203 = vld [vmem:[%s2 + $0x2f0] sm:$0xff]
    %v204 = vld [vmem:[%s2 + $0x2f8] sm:$0xff]
    %v205 = vld [vmem:[%s3] sm:$0x3]
    %v207 = vlaneseq
    %v208 = vshrl.u32 %v207, 7
    %v209 = vsub.s32 0, %v208
    %v210 = vrot.slane %v205, %v209
    %v211 = vlaneseq
    %v212 = vshrl.u32 %v211, 7
    %v213 = vsub.s32 1, %v212
    %v214 = vrot.slane %v205, %v213
    %v313 = vunpack.c.l.b16 %v109
    %v314 = vunpack.c.h.b16 %v109
    %v315 = vunpack.c.l.b16 %v110
    %v316 = vunpack.c.h.b16 %v110
    %v317 = vunpack.c.l.b16 %v111
    %v318 = vunpack.c.h.b16 %v111
    %v319 = vunpack.c.l.b16 %v112
    %v320 = vunpack.c.h.b16 %v112
    %v321 = vunpack.c.l.b16 %v113
    %v322 = vunpack.c.h.b16 %v113
    %v323 = vunpack.c.l.b16 %v114
    %v324 = vunpack.c.h.b16 %v114
    %v325 = vunpack.c.l.b16 %v115
    %v326 = vunpack.c.h.b16 %v115
    %v327 = vunpack.c.l.b16 %v116
    %v328 = vunpack.c.h.b16 %v116
    %v329 = vunpack.c.l.b16 %v117
    %v330 = vunpack.c.h.b16 %v117
    %v331 = vunpack.c.l.b16 %v118
    %v332 = vunpack.c.h.b16 %v118
    %v333 = vunpack.c.l.b16 %v119
    %v334 = vunpack.c.h.b16 %v119
    %v335 = vunpack.c.l.b16 %v120
    %v336 = vunpack.c.h.b16 %v120
    %v337 = vunpack.c.l.b16 %v121
    %v338 = vunpack.c.h.b16 %v121
    %v339 = vunpack.c.l.b16 %v122
    %v340 = vunpack.c.h.b16 %v122
    %v341 = vunpack.c.l.b16 %v123
    %v342 = vunpack.c.h.b16 %v123
    %v343 = vunpack.c.l.b16 %v124
    %v344 = vunpack.c.h.b16 %v124
    %v345 = vunpack.c.l.b16 %v125
    %v346 = vunpack.c.h.b16 %v125
    %v347 = vunpack.c.l.b16 %v126
    %v348 = vunpack.c.h.b16 %v126
    %v349 = vunpack.c.l.b16 %v127
    %v350 = vunpack.c.h.b16 %v127
    %v351 = vunpack.c.l.b16 %v128
    %v352 = vunpack.c.h.b16 %v128
    %v353 = vunpack.c.l.b16 %v129
    %v354 = vunpack.c.h.b16 %v129
    %v355 = vunpack.c.l.b16 %v130
    %v356 = vunpack.c.h.b16 %v130
    %v357 = vunpack.c.l.b16 %v131
    %v358 = vunpack.c.h.b16 %v131
    %v359 = vunpack.c.l.b16 %v132
    %v360 = vunpack.c.h.b16 %v132
    %v361 = vunpack.c.l.b16 %v133
    %v362 = vunpack.c.h.b16 %v133
    %v363 = vunpack.c.l.b16 %v134
    %v364 = vunpack.c.h.b16 %v134
    %v365 = vunpack.c.l.b16 %v135
    %v366 = vunpack.c.h.b16 %v135
    %v367 = vunpack.c.l.b16 %v136
    %v368 = vunpack.c.h.b16 %v136
    %v369 = vunpack.c.l.b16 %v137
    %v370 = vunpack.c.h.b16 %v137
    %v371 = vunpack.c.l.b16 %v138
    %v372 = vunpack.c.h.b16 %v138
    %v373 = vunpack.c.l.b16 %v139
    %v374 = vunpack.c.h.b16 %v139
    %v375 = vunpack.c.l.b16 %v140
    %v376 = vunpack.c.h.b16 %v140
    %v377 = vunpack.c.l.b16 %v141
    %v378 = vunpack.c.h.b16 %v141
    %v379 = vunpack.c.l.b16 %v142
    %v380 = vunpack.c.h.b16 %v142
    %v381 = vunpack.c.l.b16 %v143
    %v382 = vunpack.c.h.b16 %v143
    %v383 = vunpack.c.l.b16 %v144
    %v384 = vunpack.c.h.b16 %v144
    %v385 = vunpack.c.l.b16 %v145
    %v386 = vunpack.c.h.b16 %v145
    %v387 = vunpack.c.l.b16 %v146
    %v388 = vunpack.c.h.b16 %v146
    %v389 = vunpack.c.l.b16 %v147
    %v390 = vunpack.c.h.b16 %v147
    %v391 = vunpack.c.l.b16 %v148
    %v392 = vunpack.c.h.b16 %v148
    %v393 = vunpack.c.l.b16 %v149
    %v394 = vunpack.c.h.b16 %v149
    %v395 = vunpack.c.l.b16 %v150
    %v396 = vunpack.c.h.b16 %v150
    %v397 = vunpack.c.l.b16 %v151
    %v398 = vunpack.c.h.b16 %v151
    %v399 = vunpack.c.l.b16 %v152
    %v400 = vunpack.c.h.b16 %v152
    %v401 = vunpack.c.l.b16 %v153
    %v402 = vunpack.c.h.b16 %v153
    %v403 = vunpack.c.l.b16 %v154
    %v404 = vunpack.c.h.b16 %v154
    %v405 = vunpack.c.l.b16 %v155
    %v406 = vunpack.c.h.b16 %v155
    %v407 = vunpack.c.l.b16 %v156
    %v408 = vunpack.c.h.b16 %v156
    %v409 = vunpack.c.l.b16 %v157
    %v410 = vunpack.c.h.b16 %v157
    %v411 = vunpack.c.l.b16 %v158
    %v412 = vunpack.c.h.b16 %v158
    %v413 = vunpack.c.l.b16 %v159
    %v414 = vunpack.c.h.b16 %v159
    %v415 = vunpack.c.l.b16 %v160
    %v416 = vunpack.c.h.b16 %v160
    %v417 = vunpack.c.l.b16 %v161
    %v418 = vunpack.c.h.b16 %v161
    %v419 = vunpack.c.l.b16 %v162
    %v420 = vunpack.c.h.b16 %v162
    %v421 = vunpack.c.l.b16 %v163
    %v422 = vunpack.c.h.b16 %v163
    %v423 = vunpack.c.l.b16 %v164
    %v424 = vunpack.c.h.b16 %v164
    %v425 = vunpack.c.l.b16 %v165
    %v426 = vunpack.c.h.b16 %v165
    %v427 = vunpack.c.l.b16 %v166
    %v428 = vunpack.c.h.b16 %v166
    %v429 = vunpack.c.l.b16 %v167
    %v430 = vunpack.c.h.b16 %v167
    %v431 = vunpack.c.l.b16 %v168
    %v432 = vunpack.c.h.b16 %v168
    %v433 = vunpack.c.l.b16 %v169
    %v434 = vunpack.c.h.b16 %v169
    %v435 = vunpack.c.l.b16 %v170
    %v436 = vunpack.c.h.b16 %v170
    %v437 = vunpack.c.l.b16 %v171
    %v438 = vunpack.c.h.b16 %v171
    %v439 = vunpack.c.l.b16 %v172
    %v440 = vunpack.c.h.b16 %v172
    %v441 = vunpack.c.l.b16 %v173
    %v442 = vunpack.c.h.b16 %v173
    %v443 = vunpack.c.l.b16 %v174
    %v444 = vunpack.c.h.b16 %v174
    %v445 = vunpack.c.l.b16 %v175
    %v446 = vunpack.c.h.b16 %v175
    %v447 = vunpack.c.l.b16 %v176
    %v448 = vunpack.c.h.b16 %v176
    %v449 = vunpack.c.l.b16 %v177
    %v450 = vunpack.c.h.b16 %v177
    %v451 = vunpack.c.l.b16 %v178
    %v452 = vunpack.c.h.b16 %v178
    %v453 = vunpack.c.l.b16 %v179
    %v454 = vunpack.c.h.b16 %v179
    %v455 = vunpack.c.l.b16 %v180
    %v456 = vunpack.c.h.b16 %v180
    %v457 = vunpack.c.l.b16 %v181
    %v458 = vunpack.c.h.b16 %v181
    %v459 = vunpack.c.l.b16 %v182
    %v460 = vunpack.c.h.b16 %v182
    %v461 = vunpack.c.l.b16 %v183
    %v462 = vunpack.c.h.b16 %v183
    %v463 = vunpack.c.l.b16 %v184
    %v464 = vunpack.c.h.b16 %v184
    %v465 = vunpack.c.l.b16 %v185
    %v466 = vunpack.c.h.b16 %v185
    %v467 = vunpack.c.l.b16 %v186
    %v468 = vunpack.c.h.b16 %v186
    %v469 = vunpack.c.l.b16 %v187
    %v470 = vunpack.c.h.b16 %v187
    %v471 = vunpack.c.l.b16 %v188
    %v472 = vunpack.c.h.b16 %v188
    %v473 = vunpack.c.l.b16 %v189
    %v474 = vunpack.c.h.b16 %v189
    %v475 = vunpack.c.l.b16 %v190
    %v476 = vunpack.c.h.b16 %v190
    %v477 = vunpack.c.l.b16 %v191
    %v478 = vunpack.c.h.b16 %v191
    %v479 = vunpack.c.l.b16 %v192
    %v480 = vunpack.c.h.b16 %v192
    %v481 = vunpack.c.l.b16 %v193
    %v482 = vunpack.c.h.b16 %v193
    %v483 = vunpack.c.l.b16 %v194
    %v484 = vunpack.c.h.b16 %v194
    %v485 = vunpack.c.l.b16 %v195
    %v486 = vunpack.c.h.b16 %v195
    %v487 = vunpack.c.l.b16 %v196
    %v488 = vunpack.c.h.b16 %v196
    %v489 = vunpack.c.l.b16 %v197
    %v490 = vunpack.c.h.b16 %v197
    %v491 = vunpack.c.l.b16 %v198
    %v492 = vunpack.c.h.b16 %v198
    %v493 = vunpack.c.l.b16 %v199
    %v494 = vunpack.c.h.b16 %v199
    %v495 = vunpack.c.l.b16 %v200
    %v496 = vunpack.c.h.b16 %v200
    %v497 = vunpack.c.l.b16 %v201
    %v498 = vunpack.c.h.b16 %v201
    %v499 = vunpack.c.l.b16 %v202
    %v500 = vunpack.c.h.b16 %v202
    %v501 = vunpack.c.l.b16 %v203
    %v502 = vunpack.c.h.b16 %v203
    %v503 = vunpack.c.l.b16 %v204
    %v504 = vunpack.c.h.b16 %v204
    %v505 = vpack.c.b16 %v315, %v313
    %v506 = vpack.c.b16 %v316, %v314
    %v507 = vpack.c.b16 %v319, %v317
    %v508 = vpack.c.b16 %v320, %v318
    %v509 = vpack.c.b16 %v323, %v321
    %v510 = vpack.c.b16 %v324, %v322
    %v511 = vpack.c.b16 %v327, %v325
    %v512 = vpack.c.b16 %v328, %v326
    %v513 = vpack.c.b16 %v331, %v329
    %v514 = vpack.c.b16 %v332, %v330
    %v515 = vpack.c.b16 %v335, %v333
    %v516 = vpack.c.b16 %v336, %v334
    %v517 = vpack.c.b16 %v339, %v337
    %v518 = vpack.c.b16 %v340, %v338
    %v519 = vpack.c.b16 %v343, %v341
    %v520 = vpack.c.b16 %v344, %v342
    %v521 = vpack.c.b16 %v347, %v345
    %v522 = vpack.c.b16 %v348, %v346
    %v523 = vpack.c.b16 %v351, %v349
    %v524 = vpack.c.b16 %v352, %v350
    %v525 = vpack.c.b16 %v355, %v353
    %v526 = vpack.c.b16 %v356, %v354
    %v527 = vpack.c.b16 %v359, %v357
    %v528 = vpack.c.b16 %v360, %v358
    %v529 = vpack.c.b16 %v363, %v361
    %v530 = vpack.c.b16 %v364, %v362
    %v531 = vpack.c.b16 %v367, %v365
    %v532 = vpack.c.b16 %v368, %v366
    %v533 = vpack.c.b16 %v371, %v369
    %v534 = vpack.c.b16 %v372, %v370
    %v535 = vpack.c.b16 %v375, %v373
    %v536 = vpack.c.b16 %v376, %v374
    %v537 = vpack.c.b16 %v379, %v377
    %v538 = vpack.c.b16 %v380, %v378
    %v539 = vpack.c.b16 %v383, %v381
    %v540 = vpack.c.b16 %v384, %v382
    %v541 = vpack.c.b16 %v387, %v385
    %v542 = vpack.c.b16 %v388, %v386
    %v543 = vpack.c.b16 %v391, %v389
    %v544 = vpack.c.b16 %v392, %v390
    %v545 = vpack.c.b16 %v395, %v393
    %v546 = vpack.c.b16 %v396, %v394
    %v547 = vpack.c.b16 %v399, %v397
    %v548 = vpack.c.b16 %v400, %v398
    %v549 = vpack.c.b16 %v403, %v401
    %v550 = vpack.c.b16 %v404, %v402
    %v551 = vpack.c.b16 %v407, %v405
    %v552 = vpack.c.b16 %v408, %v406
    %v553 = vpack.c.b16 %v411, %v409
    %v554 = vpack.c.b16 %v412, %v410
    %v555 = vpack.c.b16 %v415, %v413
    %v556 = vpack.c.b16 %v416, %v414
    %v557 = vpack.c.b16 %v419, %v417
    %v558 = vpack.c.b16 %v420, %v418
    %v559 = vpack.c.b16 %v423, %v421
    %v560 = vpack.c.b16 %v424, %v422
    %v561 = vpack.c.b16 %v427, %v425
    %v562 = vpack.c.b16 %v428, %v426
    %v563 = vpack.c.b16 %v431, %v429
    %v564 = vpack.c.b16 %v432, %v430
    %v565 = vpack.c.b16 %v435, %v433
    %v566 = vpack.c.b16 %v436, %v434
    %v567 = vpack.c.b16 %v439, %v437
    %v568 = vpack.c.b16 %v440, %v438
    %v569 = vpack.c.b16 %v443, %v441
    %v570 = vpack.c.b16 %v444, %v442
    %v571 = vpack.c.b16 %v447, %v445
    %v572 = vpack.c.b16 %v448, %v446
    %v573 = vpack.c.b16 %v451, %v449
    %v574 = vpack.c.b16 %v452, %v450
    %v575 = vpack.c.b16 %v455, %v453
    %v576 = vpack.c.b16 %v456, %v454
    %v577 = vpack.c.b16 %v459, %v457
    %v578 = vpack.c.b16 %v460, %v458
    %v579 = vpack.c.b16 %v463, %v461
    %v580 = vpack.c.b16 %v464, %v462
    %v581 = vpack.c.b16 %v467, %v465
    %v582 = vpack.c.b16 %v468, %v466
    %v583 = vpack.c.b16 %v471, %v469
    %v584 = vpack.c.b16 %v472, %v470
    %v585 = vpack.c.b16 %v475, %v473
    %v586 = vpack.c.b16 %v476, %v474
    %v587 = vpack.c.b16 %v479, %v477
    %v588 = vpack.c.b16 %v480, %v478
    %v589 = vpack.c.b16 %v483, %v481
    %v590 = vpack.c.b16 %v484, %v482
    %v591 = vpack.c.b16 %v487, %v485
    %v592 = vpack.c.b16 %v488, %v486
    %v593 = vpack.c.b16 %v491, %v489
    %v594 = vpack.c.b16 %v492, %v490
    %v595 = vpack.c.b16 %v495, %v493
    %v596 = vpack.c.b16 %v496, %v494
    %v597 = vpack.c.b16 %v499, %v497
    %v598 = vpack.c.b16 %v500, %v498
    %v599 = vpack.c.b16 %v503, %v501
    %v600 = vpack.c.b16 %v504, %v502
    %697 = vmatprep.subr.bf16.mxu0 %v506
    %698 = vmatpush1.bf16.msra.mxu0 %v505
    %699 = vmatprep.subr.bf16.mxu0 %v508
    %700 = vmatpush1.bf16.msra.mxu0 %v507
    %701 = vmatprep.subr.bf16.mxu0 %v510
    %702 = vmatpush1.bf16.msra.mxu0 %v509
    %703 = vmatprep.subr.bf16.mxu0 %v512
    %704 = vmatpush1.bf16.msra.mxu0 %v511
    %705 = vmatprep.subr.bf16.mxu0 %v514
    %706 = vmatpush1.bf16.msra.mxu0 %v513
    %707 = vmatprep.subr.bf16.mxu0 %v516
    %708 = vmatpush1.bf16.msra.mxu0 %v515
    %709 = vmatprep.subr.bf16.mxu0 %v518
    %710 = vmatpush1.bf16.msra.mxu0 %v517
    %711 = vmatprep.subr.bf16.mxu0 %v520
    %712 = vmatpush1.bf16.msra.mxu0 %v519
    %713 = vmatprep.subr.bf16.mxu0 %v522
    %714 = vmatpush1.bf16.msra.mxu0 %v521
    %715 = vmatprep.subr.bf16.mxu0 %v524
    %716 = vmatpush1.bf16.msra.mxu0 %v523
    %717 = vmatprep.subr.bf16.mxu0 %v526
    %718 = vmatpush1.bf16.msra.mxu0 %v525
    %719 = vmatprep.subr.bf16.mxu0 %v528
    %720 = vmatpush1.bf16.msra.mxu0 %v527
    %721 = vmatprep.subr.bf16.mxu0 %v530
    %722 = vmatpush1.bf16.msra.mxu0 %v529
    %723 = vmatprep.subr.bf16.mxu0 %v532
    %724 = vmatpush1.bf16.msra.mxu0 %v531
    %725 = vmatprep.subr.bf16.mxu0 %v534
    %726 = vmatpush1.bf16.msra.mxu0 %v533
    %727 = vmatprep.subr.bf16.mxu0 %v536
    %728 = vmatpush1.bf16.msra.mxu0 %v535
    %729 = vmatprep.mubr.bf16.mxu0 %v104
    %730 = vmatmul.mubr.bf16.gmra.mrb[0].mxu0 %v103
    %v731 = vpop.f32.mrb[0].mxu0
    %v732 = vadd.f32 %v210, %v731
    %v733 = vpop.f32.mrb[0].mxu0
    %v734 = vadd.f32 %v214, %v733
    %v735 = vpop.f32.mrb[0].mxu0
    %v736 = vpop.f32.mrb[0].mxu0
    %737 = vdwg.mxu0
    %738 = vmatprep.subr.bf16.mxu0 %v538
    %739 = vmatpush1.bf16.msra.mxu0 %v537
    %740 = vmatprep.subr.bf16.mxu0 %v540
    %741 = vmatpush1.bf16.msra.mxu0 %v539
    %742 = vmatprep.subr.bf16.mxu0 %v542
    %743 = vmatpush1.bf16.msra.mxu0 %v541
    %744 = vmatprep.subr.bf16.mxu0 %v544
    %745 = vmatpush1.bf16.msra.mxu0 %v543
    %746 = vmatprep.subr.bf16.mxu0 %v546
    %747 = vmatpush1.bf16.msra.mxu0 %v545
    %748 = vmatprep.subr.bf16.mxu0 %v548
    %749 = vmatpush1.bf16.msra.mxu0 %v547
    %750 = vmatprep.subr.bf16.mxu0 %v550
    %751 = vmatpush1.bf16.msra.mxu0 %v549
    %752 = vmatprep.subr.bf16.mxu0 %v552
    %753 = vmatpush1.bf16.msra.mxu0 %v551
    %754 = vmatprep.subr.bf16.mxu0 %v554
    %755 = vmatpush1.bf16.msra.mxu0 %v553
    %756 = vmatprep.subr.bf16.mxu0 %v556
    %757 = vmatpush1.bf16.msra.mxu0 %v555
    %758 = vmatprep.subr.bf16.mxu0 %v558
    %759 = vmatpush1.bf16.msra.mxu0 %v557
    %760 = vmatprep.subr.bf16.mxu0 %v560
    %761 = vmatpush1.bf16.msra.mxu0 %v559
    %762 = vmatprep.subr.bf16.mxu0 %v562
    %763 = vmatpush1.bf16.msra.mxu0 %v561
    %764 = vmatprep.subr.bf16.mxu0 %v564
    %765 = vmatpush1.bf16.msra.mxu0 %v563
    %766 = vmatprep.subr.bf16.mxu0 %v566
    %767 = vmatpush1.bf16.msra.mxu0 %v565
    %768 = vmatprep.subr.bf16.mxu0 %v568
    %769 = vmatpush1.bf16.msra.mxu0 %v567
    %770 = vmatprep.mubr.bf16.mxu0 %v106
    %771 = vmatmul.mubr.bf16.gmra.mrb[0].mxu0 %v105
    %v772 = vpop.f32.mrb[0].mxu0
    %v773 = vadd.f32 %v732, %v772
    %v774 = vpop.f32.mrb[0].mxu0
    %v775 = vadd.f32 %v734, %v774
    %v776 = vpop.f32.mrb[0].mxu0
    %v777 = vpop.f32.mrb[0].mxu0
    %778 = vdwg.mxu0
    %779 = vmatprep.subr.bf16.mxu0 %v570
    %780 = vmatpush1.bf16.msra.mxu0 %v569
    %781 = vmatprep.subr.bf16.mxu0 %v572
    %782 = vmatpush1.bf16.msra.mxu0 %v571
    %783 = vmatprep.subr.bf16.mxu0 %v574
    %784 = vmatpush1.bf16.msra.mxu0 %v573
    %785 = vmatprep.subr.bf16.mxu0 %v576
    %786 = vmatpush1.bf16.msra.mxu0 %v575
    %787 = vmatprep.subr.bf16.mxu0 %v578
    %788 = vmatpush1.bf16.msra.mxu0 %v577
    %789 = vmatprep.subr.bf16.mxu0 %v580
    %790 = vmatpush1.bf16.msra.mxu0 %v579
    %791 = vmatprep.subr.bf16.mxu0 %v582
    %792 = vmatpush1.bf16.msra.mxu0 %v581
    %793 = vmatprep.subr.bf16.mxu0 %v584
    %794 = vmatpush1.bf16.msra.mxu0 %v583
    %795 = vmatprep.subr.bf16.mxu0 %v586
    %796 = vmatpush1.bf16.msra.mxu0 %v585
    %797 = vmatprep.subr.bf16.mxu0 %v588
    %798 = vmatpush1.bf16.msra.mxu0 %v587
    %799 = vmatprep.subr.bf16.mxu0 %v590
    %800 = vmatpush1.bf16.msra.mxu0 %v589
    %801 = vmatprep.subr.bf16.mxu0 %v592
    %802 = vmatpush1.bf16.msra.mxu0 %v591
    %803 = vmatprep.subr.bf16.mxu0 %v594
    %804 = vmatpush1.bf16.msra.mxu0 %v593
    %805 = vmatprep.subr.bf16.mxu0 %v596
    %806 = vmatpush1.bf16.msra.mxu0 %v595
    %807 = vmatprep.subr.bf16.mxu0 %v598
    %808 = vmatpush1.bf16.msra.mxu0 %v597
    %809 = vmatprep.subr.bf16.mxu0 %v600
    %810 = vmatpush1.bf16.msra.mxu0 %v599
    %811 = vmatprep.mubr.bf16.mxu0 %v108
    %812 = vmatmul.mubr.bf16.gmra.mrb[0].mxu0 %v107
    %v813 = vpop.f32.mrb[0].mxu0
    %v814 = vadd.f32 %v773, %v813
    %v815 = vpop.f32.mrb[0].mxu0
    %v816 = vadd.f32 %v775, %v815
    %v817 = vpop.f32.mrb[0].mxu0
    %v818 = vpop.f32.mrb[0].mxu0
    %819 = vdwg.mxu0
    %v820 = vmax.f32 %v814, 0.0
    %v821 = vmax.f32 %v816, 0.0
    %v822 = vpack.c.bf16 %v820, %v820
    %v823 = vpack.c.bf16 %v821, %v821
    %v824 = vld [vmem:[#allocation5] sm:$0xff]
    %v825 = vld [vmem:[#allocation5 + $0x8] sm:$0xff]
    %v826 = vld [vmem:[#allocation5 + $0x10] sm:$0xff]
    %v827 = vld [vmem:[#allocation5 + $0x18] sm:$0xff]
    %v828 = vld [vmem:[#allocation5 + $0x20] sm:$0xff]
    %v829 = vld [vmem:[#allocation5 + $0x28] sm:$0xff]
    %v830 = vld [vmem:[#allocation5 + $0x30] sm:$0xff]
    %v831 = vld [vmem:[#allocation5 + $0x38] sm:$0xff]
    %v832 = vld [vmem:[#allocation5 + $0x40] sm:$0xff]
    %v833 = vld [vmem:[#allocation5 + $0x48] sm:$0xff]
    %v834 = vld [vmem:[#allocation5 + $0x50] sm:$0xff]
    %v835 = vld [vmem:[#allocation5 + $0x58] sm:$0xff]
    %v836 = vld [vmem:[#allocation5 + $0x60] sm:$0xff]
    %v837 = vld [vmem:[#allocation5 + $0x68] sm:$0xff]
    %v838 = vld [vmem:[#allocation5 + $0x70] sm:$0xff]
    %v839 = vld [vmem:[#allocation5 + $0x78] sm:$0xff]
    %v840 = vld [vmem:[#allocation5 + $0x80] sm:$0xff]
    %v841 = vld [vmem:[#allocation5 + $0x88] sm:$0xff]
    %v842 = vld [vmem:[#allocation5 + $0x90] sm:$0xff]
    %v843 = vld [vmem:[#allocation5 + $0x98] sm:$0xff]
    %v844 = vld [vmem:[#allocation5 + $0xa0] sm:$0xff]
    %v845 = vld [vmem:[#allocation5 + $0xa8] sm:$0xff]
    %v846 = vld [vmem:[#allocation5 + $0xb0] sm:$0xff]
    %v847 = vld [vmem:[#allocation5 + $0xb8] sm:$0xff]
    %v848 = vld [vmem:[#allocation5 + $0xc0] sm:$0xff]
    %v849 = vld [vmem:[#allocation5 + $0xc8] sm:$0xff]
    %v850 = vld [vmem:[#allocation5 + $0xd0] sm:$0xff]
    %v851 = vld [vmem:[#allocation5 + $0xd8] sm:$0xff]
    %v852 = vld [vmem:[#allocation5 + $0xe0] sm:$0xff]
    %v853 = vld [vmem:[#allocation5 + $0xe8] sm:$0xff]
    %v854 = vld [vmem:[#allocation5 + $0xf0] sm:$0xff]
    %v855 = vld [vmem:[#allocation5 + $0xf8] sm:$0xff]
    %v856 = vld [vmem:[#allocation5 + $0x100] sm:$0xff]
    %v857 = vld [vmem:[#allocation5 + $0x108] sm:$0xff]
    %v858 = vld [vmem:[#allocation5 + $0x110] sm:$0xff]
    %v859 = vld [vmem:[#allocation5 + $0x118] sm:$0xff]
    %v860 = vld [vmem:[#allocation5 + $0x120] sm:$0xff]
    %v861 = vld [vmem:[#allocation5 + $0x128] sm:$0xff]
    %v862 = vld [vmem:[#allocation5 + $0x130] sm:$0xff]
    %v863 = vld [vmem:[#allocation5 + $0x138] sm:$0xff]
    %v864 = vld [vmem:[#allocation5 + $0x140] sm:$0xff]
    %v865 = vld [vmem:[#allocation5 + $0x148] sm:$0xff]
    %v866 = vld [vmem:[#allocation5 + $0x150] sm:$0xff]
    %v867 = vld [vmem:[#allocation5 + $0x158] sm:$0xff]
    %v868 = vld [vmem:[#allocation5 + $0x160] sm:$0xff]
    %v869 = vld [vmem:[#allocation5 + $0x168] sm:$0xff]
    %v870 = vld [vmem:[#allocation5 + $0x170] sm:$0xff]
    %v871 = vld [vmem:[#allocation5 + $0x178] sm:$0xff]
    %v872 = vld [vmem:[#allocation5 + $0x180] sm:$0xff]
    %v873 = vld [vmem:[#allocation5 + $0x188] sm:$0xff]
    %v874 = vld [vmem:[#allocation5 + $0x190] sm:$0xff]
    %v875 = vld [vmem:[#allocation5 + $0x198] sm:$0xff]
    %v876 = vld [vmem:[#allocation5 + $0x1a0] sm:$0xff]
    %v877 = vld [vmem:[#allocation5 + $0x1a8] sm:$0xff]
    %v878 = vld [vmem:[#allocation5 + $0x1b0] sm:$0xff]
    %v879 = vld [vmem:[#allocation5 + $0x1b8] sm:$0xff]
    %v880 = vld [vmem:[#allocation5 + $0x1c0] sm:$0xff]
    %v881 = vld [vmem:[#allocation5 + $0x1c8] sm:$0xff]
    %v882 = vld [vmem:[#allocation5 + $0x1d0] sm:$0xff]
    %v883 = vld [vmem:[#allocation5 + $0x1d8] sm:$0xff]
    %v884 = vld [vmem:[#allocation5 + $0x1e0] sm:$0xff]
    %v885 = vld [vmem:[#allocation5 + $0x1e8] sm:$0xff]
    %v886 = vld [vmem:[#allocation5 + $0x1f0] sm:$0xff]
    %v887 = vld [vmem:[#allocation5 + $0x1f8] sm:$0xff]
    %v888 = vld [vmem:[#allocation5 + $0x200] sm:$0xff]
    %v889 = vld [vmem:[#allocation5 + $0x208] sm:$0xff]
    %v890 = vld [vmem:[#allocation5 + $0x210] sm:$0xff]
    %v891 = vld [vmem:[#allocation5 + $0x218] sm:$0xff]
    %v892 = vld [vmem:[#allocation5 + $0x220] sm:$0xff]
    %v893 = vld [vmem:[#allocation5 + $0x228] sm:$0xff]
    %v894 = vld [vmem:[#allocation5 + $0x230] sm:$0xff]
    %v895 = vld [vmem:[#allocation5 + $0x238] sm:$0xff]
    %v896 = vld [vmem:[#allocation5 + $0x240] sm:$0xff]
    %v897 = vld [vmem:[#allocation5 + $0x248] sm:$0xff]
    %v898 = vld [vmem:[#allocation5 + $0x250] sm:$0xff]
    %v899 = vld [vmem:[#allocation5 + $0x258] sm:$0xff]
    %v900 = vld [vmem:[#allocation5 + $0x260] sm:$0xff]
    %v901 = vld [vmem:[#allocation5 + $0x268] sm:$0xff]
    %v902 = vld [vmem:[#allocation5 + $0x270] sm:$0xff]
    %v903 = vld [vmem:[#allocation5 + $0x278] sm:$0xff]
    %v904 = vld [vmem:[#allocation5 + $0x280] sm:$0xff]
    %v905 = vld [vmem:[#allocation5 + $0x288] sm:$0xff]
    %v906 = vld [vmem:[#allocation5 + $0x290] sm:$0xff]
    %v907 = vld [vmem:[#allocation5 + $0x298] sm:$0xff]
    %v908 = vld [vmem:[#allocation5 + $0x2a0] sm:$0xff]
    %v909 = vld [vmem:[#allocation5 + $0x2a8] sm:$0xff]
    %v910 = vld [vmem:[#allocation5 + $0x2b0] sm:$0xff]
    %v911 = vld [vmem:[#allocation5 + $0x2b8] sm:$0xff]
    %v912 = vld [vmem:[#allocation5 + $0x2c0] sm:$0xff]
    %v913 = vld [vmem:[#allocation5 + $0x2c8] sm:$0xff]
    %v914 = vld [vmem:[#allocation5 + $0x2d0] sm:$0xff]
    %v915 = vld [vmem:[#allocation5 + $0x2d8] sm:$0xff]
    %v916 = vld [vmem:[#allocation5 + $0x2e0] sm:$0xff]
    %v917 = vld [vmem:[#allocation5 + $0x2e8] sm:$0xff]
    %v918 = vld [vmem:[#allocation5 + $0x2f0] sm:$0xff]
    %v919 = vld [vmem:[#allocation5 + $0x2f8] sm:$0xff]
    %v920 = vld [vmem:[%s5] sm:$0x3f]
    %v922 = vlaneseq
    %v923 = vshrl.u32 %v922, 7
    %v924 = vsub.s32 0, %v923
    %v925 = vrot.slane %v920, %v924
    %v926 = vlaneseq
    %v927 = vshrl.u32 %v926, 7
    %v928 = vsub.s32 1, %v927
    %v929 = vrot.slane %v920, %v928
    %v930 = vlaneseq
    %v931 = vshrl.u32 %v930, 7
    %v932 = vsub.s32 2, %v931
    %v933 = vrot.slane %v920, %v932
    %v934 = vlaneseq
    %v935 = vshrl.u32 %v934, 7
    %v936 = vsub.s32 3, %v935
    %v937 = vrot.slane %v920, %v936
    %v938 = vlaneseq
    %v939 = vshrl.u32 %v938, 7
    %v940 = vsub.s32 4, %v939
    %v941 = vrot.slane %v920, %v940
    %v942 = vlaneseq
    %v943 = vshrl.u32 %v942, 7
    %v944 = vsub.s32 5, %v943
    %v945 = vrot.slane %v920, %v944
    %v1048 = vunpack.c.l.b16 %v824
    %v1049 = vunpack.c.h.b16 %v824
    %v1050 = vunpack.c.l.b16 %v825
    %v1051 = vunpack.c.h.b16 %v825
    %v1052 = vunpack.c.l.b16 %v826
    %v1053 = vunpack.c.h.b16 %v826
    %v1054 = vunpack.c.l.b16 %v827
    %v1055 = vunpack.c.h.b16 %v827
    %v1056 = vunpack.c.l.b16 %v828
    %v1057 = vunpack.c.h.b16 %v828
    %v1058 = vunpack.c.l.b16 %v829
    %v1059 = vunpack.c.h.b16 %v829
    %v1060 = vunpack.c.l.b16 %v830
    %v1061 = vunpack.c.h.b16 %v830
    %v1062 = vunpack.c.l.b16 %v831
    %v1063 = vunpack.c.h.b16 %v831
    %v1064 = vunpack.c.l.b16 %v832
    %v1065 = vunpack.c.h.b16 %v832
    %v1066 = vunpack.c.l.b16 %v833
    %v1067 = vunpack.c.h.b16 %v833
    %v1068 = vunpack.c.l.b16 %v834
    %v1069 = vunpack.c.h.b16 %v834
    %v1070 = vunpack.c.l.b16 %v835
    %v1071 = vunpack.c.h.b16 %v835
    %v1072 = vunpack.c.l.b16 %v836
    %v1073 = vunpack.c.h.b16 %v836
    %v1074 = vunpack.c.l.b16 %v837
    %v1075 = vunpack.c.h.b16 %v837
    %v1076 = vunpack.c.l.b16 %v838
    %v1077 = vunpack.c.h.b16 %v838
    %v1078 = vunpack.c.l.b16 %v839
    %v1079 = vunpack.c.h.b16 %v839
    %v1080 = vunpack.c.l.b16 %v840
    %v1081 = vunpack.c.h.b16 %v840
    %v1082 = vunpack.c.l.b16 %v841
    %v1083 = vunpack.c.h.b16 %v841
    %v1084 = vunpack.c.l.b16 %v842
    %v1085 = vunpack.c.h.b16 %v842
    %v1086 = vunpack.c.l.b16 %v843
    %v1087 = vunpack.c.h.b16 %v843
    %v1088 = vunpack.c.l.b16 %v844
    %v1089 = vunpack.c.h.b16 %v844
    %v1090 = vunpack.c.l.b16 %v845
    %v1091 = vunpack.c.h.b16 %v845
    %v1092 = vunpack.c.l.b16 %v846
    %v1093 = vunpack.c.h.b16 %v846
    %v1094 = vunpack.c.l.b16 %v847
    %v1095 = vunpack.c.h.b16 %v847
    %v1096 = vunpack.c.l.b16 %v848
    %v1097 = vunpack.c.h.b16 %v848
    %v1098 = vunpack.c.l.b16 %v849
    %v1099 = vunpack.c.h.b16 %v849
    %v1100 = vunpack.c.l.b16 %v850
    %v1101 = vunpack.c.h.b16 %v850
    %v1102 = vunpack.c.l.b16 %v851
    %v1103 = vunpack.c.h.b16 %v851
    %v1104 = vunpack.c.l.b16 %v852
    %v1105 = vunpack.c.h.b16 %v852
    %v1106 = vunpack.c.l.b16 %v853
    %v1107 = vunpack.c.h.b16 %v853
    %v1108 = vunpack.c.l.b16 %v854
    %v1109 = vunpack.c.h.b16 %v854
    %v1110 = vunpack.c.l.b16 %v855
    %v1111 = vunpack.c.h.b16 %v855
    %v1112 = vunpack.c.l.b16 %v856
    %v1113 = vunpack.c.h.b16 %v856
    %v1114 = vunpack.c.l.b16 %v857
    %v1115 = vunpack.c.h.b16 %v857
    %v1116 = vunpack.c.l.b16 %v858
    %v1117 = vunpack.c.h.b16 %v858
    %v1118 = vunpack.c.l.b16 %v859
    %v1119 = vunpack.c.h.b16 %v859
    %v1120 = vunpack.c.l.b16 %v860
    %v1121 = vunpack.c.h.b16 %v860
    %v1122 = vunpack.c.l.b16 %v861
    %v1123 = vunpack.c.h.b16 %v861
    %v1124 = vunpack.c.l.b16 %v862
    %v1125 = vunpack.c.h.b16 %v862
    %v1126 = vunpack.c.l.b16 %v863
    %v1127 = vunpack.c.h.b16 %v863
    %v1128 = vunpack.c.l.b16 %v864
    %v1129 = vunpack.c.h.b16 %v864
    %v1130 = vunpack.c.l.b16 %v865
    %v1131 = vunpack.c.h.b16 %v865
    %v1132 = vunpack.c.l.b16 %v866
    %v1133 = vunpack.c.h.b16 %v866
    %v1134 = vunpack.c.l.b16 %v867
    %v1135 = vunpack.c.h.b16 %v867
    %v1136 = vunpack.c.l.b16 %v868
    %v1137 = vunpack.c.h.b16 %v868
    %v1138 = vunpack.c.l.b16 %v869
    %v1139 = vunpack.c.h.b16 %v869
    %v1140 = vunpack.c.l.b16 %v870
    %v1141 = vunpack.c.h.b16 %v870
    %v1142 = vunpack.c.l.b16 %v871
    %v1143 = vunpack.c.h.b16 %v871
    %v1144 = vunpack.c.l.b16 %v872
    %v1145 = vunpack.c.h.b16 %v872
    %v1146 = vunpack.c.l.b16 %v873
    %v1147 = vunpack.c.h.b16 %v873
    %v1148 = vunpack.c.l.b16 %v874
    %v1149 = vunpack.c.h.b16 %v874
    %v1150 = vunpack.c.l.b16 %v875
    %v1151 = vunpack.c.h.b16 %v875
    %v1152 = vunpack.c.l.b16 %v876
    %v1153 = vunpack.c.h.b16 %v876
    %v1154 = vunpack.c.l.b16 %v877
    %v1155 = vunpack.c.h.b16 %v877
    %v1156 = vunpack.c.l.b16 %v878
    %v1157 = vunpack.c.h.b16 %v878
    %v1158 = vunpack.c.l.b16 %v879
    %v1159 = vunpack.c.h.b16 %v879
    %v1160 = vunpack.c.l.b16 %v880
    %v1161 = vunpack.c.h.b16 %v880
    %v1162 = vunpack.c.l.b16 %v881
    %v1163 = vunpack.c.h.b16 %v881
    %v1164 = vunpack.c.l.b16 %v882
    %v1165 = vunpack.c.h.b16 %v882
    %v1166 = vunpack.c.l.b16 %v883
    %v1167 = vunpack.c.h.b16 %v883
    %v1168 = vunpack.c.l.b16 %v884
    %v1169 = vunpack.c.h.b16 %v884
    %v1170 = vunpack.c.l.b16 %v885
    %v1171 = vunpack.c.h.b16 %v885
    %v1172 = vunpack.c.l.b16 %v886
    %v1173 = vunpack.c.h.b16 %v886
    %v1174 = vunpack.c.l.b16 %v887
    %v1175 = vunpack.c.h.b16 %v887
    %v1176 = vunpack.c.l.b16 %v888
    %v1177 = vunpack.c.h.b16 %v888
    %v1178 = vunpack.c.l.b16 %v889
    %v1179 = vunpack.c.h.b16 %v889
    %v1180 = vunpack.c.l.b16 %v890
    %v1181 = vunpack.c.h.b16 %v890
    %v1182 = vunpack.c.l.b16 %v891
    %v1183 = vunpack.c.h.b16 %v891
    %v1184 = vunpack.c.l.b16 %v892
    %v1185 = vunpack.c.h.b16 %v892
    %v1186 = vunpack.c.l.b16 %v893
    %v1187 = vunpack.c.h.b16 %v893
    %v1188 = vunpack.c.l.b16 %v894
    %v1189 = vunpack.c.h.b16 %v894
    %v1190 = vunpack.c.l.b16 %v895
    %v1191 = vunpack.c.h.b16 %v895
    %v1192 = vunpack.c.l.b16 %v896
    %v1193 = vunpack.c.h.b16 %v896
    %v1194 = vunpack.c.l.b16 %v897
    %v1195 = vunpack.c.h.b16 %v897
    %v1196 = vunpack.c.l.b16 %v898
    %v1197 = vunpack.c.h.b16 %v898
    %v1198 = vunpack.c.l.b16 %v899
    %v1199 = vunpack.c.h.b16 %v899
    %v1200 = vunpack.c.l.b16 %v900
    %v1201 = vunpack.c.h.b16 %v900
    %v1202 = vunpack.c.l.b16 %v901
    %v1203 = vunpack.c.h.b16 %v901
    %v1204 = vunpack.c.l.b16 %v902
    %v1205 = vunpack.c.h.b16 %v902
    %v1206 = vunpack.c.l.b16 %v903
    %v1207 = vunpack.c.h.b16 %v903
    %v1208 = vunpack.c.l.b16 %v904
    %v1209 = vunpack.c.h.b16 %v904
    %v1210 = vunpack.c.l.b16 %v905
    %v1211 = vunpack.c.h.b16 %v905
    %v1212 = vunpack.c.l.b16 %v906
    %v1213 = vunpack.c.h.b16 %v906
    %v1214 = vunpack.c.l.b16 %v907
    %v1215 = vunpack.c.h.b16 %v907
    %v1216 = vunpack.c.l.b16 %v908
    %v1217 = vunpack.c.h.b16 %v908
    %v1218 = vunpack.c.l.b16 %v909
    %v1219 = vunpack.c.h.b16 %v909
    %v1220 = vunpack.c.l.b16 %v910
    %v1221 = vunpack.c.h.b16 %v910
    %v1222 = vunpack.c.l.b16 %v911
    %v1223 = vunpack.c.h.b16 %v911
    %v1224 = vunpack.c.l.b16 %v912
    %v1225 = vunpack.c.h.b16 %v912
    %v1226 = vunpack.c.l.b16 %v913
    %v1227 = vunpack.c.h.b16 %v913
    %v1228 = vunpack.c.l.b16 %v914
    %v1229 = vunpack.c.h.b16 %v914
    %v1230 = vunpack.c.l.b16 %v915
    %v1231 = vunpack.c.h.b16 %v915
    %v1232 = vunpack.c.l.b16 %v916
    %v1233 = vunpack.c.h.b16 %v916
    %v1234 = vunpack.c.l.b16 %v917
    %v1235 = vunpack.c.h.b16 %v917
    %v1236 = vunpack.c.l.b16 %v918
    %v1237 = vunpack.c.h.b16 %v918
    %v1238 = vunpack.c.l.b16 %v919
    %v1239 = vunpack.c.h.b16 %v919
    %v1240 = vpack.c.b16 %v1054, %v1048
    %v1241 = vpack.c.b16 %v1055, %v1049
    %v1242 = vpack.c.b16 %v1056, %v1050
    %v1243 = vpack.c.b16 %v1057, %v1051
    %v1244 = vpack.c.b16 %v1058, %v1052
    %v1245 = vpack.c.b16 %v1059, %v1053
    %v1246 = vpack.c.b16 %v1066, %v1060
    %v1247 = vpack.c.b16 %v1067, %v1061
    %v1248 = vpack.c.b16 %v1068, %v1062
    %v1249 = vpack.c.b16 %v1069, %v1063
    %v1250 = vpack.c.b16 %v1070, %v1064
    %v1251 = vpack.c.b16 %v1071, %v1065
    %v1252 = vpack.c.b16 %v1078, %v1072
    %v1253 = vpack.c.b16 %v1079, %v1073
    %v1254 = vpack.c.b16 %v1080, %v1074
    %v1255 = vpack.c.b16 %v1081, %v1075
    %v1256 = vpack.c.b16 %v1082, %v1076
    %v1257 = vpack.c.b16 %v1083, %v1077
    %v1258 = vpack.c.b16 %v1090, %v1084
    %v1259 = vpack.c.b16 %v1091, %v1085
    %v1260 = vpack.c.b16 %v1092, %v1086
    %v1261 = vpack.c.b16 %v1093, %v1087
    %v1262 = vpack.c.b16 %v1094, %v1088
    %v1263 = vpack.c.b16 %v1095, %v1089
    %v1264 = vpack.c.b16 %v1102, %v1096
    %v1265 = vpack.c.b16 %v1103, %v1097
    %v1266 = vpack.c.b16 %v1104, %v1098
    %v1267 = vpack.c.b16 %v1105, %v1099
    %v1268 = vpack.c.b16 %v1106, %v1100
    %v1269 = vpack.c.b16 %v1107, %v1101
    %v1270 = vpack.c.b16 %v1114, %v1108
    %v1271 = vpack.c.b16 %v1115, %v1109
    %v1272 = vpack.c.b16 %v1116, %v1110
    %v1273 = vpack.c.b16 %v1117, %v1111
    %v1274 = vpack.c.b16 %v1118, %v1112
    %v1275 = vpack.c.b16 %v1119, %v1113
    %v1276 = vpack.c.b16 %v1126, %v1120
    %v1277 = vpack.c.b16 %v1127, %v1121
    %v1278 = vpack.c.b16 %v1128, %v1122
    %v1279 = vpack.c.b16 %v1129, %v1123
    %v1280 = vpack.c.b16 %v1130, %v1124
    %v1281 = vpack.c.b16 %v1131, %v1125
    %v1282 = vpack.c.b16 %v1138, %v1132
    %v1283 = vpack.c.b16 %v1139, %v1133
    %v1284 = vpack.c.b16 %v1140, %v1134
    %v1285 = vpack.c.b16 %v1141, %v1135
    %v1286 = vpack.c.b16 %v1142, %v1136
    %v1287 = vpack.c.b16 %v1143, %v1137
    %v1288 = vpack.c.b16 %v1150, %v1144
    %v1289 = vpack.c.b16 %v1151, %v1145
    %v1290 = vpack.c.b16 %v1152, %v1146
    %v1291 = vpack.c.b16 %v1153, %v1147
    %v1292 = vpack.c.b16 %v1154, %v1148
    %v1293 = vpack.c.b16 %v1155, %v1149
    %v1294 = vpack.c.b16 %v1162, %v1156
    %v1295 = vpack.c.b16 %v1163, %v1157
    %v1296 = vpack.c.b16 %v1164, %v1158
    %v1297 = vpack.c.b16 %v1165, %v1159
    %v1298 = vpack.c.b16 %v1166, %v1160
    %v1299 = vpack.c.b16 %v1167, %v1161
    %v1300 = vpack.c.b16 %v1174, %v1168
    %v1301 = vpack.c.b16 %v1175, %v1169
    %v1302 = vpack.c.b16 %v1176, %v1170
    %v1303 = vpack.c.b16 %v1177, %v1171
    %v1304 = vpack.c.b16 %v1178, %v1172
    %v1305 = vpack.c.b16 %v1179, %v1173
    %v1306 = vpack.c.b16 %v1186, %v1180
    %v1307 = vpack.c.b16 %v1187, %v1181
    %v1308 = vpack.c.b16 %v1188, %v1182
    %v1309 = vpack.c.b16 %v1189, %v1183
    %v1310 = vpack.c.b16 %v1190, %v1184
    %v1311 = vpack.c.b16 %v1191, %v1185
    %v1312 = vpack.c.b16 %v1198, %v1192
    %v1313 = vpack.c.b16 %v1199, %v1193
    %v1314 = vpack.c.b16 %v1200, %v1194
    %v1315 = vpack.c.b16 %v1201, %v1195
    %v1316 = vpack.c.b16 %v1202, %v1196
    %v1317 = vpack.c.b16 %v1203, %v1197
    %v1318 = vpack.c.b16 %v1210, %v1204
    %v1319 = vpack.c.b16 %v1211, %v1205
    %v1320 = vpack.c.b16 %v1212, %v1206
    %v1321 = vpack.c.b16 %v1213, %v1207
    %v1322 = vpack.c.b16 %v1214, %v1208
    %v1323 = vpack.c.b16 %v1215, %v1209
    %v1324 = vpack.c.b16 %v1222, %v1216
    %v1325 = vpack.c.b16 %v1223, %v1217
    %v1326 = vpack.c.b16 %v1224, %v1218
    %v1327 = vpack.c.b16 %v1225, %v1219
    %v1328 = vpack.c.b16 %v1226, %v1220
    %v1329 = vpack.c.b16 %v1227, %v1221
    %v1330 = vpack.c.b16 %v1234, %v1228
    %v1331 = vpack.c.b16 %v1235, %v1229
    %v1332 = vpack.c.b16 %v1236, %v1230
    %v1333 = vpack.c.b16 %v1237, %v1231
    %v1334 = vpack.c.b16 %v1238, %v1232
    %v1335 = vpack.c.b16 %v1239, %v1233
    %1432 = vmatprep.subr.bf16.mxu0 %v1241
    %1433 = vmatpush1.bf16.msra.mxu0 %v1240
    %1434 = vmatprep.subr.bf16.mxu0 %v1247
    %1435 = vmatpush1.bf16.msra.mxu0 %v1246
    %1436 = vmatprep.subr.bf16.mxu0 %v1253
    %1437 = vmatpush1.bf16.msra.mxu0 %v1252
    %1438 = vmatprep.subr.bf16.mxu0 %v1259
    %1439 = vmatpush1.bf16.msra.mxu0 %v1258
    %1440 = vmatprep.subr.bf16.mxu0 %v1265
    %1441 = vmatpush1.bf16.msra.mxu0 %v1264
    %1442 = vmatprep.subr.bf16.mxu0 %v1271
    %1443 = vmatpush1.bf16.msra.mxu0 %v1270
    %1444 = vmatprep.subr.bf16.mxu0 %v1277
    %1445 = vmatpush1.bf16.msra.mxu0 %v1276
    %1446 = vmatprep.subr.bf16.mxu0 %v1283
    %1447 = vmatpush1.bf16.msra.mxu0 %v1282
    %1448 = vmatprep.subr.bf16.mxu0 %v1289
    %1449 = vmatpush1.bf16.msra.mxu0 %v1288
    %1450 = vmatprep.subr.bf16.mxu0 %v1295
    %1451 = vmatpush1.bf16.msra.mxu0 %v1294
    %1452 = vmatprep.subr.bf16.mxu0 %v1301
    %1453 = vmatpush1.bf16.msra.mxu0 %v1300
    %1454 = vmatprep.subr.bf16.mxu0 %v1307
    %1455 = vmatpush1.bf16.msra.mxu0 %v1306
    %1456 = vmatprep.subr.bf16.mxu0 %v1313
    %1457 = vmatpush1.bf16.msra.mxu0 %v1312
    %1458 = vmatprep.subr.bf16.mxu0 %v1319
    %1459 = vmatpush1.bf16.msra.mxu0 %v1318
    %1460 = vmatprep.subr.bf16.mxu0 %v1325
    %1461 = vmatpush1.bf16.msra.mxu0 %v1324
    %1462 = vmatprep.subr.bf16.mxu0 %v1331
    %1463 = vmatpush1.bf16.msra.mxu0 %v1330
    %1464 = vmatprep.mubr.bf16.mxu0 %v823
    %1465 = vmatmul.mubr.bf16.gmra.mrb[0].mxu0 %v822
    %v1466 = vpop.f32.mrb[0].mxu0
    %v1467 = vadd.f32 %v925, %v1466
    %v1468 = vpop.f32.mrb[0].mxu0
    %v1469 = vadd.f32 %v929, %v1468
    %v1470 = vpop.f32.mrb[0].mxu0
    %v1471 = vpop.f32.mrb[0].mxu0
    %1472 = vdwg.mxu0
    %1473 = vmatprep.subr.bf16.mxu0 %v1243
    %1474 = vmatpush1.bf16.msra.mxu0 %v1242
    %1475 = vmatprep.subr.bf16.mxu0 %v1249
    %1476 = vmatpush1.bf16.msra.mxu0 %v1248
    %1477 = vmatprep.subr.bf16.mxu0 %v1255
    %1478 = vmatpush1.bf16.msra.mxu0 %v1254
    %1479 = vmatprep.subr.bf16.mxu0 %v1261
    %1480 = vmatpush1.bf16.msra.mxu0 %v1260
    %1481 = vmatprep.subr.bf16.mxu0 %v1267
    %1482 = vmatpush1.bf16.msra.mxu0 %v1266
    %1483 = vmatprep.subr.bf16.mxu0 %v1273
    %1484 = vmatpush1.bf16.msra.mxu0 %v1272
    %1485 = vmatprep.subr.bf16.mxu0 %v1279
    %1486 = vmatpush1.bf16.msra.mxu0 %v1278
    %1487 = vmatprep.subr.bf16.mxu0 %v1285
    %1488 = vmatpush1.bf16.msra.mxu0 %v1284
    %1489 = vmatprep.subr.bf16.mxu0 %v1291
    %1490 = vmatpush1.bf16.msra.mxu0 %v1290
    %1491 = vmatprep.subr.bf16.mxu0 %v1297
    %1492 = vmatpush1.bf16.msra.mxu0 %v1296
    %1493 = vmatprep.subr.bf16.mxu0 %v1303
    %1494 = vmatpush1.bf16.msra.mxu0 %v1302
    %1495 = vmatprep.subr.bf16.mxu0 %v1309
    %1496 = vmatpush1.bf16.msra.mxu0 %v1308
    %1497 = vmatprep.subr.bf16.mxu0 %v1315
    %1498 = vmatpush1.bf16.msra.mxu0 %v1314
    %1499 = vmatprep.subr.bf16.mxu0 %v1321
    %1500 = vmatpush1.bf16.msra.mxu0 %v1320
    %1501 = vmatprep.subr.bf16.mxu0 %v1327
    %1502 = vmatpush1.bf16.msra.mxu0 %v1326
    %1503 = vmatprep.subr.bf16.mxu0 %v1333
    %1504 = vmatpush1.bf16.msra.mxu0 %v1332
    %1505 = vmatprep.mubr.bf16.mxu0 %v823
    %1506 = vmatmul.mubr.bf16.gmra.mrb[0].mxu0 %v822
    %v1507 = vpop.f32.mrb[0].mxu0
    %v1508 = vadd.f32 %v933, %v1507
    %v1509 = vpop.f32.mrb[0].mxu0
    %v1510 = vadd.f32 %v937, %v1509
    %v1511 = vpop.f32.mrb[0].mxu0
    %v1512 = vpop.f32.mrb[0].mxu0
    %1513 = vdwg.mxu0
    %1514 = vmatprep.subr.bf16.mxu0 %v1245
    %1515 = vmatpush1.bf16.msra.mxu0 %v1244
    %1516 = vmatprep.subr.bf16.mxu0 %v1251
    %1517 = vmatpush1.bf16.msra.mxu0 %v1250
    %1518 = vmatprep.subr.bf16.mxu0 %v1257
    %1519 = vmatpush1.bf16.msra.mxu0 %v1256
    %1520 = vmatprep.subr.bf16.mxu0 %v1263
    %1521 = vmatpush1.bf16.msra.mxu0 %v1262
    %1522 = vmatprep.subr.bf16.mxu0 %v1269
    %1523 = vmatpush1.bf16.msra.mxu0 %v1268
    %1524 = vmatprep.subr.bf16.mxu0 %v1275
    %1525 = vmatpush1.bf16.msra.mxu0 %v1274
    %1526 = vmatprep.subr.bf16.mxu0 %v1281
    %1527 = vmatpush1.bf16.msra.mxu0 %v1280
    %1528 = vmatprep.subr.bf16.mxu0 %v1287
    %1529 = vmatpush1.bf16.msra.mxu0 %v1286
    %1530 = vmatprep.subr.bf16.mxu0 %v1293
    %1531 = vmatpush1.bf16.msra.mxu0 %v1292
    %1532 = vmatprep.subr.bf16.mxu0 %v1299
    %1533 = vmatpush1.bf16.msra.mxu0 %v1298
    %1534 = vmatprep.subr.bf16.mxu0 %v1305
    %1535 = vmatpush1.bf16.msra.mxu0 %v1304
    %1536 = vmatprep.subr.bf16.mxu0 %v1311
    %1537 = vmatpush1.bf16.msra.mxu0 %v1310
    %1538 = vmatprep.subr.bf16.mxu0 %v1317
    %1539 = vmatpush1.bf16.msra.mxu0 %v1316
    %1540 = vmatprep.subr.bf16.mxu0 %v1323
    %1541 = vmatpush1.bf16.msra.mxu0 %v1322
    %1542 = vmatprep.subr.bf16.mxu0 %v1329
    %1543 = vmatpush1.bf16.msra.mxu0 %v1328
    %1544 = vmatprep.subr.bf16.mxu0 %v1335
    %1545 = vmatpush1.bf16.msra.mxu0 %v1334
    %1546 = vmatprep.mubr.bf16.mxu0 %v823
    %1547 = vmatmul.mubr.bf16.gmra.mrb[0].mxu0 %v822
    %v1548 = vpop.f32.mrb[0].mxu0
    %v1549 = vadd.f32 %v941, %v1548
    %v1550 = vpop.f32.mrb[0].mxu0
    %v1551 = vadd.f32 %v945, %v1550
    %v1552 = vpop.f32.mrb[0].mxu0
    %v1553 = vpop.f32.mrb[0].mxu0
    %1554 = vdwg.mxu0
    %v1555 = vld [vmem:[%s1] sm:$0x3f]
    %v1557 = vlaneseq
    %v1558 = vshrl.u32 %v1557, 7
    %v1559 = vsub.s32 0, %v1558
    %v1560 = vrot.slane %v1555, %v1559
    %v1561 = vlaneseq
    %v1562 = vshrl.u32 %v1561, 7
    %v1563 = vsub.s32 1, %v1562
    %v1564 = vrot.slane %v1555, %v1563
    %v1565 = vlaneseq
    %v1566 = vshrl.u32 %v1565, 7
    %v1567 = vsub.s32 2, %v1566
    %v1568 = vrot.slane %v1555, %v1567
    %v1569 = vlaneseq
    %v1570 = vshrl.u32 %v1569, 7
    %v1571 = vsub.s32 3, %v1570
    %v1572 = vrot.slane %v1555, %v1571
    %v1573 = vlaneseq
    %v1574 = vshrl.u32 %v1573, 7
    %v1575 = vsub.s32 4, %v1574
    %v1576 = vrot.slane %v1555, %v1575
    %v1577 = vlaneseq
    %v1578 = vshrl.u32 %v1577, 7
    %v1579 = vsub.s32 5, %v1578
    %v1580 = vrot.slane %v1555, %v1579
    %v1587 = vpack.c.bf16 %v1560, %v1560
    %v1588 = vpack.c.bf16 %v1564, %v1564
    %v1589 = vpack.c.bf16 %v1568, %v1568
    %v1590 = vpack.c.bf16 %v1572, %v1572
    %v1591 = vpack.c.bf16 %v1576, %v1576
    %v1592 = vpack.c.bf16 %v1580, %v1580
    %v1593 = vld [vmem:[#allocation7] sm:$0xff]
    %v1594 = vld [vmem:[#allocation7 + $0x8] sm:$0xff]
    %v1595 = vld [vmem:[#allocation7 + $0x10] sm:$0xff]
    %v1596 = vld [vmem:[#allocation7 + $0x18] sm:$0xff]
    %v1597 = vld [vmem:[#allocation7 + $0x20] sm:$0xff]
    %v1598 = vld [vmem:[#allocation7 + $0x28] sm:$0xff]
    %v1599 = vld [vmem:[#allocation7 + $0x30] sm:$0xff]
    %v1600 = vld [vmem:[#allocation7 + $0x38] sm:$0xff]
    %v1601 = vld [vmem:[#allocation7 + $0x40] sm:$0xff]
    %v1602 = vld [vmem:[#allocation7 + $0x48] sm:$0xff]
    %v1603 = vld [vmem:[#allocation7 + $0x50] sm:$0xff]
    %v1604 = vld [vmem:[#allocation7 + $0x58] sm:$0xff]
    %v1605 = vld [vmem:[#allocation7 + $0x60] sm:$0xff]
    %v1606 = vld [vmem:[#allocation7 + $0x68] sm:$0xff]
    %v1607 = vld [vmem:[#allocation7 + $0x70] sm:$0xff]
    %v1608 = vld [vmem:[#allocation7 + $0x78] sm:$0xff]
    %v1609 = vld [vmem:[#allocation7 + $0x80] sm:$0xff]
    %v1610 = vld [vmem:[#allocation7 + $0x88] sm:$0xff]
    %v1611 = vld [vmem:[#allocation7 + $0x90] sm:$0xff]
    %v1612 = vld [vmem:[#allocation7 + $0x98] sm:$0xff]
    %v1613 = vld [vmem:[#allocation7 + $0xa0] sm:$0xff]
    %v1614 = vld [vmem:[#allocation7 + $0xa8] sm:$0xff]
    %v1615 = vld [vmem:[#allocation7 + $0xb0] sm:$0xff]
    %v1616 = vld [vmem:[#allocation7 + $0xb8] sm:$0xff]
    %v1617 = vld [vmem:[#allocation7 + $0xc0] sm:$0xff]
    %v1618 = vld [vmem:[#allocation7 + $0xc8] sm:$0xff]
    %v1619 = vld [vmem:[#allocation7 + $0xd0] sm:$0xff]
    %v1620 = vld [vmem:[#allocation7 + $0xd8] sm:$0xff]
    %v1621 = vld [vmem:[#allocation7 + $0xe0] sm:$0xff]
    %v1622 = vld [vmem:[#allocation7 + $0xe8] sm:$0xff]
    %v1623 = vld [vmem:[#allocation7 + $0xf0] sm:$0xff]
    %v1624 = vld [vmem:[#allocation7 + $0xf8] sm:$0xff]
    %v1625 = vld [vmem:[#allocation7 + $0x100] sm:$0xff]
    %v1626 = vld [vmem:[#allocation7 + $0x108] sm:$0xff]
    %v1627 = vld [vmem:[#allocation7 + $0x110] sm:$0xff]
    %v1628 = vld [vmem:[#allocation7 + $0x118] sm:$0xff]
    %v1629 = vld [vmem:[#allocation7 + $0x120] sm:$0xff]
    %v1630 = vld [vmem:[#allocation7 + $0x128] sm:$0xff]
    %v1631 = vld [vmem:[#allocation7 + $0x130] sm:$0xff]
    %v1632 = vld [vmem:[#allocation7 + $0x138] sm:$0xff]
    %v1633 = vld [vmem:[#allocation7 + $0x140] sm:$0xff]
    %v1634 = vld [vmem:[#allocation7 + $0x148] sm:$0xff]
    %v1635 = vld [vmem:[#allocation7 + $0x150] sm:$0xff]
    %v1636 = vld [vmem:[#allocation7 + $0x158] sm:$0xff]
    %v1637 = vld [vmem:[#allocation7 + $0x160] sm:$0xff]
    %v1638 = vld [vmem:[#allocation7 + $0x168] sm:$0xff]
    %v1639 = vld [vmem:[#allocation7 + $0x170] sm:$0xff]
    %v1640 = vld [vmem:[#allocation7 + $0x178] sm:$0xff]
    %v1641 = vld [vmem:[#allocation7 + $0x180] sm:$0xff]
    %v1642 = vld [vmem:[#allocation7 + $0x188] sm:$0xff]
    %v1643 = vld [vmem:[#allocation7 + $0x190] sm:$0xff]
    %v1644 = vld [vmem:[#allocation7 + $0x198] sm:$0xff]
    %v1645 = vld [vmem:[#allocation7 + $0x1a0] sm:$0xff]
    %v1646 = vld [vmem:[#allocation7 + $0x1a8] sm:$0xff]
    %v1647 = vld [vmem:[#allocation7 + $0x1b0] sm:$0xff]
    %v1648 = vld [vmem:[#allocation7 + $0x1b8] sm:$0xff]
    %v1649 = vld [vmem:[#allocation7 + $0x1c0] sm:$0xff]
    %v1650 = vld [vmem:[#allocation7 + $0x1c8] sm:$0xff]
    %v1651 = vld [vmem:[#allocation7 + $0x1d0] sm:$0xff]
    %v1652 = vld [vmem:[#allocation7 + $0x1d8] sm:$0xff]
    %v1653 = vld [vmem:[#allocation7 + $0x1e0] sm:$0xff]
    %v1654 = vld [vmem:[#allocation7 + $0x1e8] sm:$0xff]
    %v1655 = vld [vmem:[#allocation7 + $0x1f0] sm:$0xff]
    %v1656 = vld [vmem:[#allocation7 + $0x1f8] sm:$0xff]
    %v1657 = vld [vmem:[#allocation7 + $0x200] sm:$0xff]
    %v1658 = vld [vmem:[#allocation7 + $0x208] sm:$0xff]
    %v1659 = vld [vmem:[#allocation7 + $0x210] sm:$0xff]
    %v1660 = vld [vmem:[#allocation7 + $0x218] sm:$0xff]
    %v1661 = vld [vmem:[#allocation7 + $0x220] sm:$0xff]
    %v1662 = vld [vmem:[#allocation7 + $0x228] sm:$0xff]
    %v1663 = vld [vmem:[#allocation7 + $0x230] sm:$0xff]
    %v1664 = vld [vmem:[#allocation7 + $0x238] sm:$0xff]
    %v1665 = vld [vmem:[#allocation7 + $0x240] sm:$0xff]
    %v1666 = vld [vmem:[#allocation7 + $0x248] sm:$0xff]
    %v1667 = vld [vmem:[#allocation7 + $0x250] sm:$0xff]
    %v1668 = vld [vmem:[#allocation7 + $0x258] sm:$0xff]
    %v1669 = vld [vmem:[#allocation7 + $0x260] sm:$0xff]
    %v1670 = vld [vmem:[#allocation7 + $0x268] sm:$0xff]
    %v1671 = vld [vmem:[#allocation7 + $0x270] sm:$0xff]
    %v1672 = vld [vmem:[#allocation7 + $0x278] sm:$0xff]
    %v1673 = vld [vmem:[#allocation7 + $0x280] sm:$0xff]
    %v1674 = vld [vmem:[#allocation7 + $0x288] sm:$0xff]
    %v1675 = vld [vmem:[#allocation7 + $0x290] sm:$0xff]
    %v1676 = vld [vmem:[#allocation7 + $0x298] sm:$0xff]
    %v1677 = vld [vmem:[#allocation7 + $0x2a0] sm:$0xff]
    %v1678 = vld [vmem:[#allocation7 + $0x2a8] sm:$0xff]
    %v1679 = vld [vmem:[#allocation7 + $0x2b0] sm:$0xff]
    %v1680 = vld [vmem:[#allocation7 + $0x2b8] sm:$0xff]
    %v1681 = vld [vmem:[#allocation7 + $0x2c0] sm:$0xff]
    %v1682 = vld [vmem:[#allocation7 + $0x2c8] sm:$0xff]
    %v1683 = vld [vmem:[#allocation7 + $0x2d0] sm:$0xff]
    %v1684 = vld [vmem:[#allocation7 + $0x2d8] sm:$0xff]
    %v1685 = vld [vmem:[#allocation7 + $0x2e0] sm:$0xff]
    %v1686 = vld [vmem:[#allocation7 + $0x2e8] sm:$0xff]
    %v1687 = vld [vmem:[#allocation7 + $0x2f0] sm:$0xff]
    %v1688 = vld [vmem:[#allocation7 + $0x2f8] sm:$0xff]
    %v1689 = vld [vmem:[%s7] sm:$0x3]
    %v1786 = vunpack.c.l.b16 %v1593
    %v1787 = vunpack.c.h.b16 %v1593
    %v1788 = vunpack.c.l.b16 %v1594
    %v1789 = vunpack.c.h.b16 %v1594
    %v1790 = vunpack.c.l.b16 %v1595
    %v1791 = vunpack.c.h.b16 %v1595
    %v1792 = vunpack.c.l.b16 %v1596
    %v1793 = vunpack.c.h.b16 %v1596
    %v1794 = vunpack.c.l.b16 %v1597
    %v1795 = vunpack.c.h.b16 %v1597
    %v1796 = vunpack.c.l.b16 %v1598
    %v1797 = vunpack.c.h.b16 %v1598
    %v1798 = vunpack.c.l.b16 %v1599
    %v1799 = vunpack.c.h.b16 %v1599
    %v1800 = vunpack.c.l.b16 %v1600
    %v1801 = vunpack.c.h.b16 %v1600
    %v1802 = vunpack.c.l.b16 %v1601
    %v1803 = vunpack.c.h.b16 %v1601
    %v1804 = vunpack.c.l.b16 %v1602
    %v1805 = vunpack.c.h.b16 %v1602
    %v1806 = vunpack.c.l.b16 %v1603
    %v1807 = vunpack.c.h.b16 %v1603
    %v1808 = vunpack.c.l.b16 %v1604
    %v1809 = vunpack.c.h.b16 %v1604
    %v1810 = vunpack.c.l.b16 %v1605
    %v1811 = vunpack.c.h.b16 %v1605
    %v1812 = vunpack.c.l.b16 %v1606
    %v1813 = vunpack.c.h.b16 %v1606
    %v1814 = vunpack.c.l.b16 %v1607
    %v1815 = vunpack.c.h.b16 %v1607
    %v1816 = vunpack.c.l.b16 %v1608
    %v1817 = vunpack.c.h.b16 %v1608
    %v1818 = vunpack.c.l.b16 %v1609
    %v1819 = vunpack.c.h.b16 %v1609
    %v1820 = vunpack.c.l.b16 %v1610
    %v1821 = vunpack.c.h.b16 %v1610
    %v1822 = vunpack.c.l.b16 %v1611
    %v1823 = vunpack.c.h.b16 %v1611
    %v1824 = vunpack.c.l.b16 %v1612
    %v1825 = vunpack.c.h.b16 %v1612
    %v1826 = vunpack.c.l.b16 %v1613
    %v1827 = vunpack.c.h.b16 %v1613
    %v1828 = vunpack.c.l.b16 %v1614
    %v1829 = vunpack.c.h.b16 %v1614
    %v1830 = vunpack.c.l.b16 %v1615
    %v1831 = vunpack.c.h.b16 %v1615
    %v1832 = vunpack.c.l.b16 %v1616
    %v1833 = vunpack.c.h.b16 %v1616
    %v1834 = vunpack.c.l.b16 %v1617
    %v1835 = vunpack.c.h.b16 %v1617
    %v1836 = vunpack.c.l.b16 %v1618
    %v1837 = vunpack.c.h.b16 %v1618
    %v1838 = vunpack.c.l.b16 %v1619
    %v1839 = vunpack.c.h.b16 %v1619
    %v1840 = vunpack.c.l.b16 %v1620
    %v1841 = vunpack.c.h.b16 %v1620
    %v1842 = vunpack.c.l.b16 %v1621
    %v1843 = vunpack.c.h.b16 %v1621
    %v1844 = vunpack.c.l.b16 %v1622
    %v1845 = vunpack.c.h.b16 %v1622
    %v1846 = vunpack.c.l.b16 %v1623
    %v1847 = vunpack.c.h.b16 %v1623
    %v1848 = vunpack.c.l.b16 %v1624
    %v1849 = vunpack.c.h.b16 %v1624
    %v1850 = vunpack.c.l.b16 %v1625
    %v1851 = vunpack.c.h.b16 %v1625
    %v1852 = vunpack.c.l.b16 %v1626
    %v1853 = vunpack.c.h.b16 %v1626
    %v1854 = vunpack.c.l.b16 %v1627
    %v1855 = vunpack.c.h.b16 %v1627
    %v1856 = vunpack.c.l.b16 %v1628
    %v1857 = vunpack.c.h.b16 %v1628
    %v1858 = vunpack.c.l.b16 %v1629
    %v1859 = vunpack.c.h.b16 %v1629
    %v1860 = vunpack.c.l.b16 %v1630
    %v1861 = vunpack.c.h.b16 %v1630
    %v1862 = vunpack.c.l.b16 %v1631
    %v1863 = vunpack.c.h.b16 %v1631
    %v1864 = vunpack.c.l.b16 %v1632
    %v1865 = vunpack.c.h.b16 %v1632
    %v1866 = vunpack.c.l.b16 %v1633
    %v1867 = vunpack.c.h.b16 %v1633
    %v1868 = vunpack.c.l.b16 %v1634
    %v1869 = vunpack.c.h.b16 %v1634
    %v1870 = vunpack.c.l.b16 %v1635
    %v1871 = vunpack.c.h.b16 %v1635
    %v1872 = vunpack.c.l.b16 %v1636
    %v1873 = vunpack.c.h.b16 %v1636
    %v1874 = vunpack.c.l.b16 %v1637
    %v1875 = vunpack.c.h.b16 %v1637
    %v1876 = vunpack.c.l.b16 %v1638
    %v1877 = vunpack.c.h.b16 %v1638
    %v1878 = vunpack.c.l.b16 %v1639
    %v1879 = vunpack.c.h.b16 %v1639
    %v1880 = vunpack.c.l.b16 %v1640
    %v1881 = vunpack.c.h.b16 %v1640
    %v1882 = vunpack.c.l.b16 %v1641
    %v1883 = vunpack.c.h.b16 %v1641
    %v1884 = vunpack.c.l.b16 %v1642
    %v1885 = vunpack.c.h.b16 %v1642
    %v1886 = vunpack.c.l.b16 %v1643
    %v1887 = vunpack.c.h.b16 %v1643
    %v1888 = vunpack.c.l.b16 %v1644
    %v1889 = vunpack.c.h.b16 %v1644
    %v1890 = vunpack.c.l.b16 %v1645
    %v1891 = vunpack.c.h.b16 %v1645
    %v1892 = vunpack.c.l.b16 %v1646
    %v1893 = vunpack.c.h.b16 %v1646
    %v1894 = vunpack.c.l.b16 %v1647
    %v1895 = vunpack.c.h.b16 %v1647
    %v1896 = vunpack.c.l.b16 %v1648
    %v1897 = vunpack.c.h.b16 %v1648
    %v1898 = vunpack.c.l.b16 %v1649
    %v1899 = vunpack.c.h.b16 %v1649
    %v1900 = vunpack.c.l.b16 %v1650
    %v1901 = vunpack.c.h.b16 %v1650
    %v1902 = vunpack.c.l.b16 %v1651
    %v1903 = vunpack.c.h.b16 %v1651
    %v1904 = vunpack.c.l.b16 %v1652
    %v1905 = vunpack.c.h.b16 %v1652
    %v1906 = vunpack.c.l.b16 %v1653
    %v1907 = vunpack.c.h.b16 %v1653
    %v1908 = vunpack.c.l.b16 %v1654
    %v1909 = vunpack.c.h.b16 %v1654
    %v1910 = vunpack.c.l.b16 %v1655
    %v1911 = vunpack.c.h.b16 %v1655
    %v1912 = vunpack.c.l.b16 %v1656
    %v1913 = vunpack.c.h.b16 %v1656
    %v1914 = vunpack.c.l.b16 %v1657
    %v1915 = vunpack.c.h.b16 %v1657
    %v1916 = vunpack.c.l.b16 %v1658
    %v1917 = vunpack.c.h.b16 %v1658
    %v1918 = vunpack.c.l.b16 %v1659
    %v1919 = vunpack.c.h.b16 %v1659
    %v1920 = vunpack.c.l.b16 %v1660
    %v1921 = vunpack.c.h.b16 %v1660
    %v1922 = vunpack.c.l.b16 %v1661
    %v1923 = vunpack.c.h.b16 %v1661
    %v1924 = vunpack.c.l.b16 %v1662
    %v1925 = vunpack.c.h.b16 %v1662
    %v1926 = vunpack.c.l.b16 %v1663
    %v1927 = vunpack.c.h.b16 %v1663
    %v1928 = vunpack.c.l.b16 %v1664
    %v1929 = vunpack.c.h.b16 %v1664
    %v1930 = vunpack.c.l.b16 %v1665
    %v1931 = vunpack.c.h.b16 %v1665
    %v1932 = vunpack.c.l.b16 %v1666
    %v1933 = vunpack.c.h.b16 %v1666
    %v1934 = vunpack.c.l.b16 %v1667
    %v1935 = vunpack.c.h.b16 %v1667
    %v1936 = vunpack.c.l.b16 %v1668
    %v1937 = vunpack.c.h.b16 %v1668
    %v1938 = vunpack.c.l.b16 %v1669
    %v1939 = vunpack.c.h.b16 %v1669
    %v1940 = vunpack.c.l.b16 %v1670
    %v1941 = vunpack.c.h.b16 %v1670
    %v1942 = vunpack.c.l.b16 %v1671
    %v1943 = vunpack.c.h.b16 %v1671
    %v1944 = vunpack.c.l.b16 %v1672
    %v1945 = vunpack.c.h.b16 %v1672
    %v1946 = vunpack.c.l.b16 %v1673
    %v1947 = vunpack.c.h.b16 %v1673
    %v1948 = vunpack.c.l.b16 %v1674
    %v1949 = vunpack.c.h.b16 %v1674
    %v1950 = vunpack.c.l.b16 %v1675
    %v1951 = vunpack.c.h.b16 %v1675
    %v1952 = vunpack.c.l.b16 %v1676
    %v1953 = vunpack.c.h.b16 %v1676
    %v1954 = vunpack.c.l.b16 %v1677
    %v1955 = vunpack.c.h.b16 %v1677
    %v1956 = vunpack.c.l.b16 %v1678
    %v1957 = vunpack.c.h.b16 %v1678
    %v1958 = vunpack.c.l.b16 %v1679
    %v1959 = vunpack.c.h.b16 %v1679
    %v1960 = vunpack.c.l.b16 %v1680
    %v1961 = vunpack.c.h.b16 %v1680
    %v1962 = vunpack.c.l.b16 %v1681
    %v1963 = vunpack.c.h.b16 %v1681
    %v1964 = vunpack.c.l.b16 %v1682
    %v1965 = vunpack.c.h.b16 %v1682
    %v1966 = vunpack.c.l.b16 %v1683
    %v1967 = vunpack.c.h.b16 %v1683
    %v1968 = vunpack.c.l.b16 %v1684
    %v1969 = vunpack.c.h.b16 %v1684
    %v1970 = vunpack.c.l.b16 %v1685
    %v1971 = vunpack.c.h.b16 %v1685
    %v1972 = vunpack.c.l.b16 %v1686
    %v1973 = vunpack.c.h.b16 %v1686
    %v1974 = vunpack.c.l.b16 %v1687
    %v1975 = vunpack.c.h.b16 %v1687
    %v1976 = vunpack.c.l.b16 %v1688
    %v1977 = vunpack.c.h.b16 %v1688
    %v1978 = vpack.c.b16 %v1788, %v1786
    %v1979 = vpack.c.b16 %v1789, %v1787
    %v1980 = vpack.c.b16 %v1792, %v1790
    %v1981 = vpack.c.b16 %v1793, %v1791
    %v1982 = vpack.c.b16 %v1796, %v1794
    %v1983 = vpack.c.b16 %v1797, %v1795
    %v1984 = vpack.c.b16 %v1800, %v1798
    %v1985 = vpack.c.b16 %v1801, %v1799
    %v1986 = vpack.c.b16 %v1804, %v1802
    %v1987 = vpack.c.b16 %v1805, %v1803
    %v1988 = vpack.c.b16 %v1808, %v1806
    %v1989 = vpack.c.b16 %v1809, %v1807
    %v1990 = vpack.c.b16 %v1812, %v1810
    %v1991 = vpack.c.b16 %v1813, %v1811
    %v1992 = vpack.c.b16 %v1816, %v1814
    %v1993 = vpack.c.b16 %v1817, %v1815
    %v1994 = vpack.c.b16 %v1820, %v1818
    %v1995 = vpack.c.b16 %v1821, %v1819
    %v1996 = vpack.c.b16 %v1824, %v1822
    %v1997 = vpack.c.b16 %v1825, %v1823
    %v1998 = vpack.c.b16 %v1828, %v1826
    %v1999 = vpack.c.b16 %v1829, %v1827
    %v2000 = vpack.c.b16 %v1832, %v1830
    %v2001 = vpack.c.b16 %v1833, %v1831
    %v2002 = vpack.c.b16 %v1836, %v1834
    %v2003 = vpack.c.b16 %v1837, %v1835
    %v2004 = vpack.c.b16 %v1840, %v1838
    %v2005 = vpack.c.b16 %v1841, %v1839
    %v2006 = vpack.c.b16 %v1844, %v1842
    %v2007 = vpack.c.b16 %v1845, %v1843
    %v2008 = vpack.c.b16 %v1848, %v1846
    %v2009 = vpack.c.b16 %v1849, %v1847
    %v2010 = vpack.c.b16 %v1852, %v1850
    %v2011 = vpack.c.b16 %v1853, %v1851
    %v2012 = vpack.c.b16 %v1856, %v1854
    %v2013 = vpack.c.b16 %v1857, %v1855
    %v2014 = vpack.c.b16 %v1860, %v1858
    %v2015 = vpack.c.b16 %v1861, %v1859
    %v2016 = vpack.c.b16 %v1864, %v1862
    %v2017 = vpack.c.b16 %v1865, %v1863
    %v2018 = vpack.c.b16 %v1868, %v1866
    %v2019 = vpack.c.b16 %v1869, %v1867
    %v2020 = vpack.c.b16 %v1872, %v1870
    %v2021 = vpack.c.b16 %v1873, %v1871
    %v2022 = vpack.c.b16 %v1876, %v1874
    %v2023 = vpack.c.b16 %v1877, %v1875
    %v2024 = vpack.c.b16 %v1880, %v1878
    %v2025 = vpack.c.b16 %v1881, %v1879
    %v2026 = vpack.c.b16 %v1884, %v1882
    %v2027 = vpack.c.b16 %v1885, %v1883
    %v2028 = vpack.c.b16 %v1888, %v1886
    %v2029 = vpack.c.b16 %v1889, %v1887
    %v2030 = vpack.c.b16 %v1892, %v1890
    %v2031 = vpack.c.b16 %v1893, %v1891
    %v2032 = vpack.c.b16 %v1896, %v1894
    %v2033 = vpack.c.b16 %v1897, %v1895
    %v2034 = vpack.c.b16 %v1900, %v1898
    %v2035 = vpack.c.b16 %v1901, %v1899
    %v2036 = vpack.c.b16 %v1904, %v1902
    %v2037 = vpack.c.b16 %v1905, %v1903
    %v2038 = vpack.c.b16 %v1908, %v1906
    %v2039 = vpack.c.b16 %v1909, %v1907
    %v2040 = vpack.c.b16 %v1912, %v1910
    %v2041 = vpack.c.b16 %v1913, %v1911
    %v2042 = vpack.c.b16 %v1916, %v1914
    %v2043 = vpack.c.b16 %v1917, %v1915
    %v2044 = vpack.c.b16 %v1920, %v1918
    %v2045 = vpack.c.b16 %v1921, %v1919
    %v2046 = vpack.c.b16 %v1924, %v1922
    %v2047 = vpack.c.b16 %v1925, %v1923
    %v2048 = vpack.c.b16 %v1928, %v1926
    %v2049 = vpack.c.b16 %v1929, %v1927
    %v2050 = vpack.c.b16 %v1932, %v1930
    %v2051 = vpack.c.b16 %v1933, %v1931
    %v2052 = vpack.c.b16 %v1936, %v1934
    %v2053 = vpack.c.b16 %v1937, %v1935
    %v2054 = vpack.c.b16 %v1940, %v1938
    %v2055 = vpack.c.b16 %v1941, %v1939
    %v2056 = vpack.c.b16 %v1944, %v1942
    %v2057 = vpack.c.b16 %v1945, %v1943
    %v2058 = vpack.c.b16 %v1948, %v1946
    %v2059 = vpack.c.b16 %v1949, %v1947
    %v2060 = vpack.c.b16 %v1952, %v1950
    %v2061 = vpack.c.b16 %v1953, %v1951
    %v2062 = vpack.c.b16 %v1956, %v1954
    %v2063 = vpack.c.b16 %v1957, %v1955
    %v2064 = vpack.c.b16 %v1960, %v1958
    %v2065 = vpack.c.b16 %v1961, %v1959
    %v2066 = vpack.c.b16 %v1964, %v1962
    %v2067 = vpack.c.b16 %v1965, %v1963
    %v2068 = vpack.c.b16 %v1968, %v1966
    %v2069 = vpack.c.b16 %v1969, %v1967
    %v2070 = vpack.c.b16 %v1972, %v1970
    %v2071 = vpack.c.b16 %v1973, %v1971
    %v2072 = vpack.c.b16 %v1976, %v1974
    %v2073 = vpack.c.b16 %v1977, %v1975
    %v2171 = vlaneseq
    %v2172 = vshrl.u32 %v2171, 7
    %v2173 = vsub.s32 0, %v2172
    %v2174 = vrot.slane %v1689, %v2173
    %v2175 = vlaneseq
    %v2176 = vshrl.u32 %v2175, 7
    %v2177 = vsub.s32 1, %v2176
    %v2178 = vrot.slane %v1689, %v2177
    %2181 = vmatprep.subr.bf16.mxu0 %v1979
    %2182 = vmatpush1.bf16.msra.mxu0 %v1978
    %2183 = vmatprep.subr.bf16.mxu0 %v1981
    %2184 = vmatpush1.bf16.msra.mxu0 %v1980
    %2185 = vmatprep.subr.bf16.mxu0 %v1983
    %2186 = vmatpush1.bf16.msra.mxu0 %v1982
    %2187 = vmatprep.subr.bf16.mxu0 %v1985
    %2188 = vmatpush1.bf16.msra.mxu0 %v1984
    %2189 = vmatprep.subr.bf16.mxu0 %v1987
    %2190 = vmatpush1.bf16.msra.mxu0 %v1986
    %2191 = vmatprep.subr.bf16.mxu0 %v1989
    %2192 = vmatpush1.bf16.msra.mxu0 %v1988
    %2193 = vmatprep.subr.bf16.mxu0 %v1991
    %2194 = vmatpush1.bf16.msra.mxu0 %v1990
    %2195 = vmatprep.subr.bf16.mxu0 %v1993
    %2196 = vmatpush1.bf16.msra.mxu0 %v1992
    %2197 = vmatprep.subr.bf16.mxu0 %v1995
    %2198 = vmatpush1.bf16.msra.mxu0 %v1994
    %2199 = vmatprep.subr.bf16.mxu0 %v1997
    %2200 = vmatpush1.bf16.msra.mxu0 %v1996
    %2201 = vmatprep.subr.bf16.mxu0 %v1999
    %2202 = vmatpush1.bf16.msra.mxu0 %v1998
    %2203 = vmatprep.subr.bf16.mxu0 %v2001
    %2204 = vmatpush1.bf16.msra.mxu0 %v2000
    %2205 = vmatprep.subr.bf16.mxu0 %v2003
    %2206 = vmatpush1.bf16.msra.mxu0 %v2002
    %2207 = vmatprep.subr.bf16.mxu0 %v2005
    %2208 = vmatpush1.bf16.msra.mxu0 %v2004
    %2209 = vmatprep.subr.bf16.mxu0 %v2007
    %2210 = vmatpush1.bf16.msra.mxu0 %v2006
    %2211 = vmatprep.subr.bf16.mxu0 %v2009
    %2212 = vmatpush1.bf16.msra.mxu0 %v2008
    %2213 = vmatprep.mubr.bf16.mxu0 %v1588
    %2214 = vmatmul.mubr.bf16.gmra.mrb[0].mxu0 %v1587
    %v2215 = vpop.f32.mrb[0].mxu0
    %v2216 = vadd.f32 %v2174, %v2215
    %v2217 = vpop.f32.mrb[0].mxu0
    %v2218 = vadd.f32 %v2178, %v2217
    %v2219 = vpop.f32.mrb[0].mxu0
    %v2220 = vpop.f32.mrb[0].mxu0
    %2221 = vdwg.mxu0
    %2222 = vmatprep.subr.bf16.mxu0 %v2011
    %2223 = vmatpush1.bf16.msra.mxu0 %v2010
    %2224 = vmatprep.subr.bf16.mxu0 %v2013
    %2225 = vmatpush1.bf16.msra.mxu0 %v2012
    %2226 = vmatprep.subr.bf16.mxu0 %v2015
    %2227 = vmatpush1.bf16.msra.mxu0 %v2014
    %2228 = vmatprep.subr.bf16.mxu0 %v2017
    %2229 = vmatpush1.bf16.msra.mxu0 %v2016
    %2230 = vmatprep.subr.bf16.mxu0 %v2019
    %2231 = vmatpush1.bf16.msra.mxu0 %v2018
    %2232 = vmatprep.subr.bf16.mxu0 %v2021
    %2233 = vmatpush1.bf16.msra.mxu0 %v2020
    %2234 = vmatprep.subr.bf16.mxu0 %v2023
    %2235 = vmatpush1.bf16.msra.mxu0 %v2022
    %2236 = vmatprep.subr.bf16.mxu0 %v2025
    %2237 = vmatpush1.bf16.msra.mxu0 %v2024
    %2238 = vmatprep.subr.bf16.mxu0 %v2027
    %2239 = vmatpush1.bf16.msra.mxu0 %v2026
    %2240 = vmatprep.subr.bf16.mxu0 %v2029
    %2241 = vmatpush1.bf16.msra.mxu0 %v2028
    %2242 = vmatprep.subr.bf16.mxu0 %v2031
    %2243 = vmatpush1.bf16.msra.mxu0 %v2030
    %2244 = vmatprep.subr.bf16.mxu0 %v2033
    %2245 = vmatpush1.bf16.msra.mxu0 %v2032
    %2246 = vmatprep.subr.bf16.mxu0 %v2035
    %2247 = vmatpush1.bf16.msra.mxu0 %v2034
    %2248 = vmatprep.subr.bf16.mxu0 %v2037
    %2249 = vmatpush1.bf16.msra.mxu0 %v2036
    %2250 = vmatprep.subr.bf16.mxu0 %v2039
    %2251 = vmatpush1.bf16.msra.mxu0 %v2038
    %2252 = vmatprep.subr.bf16.mxu0 %v2041
    %2253 = vmatpush1.bf16.msra.mxu0 %v2040
    %2254 = vmatprep.mubr.bf16.mxu0 %v1590
    %2255 = vmatmul.mubr.bf16.gmra.mrb[0].mxu0 %v1589
    %v2256 = vpop.f32.mrb[0].mxu0
    %v2257 = vadd.f32 %v2216, %v2256
    %v2258 = vpop.f32.mrb[0].mxu0
    %v2259 = vadd.f32 %v2218, %v2258
    %v2260 = vpop.f32.mrb[0].mxu0
    %v2261 = vpop.f32.mrb[0].mxu0
    %2262 = vdwg.mxu0
    %2263 = vmatprep.subr.bf16.mxu0 %v2043
    %2264 = vmatpush1.bf16.msra.mxu0 %v2042
    %2265 = vmatprep.subr.bf16.mxu0 %v2045
    %2266 = vmatpush1.bf16.msra.mxu0 %v2044
    %2267 = vmatprep.subr.bf16.mxu0 %v2047
    %2268 = vmatpush1.bf16.msra.mxu0 %v2046
    %2269 = vmatprep.subr.bf16.mxu0 %v2049
    %2270 = vmatpush1.bf16.msra.mxu0 %v2048
    %2271 = vmatprep.subr.bf16.mxu0 %v2051
    %2272 = vmatpush1.bf16.msra.mxu0 %v2050
    %2273 = vmatprep.subr.bf16.mxu0 %v2053
    %2274 = vmatpush1.bf16.msra.mxu0 %v2052
    %2275 = vmatprep.subr.bf16.mxu0 %v2055
    %2276 = vmatpush1.bf16.msra.mxu0 %v2054
    %2277 = vmatprep.subr.bf16.mxu0 %v2057
    %2278 = vmatpush1.bf16.msra.mxu0 %v2056
    %2279 = vmatprep.subr.bf16.mxu0 %v2059
    %2280 = vmatpush1.bf16.msra.mxu0 %v2058
    %2281 = vmatprep.subr.bf16.mxu0 %v2061
    %2282 = vmatpush1.bf16.msra.mxu0 %v2060
    %2283 = vmatprep.subr.bf16.mxu0 %v2063
    %2284 = vmatpush1.bf16.msra.mxu0 %v2062
    %2285 = vmatprep.subr.bf16.mxu0 %v2065
    %2286 = vmatpush1.bf16.msra.mxu0 %v2064
    %2287 = vmatprep.subr.bf16.mxu0 %v2067
    %2288 = vmatpush1.bf16.msra.mxu0 %v2066
    %2289 = vmatprep.subr.bf16.mxu0 %v2069
    %2290 = vmatpush1.bf16.msra.mxu0 %v2068
    %2291 = vmatprep.subr.bf16.mxu0 %v2071
    %2292 = vmatpush1.bf16.msra.mxu0 %v2070
    %2293 = vmatprep.subr.bf16.mxu0 %v2073
    %2294 = vmatpush1.bf16.msra.mxu0 %v2072
    %2295 = vmatprep.mubr.bf16.mxu0 %v1592
    %2296 = vmatmul.mubr.bf16.gmra.mrb[0].mxu0 %v1591
    %v2297 = vpop.f32.mrb[0].mxu0
    %v2298 = vadd.f32 %v2257, %v2297
    %v2299 = vpop.f32.mrb[0].mxu0
    %v2300 = vadd.f32 %v2259, %v2299
    %v2301 = vpop.f32.mrb[0].mxu0
    %v2302 = vpop.f32.mrb[0].mxu0
    %2303 = vdwg.mxu0
    %v2304 = vmax.f32 %v2298, 0.0
    %v2305 = vmax.f32 %v2300, 0.0
    %v2306 = vpack.c.bf16 %v2304, %v2304
    %v2307 = vpack.c.bf16 %v2305, %v2305
    %v2308 = vld [vmem:[#allocation8] sm:$0xff]
    %v2309 = vld [vmem:[#allocation8 + $0x8] sm:$0xff]
    %v2310 = vld [vmem:[#allocation8 + $0x10] sm:$0xff]
    %v2311 = vld [vmem:[#allocation8 + $0x18] sm:$0xff]
    %v2312 = vld [vmem:[#allocation8 + $0x20] sm:$0xff]
    %v2313 = vld [vmem:[#allocation8 + $0x28] sm:$0xff]
    %v2314 = vld [vmem:[#allocation8 + $0x30] sm:$0xff]
    %v2315 = vld [vmem:[#allocation8 + $0x38] sm:$0xff]
    %v2316 = vld [vmem:[#allocation8 + $0x40] sm:$0xff]
    %v2317 = vld [vmem:[#allocation8 + $0x48] sm:$0xff]
    %v2318 = vld [vmem:[#allocation8 + $0x50] sm:$0xff]
    %v2319 = vld [vmem:[#allocation8 + $0x58] sm:$0xff]
    %v2320 = vld [vmem:[#allocation8 + $0x60] sm:$0xff]
    %v2321 = vld [vmem:[#allocation8 + $0x68] sm:$0xff]
    %v2322 = vld [vmem:[#allocation8 + $0x70] sm:$0xff]
    %v2323 = vld [vmem:[#allocation8 + $0x78] sm:$0xff]
    %v2324 = vld [vmem:[#allocation8 + $0x80] sm:$0xff]
    %v2325 = vld [vmem:[#allocation8 + $0x88] sm:$0xff]
    %v2326 = vld [vmem:[#allocation8 + $0x90] sm:$0xff]
    %v2327 = vld [vmem:[#allocation8 + $0x98] sm:$0xff]
    %v2328 = vld [vmem:[#allocation8 + $0xa0] sm:$0xff]
    %v2329 = vld [vmem:[#allocation8 + $0xa8] sm:$0xff]
    %v2330 = vld [vmem:[#allocation8 + $0xb0] sm:$0xff]
    %v2331 = vld [vmem:[#allocation8 + $0xb8] sm:$0xff]
    %v2332 = vld [vmem:[#allocation8 + $0xc0] sm:$0xff]
    %v2333 = vld [vmem:[#allocation8 + $0xc8] sm:$0xff]
    %v2334 = vld [vmem:[#allocation8 + $0xd0] sm:$0xff]
    %v2335 = vld [vmem:[#allocation8 + $0xd8] sm:$0xff]
    %v2336 = vld [vmem:[#allocation8 + $0xe0] sm:$0xff]
    %v2337 = vld [vmem:[#allocation8 + $0xe8] sm:$0xff]
    %v2338 = vld [vmem:[#allocation8 + $0xf0] sm:$0xff]
    %v2339 = vld [vmem:[#allocation8 + $0xf8] sm:$0xff]
    %v2340 = vld [vmem:[#allocation8 + $0x100] sm:$0xff]
    %v2341 = vld [vmem:[#allocation8 + $0x108] sm:$0xff]
    %v2342 = vld [vmem:[#allocation8 + $0x110] sm:$0xff]
    %v2343 = vld [vmem:[#allocation8 + $0x118] sm:$0xff]
    %v2344 = vld [vmem:[#allocation8 + $0x120] sm:$0xff]
    %v2345 = vld [vmem:[#allocation8 + $0x128] sm:$0xff]
    %v2346 = vld [vmem:[#allocation8 + $0x130] sm:$0xff]
    %v2347 = vld [vmem:[#allocation8 + $0x138] sm:$0xff]
    %v2348 = vld [vmem:[#allocation8 + $0x140] sm:$0xff]
    %v2349 = vld [vmem:[#allocation8 + $0x148] sm:$0xff]
    %v2350 = vld [vmem:[#allocation8 + $0x150] sm:$0xff]
    %v2351 = vld [vmem:[#allocation8 + $0x158] sm:$0xff]
    %v2352 = vld [vmem:[#allocation8 + $0x160] sm:$0xff]
    %v2353 = vld [vmem:[#allocation8 + $0x168] sm:$0xff]
    %v2354 = vld [vmem:[#allocation8 + $0x170] sm:$0xff]
    %v2355 = vld [vmem:[#allocation8 + $0x178] sm:$0xff]
    %v2356 = vld [vmem:[#allocation8 + $0x180] sm:$0xff]
    %v2357 = vld [vmem:[#allocation8 + $0x188] sm:$0xff]
    %v2358 = vld [vmem:[#allocation8 + $0x190] sm:$0xff]
    %v2359 = vld [vmem:[#allocation8 + $0x198] sm:$0xff]
    %v2360 = vld [vmem:[#allocation8 + $0x1a0] sm:$0xff]
    %v2361 = vld [vmem:[#allocation8 + $0x1a8] sm:$0xff]
    %v2362 = vld [vmem:[#allocation8 + $0x1b0] sm:$0xff]
    %v2363 = vld [vmem:[#allocation8 + $0x1b8] sm:$0xff]
    %v2364 = vld [vmem:[#allocation8 + $0x1c0] sm:$0xff]
    %v2365 = vld [vmem:[#allocation8 + $0x1c8] sm:$0xff]
    %v2366 = vld [vmem:[#allocation8 + $0x1d0] sm:$0xff]
    %v2367 = vld [vmem:[#allocation8 + $0x1d8] sm:$0xff]
    %v2368 = vld [vmem:[#allocation8 + $0x1e0] sm:$0xff]
    %v2369 = vld [vmem:[#allocation8 + $0x1e8] sm:$0xff]
    %v2370 = vld [vmem:[#allocation8 + $0x1f0] sm:$0xff]
    %v2371 = vld [vmem:[#allocation8 + $0x1f8] sm:$0xff]
    %v2372 = vld [vmem:[#allocation8 + $0x200] sm:$0xff]
    %v2373 = vld [vmem:[#allocation8 + $0x208] sm:$0xff]
    %v2374 = vld [vmem:[#allocation8 + $0x210] sm:$0xff]
    %v2375 = vld [vmem:[#allocation8 + $0x218] sm:$0xff]
    %v2376 = vld [vmem:[#allocation8 + $0x220] sm:$0xff]
    %v2377 = vld [vmem:[#allocation8 + $0x228] sm:$0xff]
    %v2378 = vld [vmem:[#allocation8 + $0x230] sm:$0xff]
    %v2379 = vld [vmem:[#allocation8 + $0x238] sm:$0xff]
    %v2380 = vld [vmem:[#allocation8 + $0x240] sm:$0xff]
    %v2381 = vld [vmem:[#allocation8 + $0x248] sm:$0xff]
    %v2382 = vld [vmem:[#allocation8 + $0x250] sm:$0xff]
    %v2383 = vld [vmem:[#allocation8 + $0x258] sm:$0xff]
    %v2384 = vld [vmem:[#allocation8 + $0x260] sm:$0xff]
    %v2385 = vld [vmem:[#allocation8 + $0x268] sm:$0xff]
    %v2386 = vld [vmem:[#allocation8 + $0x270] sm:$0xff]
    %v2387 = vld [vmem:[#allocation8 + $0x278] sm:$0xff]
    %v2388 = vld [vmem:[#allocation8 + $0x280] sm:$0xff]
    %v2389 = vld [vmem:[#allocation8 + $0x288] sm:$0xff]
    %v2390 = vld [vmem:[#allocation8 + $0x290] sm:$0xff]
    %v2391 = vld [vmem:[#allocation8 + $0x298] sm:$0xff]
    %v2392 = vld [vmem:[#allocation8 + $0x2a0] sm:$0xff]
    %v2393 = vld [vmem:[#allocation8 + $0x2a8] sm:$0xff]
    %v2394 = vld [vmem:[#allocation8 + $0x2b0] sm:$0xff]
    %v2395 = vld [vmem:[#allocation8 + $0x2b8] sm:$0xff]
    %v2396 = vld [vmem:[#allocation8 + $0x2c0] sm:$0xff]
    %v2397 = vld [vmem:[#allocation8 + $0x2c8] sm:$0xff]
    %v2398 = vld [vmem:[#allocation8 + $0x2d0] sm:$0xff]
    %v2399 = vld [vmem:[#allocation8 + $0x2d8] sm:$0xff]
    %v2400 = vld [vmem:[#allocation8 + $0x2e0] sm:$0xff]
    %v2401 = vld [vmem:[#allocation8 + $0x2e8] sm:$0xff]
    %v2402 = vld [vmem:[#allocation8 + $0x2f0] sm:$0xff]
    %v2403 = vld [vmem:[#allocation8 + $0x2f8] sm:$0xff]
    %v2404 = vld [vmem:[%s9] sm:$0x3f]
    %v2501 = vunpack.c.l.b16 %v2308
    %v2502 = vunpack.c.h.b16 %v2308
    %v2503 = vunpack.c.l.b16 %v2309
    %v2504 = vunpack.c.h.b16 %v2309
    %v2505 = vunpack.c.l.b16 %v2310
    %v2506 = vunpack.c.h.b16 %v2310
    %v2507 = vunpack.c.l.b16 %v2311
    %v2508 = vunpack.c.h.b16 %v2311
    %v2509 = vunpack.c.l.b16 %v2312
    %v2510 = vunpack.c.h.b16 %v2312
    %v2511 = vunpack.c.l.b16 %v2313
    %v2512 = vunpack.c.h.b16 %v2313
    %v2513 = vunpack.c.l.b16 %v2314
    %v2514 = vunpack.c.h.b16 %v2314
    %v2515 = vunpack.c.l.b16 %v2315
    %v2516 = vunpack.c.h.b16 %v2315
    %v2517 = vunpack.c.l.b16 %v2316
    %v2518 = vunpack.c.h.b16 %v2316
    %v2519 = vunpack.c.l.b16 %v2317
    %v2520 = vunpack.c.h.b16 %v2317
    %v2521 = vunpack.c.l.b16 %v2318
    %v2522 = vunpack.c.h.b16 %v2318
    %v2523 = vunpack.c.l.b16 %v2319
    %v2524 = vunpack.c.h.b16 %v2319
    %v2525 = vunpack.c.l.b16 %v2320
    %v2526 = vunpack.c.h.b16 %v2320
    %v2527 = vunpack.c.l.b16 %v2321
    %v2528 = vunpack.c.h.b16 %v2321
    %v2529 = vunpack.c.l.b16 %v2322
    %v2530 = vunpack.c.h.b16 %v2322
    %v2531 = vunpack.c.l.b16 %v2323
    %v2532 = vunpack.c.h.b16 %v2323
    %v2533 = vunpack.c.l.b16 %v2324
    %v2534 = vunpack.c.h.b16 %v2324
    %v2535 = vunpack.c.l.b16 %v2325
    %v2536 = vunpack.c.h.b16 %v2325
    %v2537 = vunpack.c.l.b16 %v2326
    %v2538 = vunpack.c.h.b16 %v2326
    %v2539 = vunpack.c.l.b16 %v2327
    %v2540 = vunpack.c.h.b16 %v2327
    %v2541 = vunpack.c.l.b16 %v2328
    %v2542 = vunpack.c.h.b16 %v2328
    %v2543 = vunpack.c.l.b16 %v2329
    %v2544 = vunpack.c.h.b16 %v2329
    %v2545 = vunpack.c.l.b16 %v2330
    %v2546 = vunpack.c.h.b16 %v2330
    %v2547 = vunpack.c.l.b16 %v2331
    %v2548 = vunpack.c.h.b16 %v2331
    %v2549 = vunpack.c.l.b16 %v2332
    %v2550 = vunpack.c.h.b16 %v2332
    %v2551 = vunpack.c.l.b16 %v2333
    %v2552 = vunpack.c.h.b16 %v2333
    %v2553 = vunpack.c.l.b16 %v2334
    %v2554 = vunpack.c.h.b16 %v2334
    %v2555 = vunpack.c.l.b16 %v2335
    %v2556 = vunpack.c.h.b16 %v2335
    %v2557 = vunpack.c.l.b16 %v2336
    %v2558 = vunpack.c.h.b16 %v2336
    %v2559 = vunpack.c.l.b16 %v2337
    %v2560 = vunpack.c.h.b16 %v2337
    %v2561 = vunpack.c.l.b16 %v2338
    %v2562 = vunpack.c.h.b16 %v2338
    %v2563 = vunpack.c.l.b16 %v2339
    %v2564 = vunpack.c.h.b16 %v2339
    %v2565 = vunpack.c.l.b16 %v2340
    %v2566 = vunpack.c.h.b16 %v2340
    %v2567 = vunpack.c.l.b16 %v2341
    %v2568 = vunpack.c.h.b16 %v2341
    %v2569 = vunpack.c.l.b16 %v2342
    %v2570 = vunpack.c.h.b16 %v2342
    %v2571 = vunpack.c.l.b16 %v2343
    %v2572 = vunpack.c.h.b16 %v2343
    %v2573 = vunpack.c.l.b16 %v2344
    %v2574 = vunpack.c.h.b16 %v2344
    %v2575 = vunpack.c.l.b16 %v2345
    %v2576 = vunpack.c.h.b16 %v2345
    %v2577 = vunpack.c.l.b16 %v2346
    %v2578 = vunpack.c.h.b16 %v2346
    %v2579 = vunpack.c.l.b16 %v2347
    %v2580 = vunpack.c.h.b16 %v2347
    %v2581 = vunpack.c.l.b16 %v2348
    %v2582 = vunpack.c.h.b16 %v2348
    %v2583 = vunpack.c.l.b16 %v2349
    %v2584 = vunpack.c.h.b16 %v2349
    %v2585 = vunpack.c.l.b16 %v2350
    %v2586 = vunpack.c.h.b16 %v2350
    %v2587 = vunpack.c.l.b16 %v2351
    %v2588 = vunpack.c.h.b16 %v2351
    %v2589 = vunpack.c.l.b16 %v2352
    %v2590 = vunpack.c.h.b16 %v2352
    %v2591 = vunpack.c.l.b16 %v2353
    %v2592 = vunpack.c.h.b16 %v2353
    %v2593 = vunpack.c.l.b16 %v2354
    %v2594 = vunpack.c.h.b16 %v2354
    %v2595 = vunpack.c.l.b16 %v2355
    %v2596 = vunpack.c.h.b16 %v2355
    %v2597 = vunpack.c.l.b16 %v2356
    %v2598 = vunpack.c.h.b16 %v2356
    %v2599 = vunpack.c.l.b16 %v2357
    %v2600 = vunpack.c.h.b16 %v2357
    %v2601 = vunpack.c.l.b16 %v2358
    %v2602 = vunpack.c.h.b16 %v2358
    %v2603 = vunpack.c.l.b16 %v2359
    %v2604 = vunpack.c.h.b16 %v2359
    %v2605 = vunpack.c.l.b16 %v2360
    %v2606 = vunpack.c.h.b16 %v2360
    %v2607 = vunpack.c.l.b16 %v2361
    %v2608 = vunpack.c.h.b16 %v2361
    %v2609 = vunpack.c.l.b16 %v2362
    %v2610 = vunpack.c.h.b16 %v2362
    %v2611 = vunpack.c.l.b16 %v2363
    %v2612 = vunpack.c.h.b16 %v2363
    %v2613 = vunpack.c.l.b16 %v2364
    %v2614 = vunpack.c.h.b16 %v2364
    %v2615 = vunpack.c.l.b16 %v2365
    %v2616 = vunpack.c.h.b16 %v2365
    %v2617 = vunpack.c.l.b16 %v2366
    %v2618 = vunpack.c.h.b16 %v2366
    %v2619 = vunpack.c.l.b16 %v2367
    %v2620 = vunpack.c.h.b16 %v2367
    %v2621 = vunpack.c.l.b16 %v2368
    %v2622 = vunpack.c.h.b16 %v2368
    %v2623 = vunpack.c.l.b16 %v2369
    %v2624 = vunpack.c.h.b16 %v2369
    %v2625 = vunpack.c.l.b16 %v2370
    %v2626 = vunpack.c.h.b16 %v2370
    %v2627 = vunpack.c.l.b16 %v2371
    %v2628 = vunpack.c.h.b16 %v2371
    %v2629 = vunpack.c.l.b16 %v2372
    %v2630 = vunpack.c.h.b16 %v2372
    %v2631 = vunpack.c.l.b16 %v2373
    %v2632 = vunpack.c.h.b16 %v2373
    %v2633 = vunpack.c.l.b16 %v2374
    %v2634 = vunpack.c.h.b16 %v2374
    %v2635 = vunpack.c.l.b16 %v2375
    %v2636 = vunpack.c.h.b16 %v2375
    %v2637 = vunpack.c.l.b16 %v2376
    %v2638 = vunpack.c.h.b16 %v2376
    %v2639 = vunpack.c.l.b16 %v2377
    %v2640 = vunpack.c.h.b16 %v2377
    %v2641 = vunpack.c.l.b16 %v2378
    %v2642 = vunpack.c.h.b16 %v2378
    %v2643 = vunpack.c.l.b16 %v2379
    %v2644 = vunpack.c.h.b16 %v2379
    %v2645 = vunpack.c.l.b16 %v2380
    %v2646 = vunpack.c.h.b16 %v2380
    %v2647 = vunpack.c.l.b16 %v2381
    %v2648 = vunpack.c.h.b16 %v2381
    %v2649 = vunpack.c.l.b16 %v2382
    %v2650 = vunpack.c.h.b16 %v2382
    %v2651 = vunpack.c.l.b16 %v2383
    %v2652 = vunpack.c.h.b16 %v2383
    %v2653 = vunpack.c.l.b16 %v2384
    %v2654 = vunpack.c.h.b16 %v2384
    %v2655 = vunpack.c.l.b16 %v2385
    %v2656 = vunpack.c.h.b16 %v2385
    %v2657 = vunpack.c.l.b16 %v2386
    %v2658 = vunpack.c.h.b16 %v2386
    %v2659 = vunpack.c.l.b16 %v2387
    %v2660 = vunpack.c.h.b16 %v2387
    %v2661 = vunpack.c.l.b16 %v2388
    %v2662 = vunpack.c.h.b16 %v2388
    %v2663 = vunpack.c.l.b16 %v2389
    %v2664 = vunpack.c.h.b16 %v2389
    %v2665 = vunpack.c.l.b16 %v2390
    %v2666 = vunpack.c.h.b16 %v2390
    %v2667 = vunpack.c.l.b16 %v2391
    %v2668 = vunpack.c.h.b16 %v2391
    %v2669 = vunpack.c.l.b16 %v2392
    %v2670 = vunpack.c.h.b16 %v2392
    %v2671 = vunpack.c.l.b16 %v2393
    %v2672 = vunpack.c.h.b16 %v2393
    %v2673 = vunpack.c.l.b16 %v2394
    %v2674 = vunpack.c.h.b16 %v2394
    %v2675 = vunpack.c.l.b16 %v2395
    %v2676 = vunpack.c.h.b16 %v2395
    %v2677 = vunpack.c.l.b16 %v2396
    %v2678 = vunpack.c.h.b16 %v2396
    %v2679 = vunpack.c.l.b16 %v2397
    %v2680 = vunpack.c.h.b16 %v2397
    %v2681 = vunpack.c.l.b16 %v2398
    %v2682 = vunpack.c.h.b16 %v2398
    %v2683 = vunpack.c.l.b16 %v2399
    %v2684 = vunpack.c.h.b16 %v2399
    %v2685 = vunpack.c.l.b16 %v2400
    %v2686 = vunpack.c.h.b16 %v2400
    %v2687 = vunpack.c.l.b16 %v2401
    %v2688 = vunpack.c.h.b16 %v2401
    %v2689 = vunpack.c.l.b16 %v2402
    %v2690 = vunpack.c.h.b16 %v2402
    %v2691 = vunpack.c.l.b16 %v2403
    %v2692 = vunpack.c.h.b16 %v2403
    %v2693 = vpack.c.b16 %v2507, %v2501
    %v2694 = vpack.c.b16 %v2508, %v2502
    %v2695 = vpack.c.b16 %v2509, %v2503
    %v2696 = vpack.c.b16 %v2510, %v2504
    %v2697 = vpack.c.b16 %v2511, %v2505
    %v2698 = vpack.c.b16 %v2512, %v2506
    %v2699 = vpack.c.b16 %v2519, %v2513
    %v2700 = vpack.c.b16 %v2520, %v2514
    %v2701 = vpack.c.b16 %v2521, %v2515
    %v2702 = vpack.c.b16 %v2522, %v2516
    %v2703 = vpack.c.b16 %v2523, %v2517
    %v2704 = vpack.c.b16 %v2524, %v2518
    %v2705 = vpack.c.b16 %v2531, %v2525
    %v2706 = vpack.c.b16 %v2532, %v2526
    %v2707 = vpack.c.b16 %v2533, %v2527
    %v2708 = vpack.c.b16 %v2534, %v2528
    %v2709 = vpack.c.b16 %v2535, %v2529
    %v2710 = vpack.c.b16 %v2536, %v2530
    %v2711 = vpack.c.b16 %v2543, %v2537
    %v2712 = vpack.c.b16 %v2544, %v2538
    %v2713 = vpack.c.b16 %v2545, %v2539
    %v2714 = vpack.c.b16 %v2546, %v2540
    %v2715 = vpack.c.b16 %v2547, %v2541
    %v2716 = vpack.c.b16 %v2548, %v2542
    %v2717 = vpack.c.b16 %v2555, %v2549
    %v2718 = vpack.c.b16 %v2556, %v2550
    %v2719 = vpack.c.b16 %v2557, %v2551
    %v2720 = vpack.c.b16 %v2558, %v2552
    %v2721 = vpack.c.b16 %v2559, %v2553
    %v2722 = vpack.c.b16 %v2560, %v2554
    %v2723 = vpack.c.b16 %v2567, %v2561
    %v2724 = vpack.c.b16 %v2568, %v2562
    %v2725 = vpack.c.b16 %v2569, %v2563
    %v2726 = vpack.c.b16 %v2570, %v2564
    %v2727 = vpack.c.b16 %v2571, %v2565
    %v2728 = vpack.c.b16 %v2572, %v2566
    %v2729 = vpack.c.b16 %v2579, %v2573
    %v2730 = vpack.c.b16 %v2580, %v2574
    %v2731 = vpack.c.b16 %v2581, %v2575
    %v2732 = vpack.c.b16 %v2582, %v2576
    %v2733 = vpack.c.b16 %v2583, %v2577
    %v2734 = vpack.c.b16 %v2584, %v2578
    %v2735 = vpack.c.b16 %v2591, %v2585
    %v2736 = vpack.c.b16 %v2592, %v2586
    %v2737 = vpack.c.b16 %v2593, %v2587
    %v2738 = vpack.c.b16 %v2594, %v2588
    %v2739 = vpack.c.b16 %v2595, %v2589
    %v2740 = vpack.c.b16 %v2596, %v2590
    %v2741 = vpack.c.b16 %v2603, %v2597
    %v2742 = vpack.c.b16 %v2604, %v2598
    %v2743 = vpack.c.b16 %v2605, %v2599
    %v2744 = vpack.c.b16 %v2606, %v2600
    %v2745 = vpack.c.b16 %v2607, %v2601
    %v2746 = vpack.c.b16 %v2608, %v2602
    %v2747 = vpack.c.b16 %v2615, %v2609
    %v2748 = vpack.c.b16 %v2616, %v2610
    %v2749 = vpack.c.b16 %v2617, %v2611
    %v2750 = vpack.c.b16 %v2618, %v2612
    %v2751 = vpack.c.b16 %v2619, %v2613
    %v2752 = vpack.c.b16 %v2620, %v2614
    %v2753 = vpack.c.b16 %v2627, %v2621
    %v2754 = vpack.c.b16 %v2628, %v2622
    %v2755 = vpack.c.b16 %v2629, %v2623
    %v2756 = vpack.c.b16 %v2630, %v2624
    %v2757 = vpack.c.b16 %v2631, %v2625
    %v2758 = vpack.c.b16 %v2632, %v2626
    %v2759 = vpack.c.b16 %v2639, %v2633
    %v2760 = vpack.c.b16 %v2640, %v2634
    %v2761 = vpack.c.b16 %v2641, %v2635
    %v2762 = vpack.c.b16 %v2642, %v2636
    %v2763 = vpack.c.b16 %v2643, %v2637
    %v2764 = vpack.c.b16 %v2644, %v2638
    %v2765 = vpack.c.b16 %v2651, %v2645
    %v2766 = vpack.c.b16 %v2652, %v2646
    %v2767 = vpack.c.b16 %v2653, %v2647
    %v2768 = vpack.c.b16 %v2654, %v2648
    %v2769 = vpack.c.b16 %v2655, %v2649
    %v2770 = vpack.c.b16 %v2656, %v2650
    %v2771 = vpack.c.b16 %v2663, %v2657
    %v2772 = vpack.c.b16 %v2664, %v2658
    %v2773 = vpack.c.b16 %v2665, %v2659
    %v2774 = vpack.c.b16 %v2666, %v2660
    %v2775 = vpack.c.b16 %v2667, %v2661
    %v2776 = vpack.c.b16 %v2668, %v2662
    %v2777 = vpack.c.b16 %v2675, %v2669
    %v2778 = vpack.c.b16 %v2676, %v2670
    %v2779 = vpack.c.b16 %v2677, %v2671
    %v2780 = vpack.c.b16 %v2678, %v2672
    %v2781 = vpack.c.b16 %v2679, %v2673
    %v2782 = vpack.c.b16 %v2680, %v2674
    %v2783 = vpack.c.b16 %v2687, %v2681
    %v2784 = vpack.c.b16 %v2688, %v2682
    %v2785 = vpack.c.b16 %v2689, %v2683
    %v2786 = vpack.c.b16 %v2690, %v2684
    %v2787 = vpack.c.b16 %v2691, %v2685
    %v2788 = vpack.c.b16 %v2692, %v2686
    %v2886 = vlaneseq
    %v2887 = vshrl.u32 %v2886, 7
    %v2888 = vsub.s32 0, %v2887
    %v2889 = vrot.slane %v2404, %v2888
    %v2890 = vlaneseq
    %v2891 = vshrl.u32 %v2890, 7
    %v2892 = vsub.s32 1, %v2891
    %v2893 = vrot.slane %v2404, %v2892
    %v2894 = vlaneseq
    %v2895 = vshrl.u32 %v2894, 7
    %v2896 = vsub.s32 2, %v2895
    %v2897 = vrot.slane %v2404, %v2896
    %v2898 = vlaneseq
    %v2899 = vshrl.u32 %v2898, 7
    %v2900 = vsub.s32 3, %v2899
    %v2901 = vrot.slane %v2404, %v2900
    %v2902 = vlaneseq
    %v2903 = vshrl.u32 %v2902, 7
    %v2904 = vsub.s32 4, %v2903
    %v2905 = vrot.slane %v2404, %v2904
    %v2906 = vlaneseq
    %v2907 = vshrl.u32 %v2906, 7
    %v2908 = vsub.s32 5, %v2907
    %v2909 = vrot.slane %v2404, %v2908
    %2916 = vmatprep.subr.bf16.mxu0 %v2694
    %2917 = vmatpush1.bf16.msra.mxu0 %v2693
    %2918 = vmatprep.subr.bf16.mxu0 %v2700
    %2919 = vmatpush1.bf16.msra.mxu0 %v2699
    %2920 = vmatprep.subr.bf16.mxu0 %v2706
    %2921 = vmatpush1.bf16.msra.mxu0 %v2705
    %2922 = vmatprep.subr.bf16.mxu0 %v2712
    %2923 = vmatpush1.bf16.msra.mxu0 %v2711
    %2924 = vmatprep.subr.bf16.mxu0 %v2718
    %2925 = vmatpush1.bf16.msra.mxu0 %v2717
    %2926 = vmatprep.subr.bf16.mxu0 %v2724
    %2927 = vmatpush1.bf16.msra.mxu0 %v2723
    %2928 = vmatprep.subr.bf16.mxu0 %v2730
    %2929 = vmatpush1.bf16.msra.mxu0 %v2729
    %2930 = vmatprep.subr.bf16.mxu0 %v2736
    %2931 = vmatpush1.bf16.msra.mxu0 %v2735
    %2932 = vmatprep.subr.bf16.mxu0 %v2742
    %2933 = vmatpush1.bf16.msra.mxu0 %v2741
    %2934 = vmatprep.subr.bf16.mxu0 %v2748
    %2935 = vmatpush1.bf16.msra.mxu0 %v2747
    %2936 = vmatprep.subr.bf16.mxu0 %v2754
    %2937 = vmatpush1.bf16.msra.mxu0 %v2753
    %2938 = vmatprep.subr.bf16.mxu0 %v2760
    %2939 = vmatpush1.bf16.msra.mxu0 %v2759
    %2940 = vmatprep.subr.bf16.mxu0 %v2766
    %2941 = vmatpush1.bf16.msra.mxu0 %v2765
    %2942 = vmatprep.subr.bf16.mxu0 %v2772
    %2943 = vmatpush1.bf16.msra.mxu0 %v2771
    %2944 = vmatprep.subr.bf16.mxu0 %v2778
    %2945 = vmatpush1.bf16.msra.mxu0 %v2777
    %2946 = vmatprep.subr.bf16.mxu0 %v2784
    %2947 = vmatpush1.bf16.msra.mxu0 %v2783
    %2948 = vmatprep.mubr.bf16.mxu0 %v2307
    %2949 = vmatmul.mubr.bf16.gmra.mrb[0].mxu0 %v2306
    %v2950 = vpop.f32.mrb[0].mxu0
    %v2951 = vadd.f32 %v2889, %v2950
    %v2952 = vpop.f32.mrb[0].mxu0
    %v2953 = vadd.f32 %v2893, %v2952
    %v2954 = vpop.f32.mrb[0].mxu0
    %v2955 = vpop.f32.mrb[0].mxu0
    %2956 = vdwg.mxu0
    %2957 = vmatprep.subr.bf16.mxu0 %v2696
    %2958 = vmatpush1.bf16.msra.mxu0 %v2695
    %2959 = vmatprep.subr.bf16.mxu0 %v2702
    %2960 = vmatpush1.bf16.msra.mxu0 %v2701
    %2961 = vmatprep.subr.bf16.mxu0 %v2708
    %2962 = vmatpush1.bf16.msra.mxu0 %v2707
    %2963 = vmatprep.subr.bf16.mxu0 %v2714
    %2964 = vmatpush1.bf16.msra.mxu0 %v2713
    %2965 = vmatprep.subr.bf16.mxu0 %v2720
    %2966 = vmatpush1.bf16.msra.mxu0 %v2719
    %2967 = vmatprep.subr.bf16.mxu0 %v2726
    %2968 = vmatpush1.bf16.msra.mxu0 %v2725
    %2969 = vmatprep.subr.bf16.mxu0 %v2732
    %2970 = vmatpush1.bf16.msra.mxu0 %v2731
    %2971 = vmatprep.subr.bf16.mxu0 %v2738
    %2972 = vmatpush1.bf16.msra.mxu0 %v2737
    %2973 = vmatprep.subr.bf16.mxu0 %v2744
    %2974 = vmatpush1.bf16.msra.mxu0 %v2743
    %2975 = vmatprep.subr.bf16.mxu0 %v2750
    %2976 = vmatpush1.bf16.msra.mxu0 %v2749
    %2977 = vmatprep.subr.bf16.mxu0 %v2756
    %2978 = vmatpush1.bf16.msra.mxu0 %v2755
    %2979 = vmatprep.subr.bf16.mxu0 %v2762
    %2980 = vmatpush1.bf16.msra.mxu0 %v2761
    %2981 = vmatprep.subr.bf16.mxu0 %v2768
    %2982 = vmatpush1.bf16.msra.mxu0 %v2767
    %2983 = vmatprep.subr.bf16.mxu0 %v2774
    %2984 = vmatpush1.bf16.msra.mxu0 %v2773
    %2985 = vmatprep.subr.bf16.mxu0 %v2780
    %2986 = vmatpush1.bf16.msra.mxu0 %v2779
    %2987 = vmatprep.subr.bf16.mxu0 %v2786
    %2988 = vmatpush1.bf16.msra.mxu0 %v2785
    %2989 = vmatprep.mubr.bf16.mxu0 %v2307
    %2990 = vmatmul.mubr.bf16.gmra.mrb[0].mxu0 %v2306
    %v2991 = vpop.f32.mrb[0].mxu0
    %v2992 = vadd.f32 %v2897, %v2991
    %v2993 = vpop.f32.mrb[0].mxu0
    %v2994 = vadd.f32 %v2901, %v2993
    %v2995 = vpop.f32.mrb[0].mxu0
    %v2996 = vpop.f32.mrb[0].mxu0
    %2997 = vdwg.mxu0
    %2998 = vmatprep.subr.bf16.mxu0 %v2698
    %2999 = vmatpush1.bf16.msra.mxu0 %v2697
    %3000 = vmatprep.subr.bf16.mxu0 %v2704
    %3001 = vmatpush1.bf16.msra.mxu0 %v2703
    %3002 = vmatprep.subr.bf16.mxu0 %v2710
    %3003 = vmatpush1.bf16.msra.mxu0 %v2709
    %3004 = vmatprep.subr.bf16.mxu0 %v2716
    %3005 = vmatpush1.bf16.msra.mxu0 %v2715
    %3006 = vmatprep.subr.bf16.mxu0 %v2722
    %3007 = vmatpush1.bf16.msra.mxu0 %v2721
    %3008 = vmatprep.subr.bf16.mxu0 %v2728
    %3009 = vmatpush1.bf16.msra.mxu0 %v2727
    %3010 = vmatprep.subr.bf16.mxu0 %v2734
    %3011 = vmatpush1.bf16.msra.mxu0 %v2733
    %3012 = vmatprep.subr.bf16.mxu0 %v2740
    %3013 = vmatpush1.bf16.msra.mxu0 %v2739
    %3014 = vmatprep.subr.bf16.mxu0 %v2746
    %3015 = vmatpush1.bf16.msra.mxu0 %v2745
    %3016 = vmatprep.subr.bf16.mxu0 %v2752
    %3017 = vmatpush1.bf16.msra.mxu0 %v2751
    %3018 = vmatprep.subr.bf16.mxu0 %v2758
    %3019 = vmatpush1.bf16.msra.mxu0 %v2757
    %3020 = vmatprep.subr.bf16.mxu0 %v2764
    %3021 = vmatpush1.bf16.msra.mxu0 %v2763
    %3022 = vmatprep.subr.bf16.mxu0 %v2770
    %3023 = vmatpush1.bf16.msra.mxu0 %v2769
    %3024 = vmatprep.subr.bf16.mxu0 %v2776
    %3025 = vmatpush1.bf16.msra.mxu0 %v2775
    %3026 = vmatprep.subr.bf16.mxu0 %v2782
    %3027 = vmatpush1.bf16.msra.mxu0 %v2781
    %3028 = vmatprep.subr.bf16.mxu0 %v2788
    %3029 = vmatpush1.bf16.msra.mxu0 %v2787
    %3030 = vmatprep.mubr.bf16.mxu0 %v2307
    %3031 = vmatmul.mubr.bf16.gmra.mrb[0].mxu0 %v2306
    %v3032 = vpop.f32.mrb[0].mxu0
    %v3033 = vadd.f32 %v2905, %v3032
    %v3034 = vpop.f32.mrb[0].mxu0
    %v3035 = vadd.f32 %v2909, %v3034
    %v3036 = vpop.f32.mrb[0].mxu0
    %v3037 = vpop.f32.mrb[0].mxu0
    %3038 = vdwg.mxu0
    %v3039 = vlaneseq
    %v3040 = vshrl.u32 %v3039, 7
    %v3041 = vsub.s32 0, %v3040
    %v3042 = vrot.slane %v2951, %v3041
    %v3043 = vlaneseq
    %v3044 = vshrl.u32 %v3043, 7
    %v3045 = vsub.s32 0, %v3044
    %v3046 = vrot.slane %v2953, %v3045
    %v3047 = vlaneseq
    %v3048 = vshrl.u32 %v3047, 7
    %v3049 = vsub.s32 0, %v3048
    %v3050 = vrot.slane %v2992, %v3049
    %v3051 = vlaneseq
    %v3052 = vshrl.u32 %v3051, 7
    %v3053 = vsub.s32 0, %v3052
    %v3054 = vrot.slane %v2994, %v3053
    %v3055 = vlaneseq
    %v3056 = vshrl.u32 %v3055, 7
    %v3057 = vsub.s32 0, %v3056
    %v3058 = vrot.slane %v3033, %v3057
    %v3059 = vlaneseq
    %v3060 = vshrl.u32 %v3059, 7
    %v3061 = vsub.s32 0, %v3060
    %v3062 = vrot.slane %v3035, %v3061
    %v3063 = vmul.f32 %v1467, %v3042
    %v3064 = vmul.f32 %v1469, %v3046
    %v3065 = vmul.f32 %v1508, %v3050
    %v3066 = vmul.f32 %v1510, %v3054
    %v3067 = vmul.f32 %v1549, %v3058
    %v3068 = vmul.f32 %v1551, %v3062
    %v3069 = vadd.f32 %v3063, %v3064
    %v3070 = vadd.f32 %v3069, %v3065
    %v3071 = vadd.f32 %v3070, %v3066
    %v3072 = vadd.f32 %v3071, %v3067
    %v3073 = vadd.f32 %v3072, %v3068
    %3074 = vadd.xlane.f32.xlu0 %v3073
    %v3075 = vpop.xlane.xlu0 %3074
    %v3076 = vmul.f32 %v3075, 0.03608439
    %v3077 = vrot.slane %v3076, 4
    %v3078 = vmax.f32 %v3076, %v3077
    %v3079 = vrot.slane %v3078, 2
    %v3080 = vmax.f32 %v3078, %v3079
    %v3081 = vrot.slane %v3080, 1
    %v3082 = vmax.f32 %v3080, %v3081
    %v3083 = vsub.f32 %v3076, %v3082
    %v3084 = vmul.f32 %v3083, 1.442695
    %v3085 = vpow.pop %v3084
    %v3086 = vrot.slane %v3085, 4
    %v3087 = vadd.f32 %v3085, %v3086
    %v3088 = vrot.slane %v3087, 2
    %v3089 = vadd.f32 %v3087, %v3088
    %v3090 = vrot.slane %v3089, 1
    %v3091 = vadd.f32 %v3089, %v3090
    %v3092 = vrcp.pop %v3091
    %v3093 = vmul.f32 %v3085, %v3092
    %v3094 = vmul.f32 %v3093, %v1467
    %v3095 = vmul.f32 %v3093, %v1469
    %v3096 = vmul.f32 %v3093, %v1508
    %v3097 = vmul.f32 %v3093, %v1510
    %v3098 = vmul.f32 %v3093, %v1549
    %v3099 = vmul.f32 %v3093, %v1551
    %v3100 = vrot.slane %v3094, 4
    %v3101 = vadd.f32 %v3094, %v3100
    %v3102 = vrot.slane %v3101, 2
    %v3103 = vadd.f32 %v3101, %v3102
    %v3104 = vrot.slane %v3103, 1
    %v3105 = vadd.f32 %v3103, %v3104
    %v3106 = vrot.slane %v3095, 4
    %v3107 = vadd.f32 %v3095, %v3106
    %v3108 = vrot.slane %v3107, 2
    %v3109 = vadd.f32 %v3107, %v3108
    %v3110 = vrot.slane %v3109, 1
    %v3111 = vadd.f32 %v3109, %v3110
    %v3112 = vrot.slane %v3096, 4
    %v3113 = vadd.f32 %v3096, %v3112
    %v3114 = vrot.slane %v3113, 2
    %v3115 = vadd.f32 %v3113, %v3114
    %v3116 = vrot.slane %v3115, 1
    %v3117 = vadd.f32 %v3115, %v3116
    %v3118 = vrot.slane %v3097, 4
    %v3119 = vadd.f32 %v3097, %v3118
    %v3120 = vrot.slane %v3119, 2
    %v3121 = vadd.f32 %v3119, %v3120
    %v3122 = vrot.slane %v3121, 1
    %v3123 = vadd.f32 %v3121, %v3122
    %v3124 = vrot.slane %v3098, 4
    %v3125 = vadd.f32 %v3098, %v3124
    %v3126 = vrot.slane %v3125, 2
    %v3127 = vadd.f32 %v3125, %v3126
    %v3128 = vrot.slane %v3127, 1
    %v3129 = vadd.f32 %v3127, %v3128
    %v3130 = vrot.slane %v3099, 4
    %v3131 = vadd.f32 %v3099, %v3130
    %v3132 = vrot.slane %v3131, 2
    %v3133 = vadd.f32 %v3131, %v3132
    %v3134 = vrot.slane %v3133, 1
    %v3135 = vadd.f32 %v3133, %v3134
    %v3136 = vsub.f32 %v1467, %v3105
    %v3137 = vsub.f32 %v1469, %v3111
    %v3138 = vsub.f32 %v1508, %v3117
    %v3139 = vsub.f32 %v1510, %v3123
    %v3140 = vsub.f32 %v1549, %v3129
    %v3141 = vsub.f32 %v1551, %v3135
    %v3142 = vmul.f32 %v3093, %v3136
    %v3143 = vmul.f32 %v3093, %v3137
    %v3144 = vmul.f32 %v3093, %v3138
    %v3145 = vmul.f32 %v3093, %v3139
    %v3146 = vmul.f32 %v3093, %v3140
    %v3147 = vmul.f32 %v3093, %v3141
    %v3148 = vmul.f32 %v3142, %v3136
    %v3149 = vmul.f32 %v3143, %v3137
    %v3150 = vmul.f32 %v3144, %v3138
    %v3151 = vmul.f32 %v3145, %v3139
    %v3152 = vmul.f32 %v3146, %v3140
    %v3153 = vmul.f32 %v3147, %v3141
    %v3154 = vrot.slane %v3148, 4
    %v3155 = vadd.f32 %v3148, %v3154
    %v3156 = vrot.slane %v3155, 2
    %v3157 = vadd.f32 %v3155, %v3156
    %v3158 = vrot.slane %v3157, 1
    %v3159 = vadd.f32 %v3157, %v3158
    %v3160 = vrot.slane %v3149, 4
    %v3161 = vadd.f32 %v3149, %v3160
    %v3162 = vrot.slane %v3161, 2
    %v3163 = vadd.f32 %v3161, %v3162
    %v3164 = vrot.slane %v3163, 1
    %v3165 = vadd.f32 %v3163, %v3164
    %v3166 = vrot.slane %v3150, 4
    %v3167 = vadd.f32 %v3150, %v3166
    %v3168 = vrot.slane %v3167, 2
    %v3169 = vadd.f32 %v3167, %v3168
    %v3170 = vrot.slane %v3169, 1
    %v3171 = vadd.f32 %v3169, %v3170
    %v3172 = vrot.slane %v3151, 4
    %v3173 = vadd.f32 %v3151, %v3172
    %v3174 = vrot.slane %v3173, 2
    %v3175 = vadd.f32 %v3173, %v3174
    %v3176 = vrot.slane %v3175, 1
    %v3177 = vadd.f32 %v3175, %v3176
    %v3178 = vrot.slane %v3152, 4
    %v3179 = vadd.f32 %v3152, %v3178
    %v3180 = vrot.slane %v3179, 2
    %v3181 = vadd.f32 %v3179, %v3180
    %v3182 = vrot.slane %v3181, 1
    %v3183 = vadd.f32 %v3181, %v3182
    %v3184 = vrot.slane %v3153, 4
    %v3185 = vadd.f32 %v3153, %v3184
    %v3186 = vrot.slane %v3185, 2
    %v3187 = vadd.f32 %v3185, %v3186
    %v3188 = vrot.slane %v3187, 1
    %v3189 = vadd.f32 %v3187, %v3188
    %v3190 = vadd.f32 %v3159, 1e-06
    %v3191 = vadd.f32 %v3165, 1e-06
    %v3192 = vadd.f32 %v3171, 1e-06
    %v3193 = vadd.f32 %v3177, 1e-06
    %v3194 = vadd.f32 %v3183, 1e-06
    %v3195 = vadd.f32 %v3189, 1e-06
    %v3196 = vmul.f32 %v3136, %v3136
    %v3197 = vmul.f32 %v3137, %v3137
    %v3198 = vmul.f32 %v3138, %v3138
    %v3199 = vmul.f32 %v3139, %v3139
    %v3200 = vmul.f32 %v3140, %v3140
    %v3201 = vmul.f32 %v3141, %v3141
    %v3202 = vrcp.pop %v3190
    %v3203 = vmul.f32 %v3196, %v3202
    %v3204 = vrcp.pop %v3191
    %v3205 = vmul.f32 %v3197, %v3204
    %v3206 = vrcp.pop %v3192
    %v3207 = vmul.f32 %v3198, %v3206
    %v3208 = vrcp.pop %v3193
    %v3209 = vmul.f32 %v3199, %v3208
    %v3210 = vrcp.pop %v3194
    %v3211 = vmul.f32 %v3200, %v3210
    %v3212 = vrcp.pop %v3195
    %v3213 = vmul.f32 %v3201, %v3212
    %v3214 = vadd.f32 %v3203, %v3205
    %v3215 = vadd.f32 %v3214, %v3207
    %v3216 = vadd.f32 %v3215, %v3209
    %v3217 = vadd.f32 %v3216, %v3211
    %v3218 = vadd.f32 %v3217, %v3213
    %3219 = vadd.xlane.f32.xlu0 %v3218
    %v3220 = vpop.xlane.xlu0 %3219
    %v3221 = vlaneseq
    %v3222 = vshrl.u32 %v3221, 7
    %v3223 = vcvt.s32.f32 %v3222
    %v3224 = vrot.slane %v3220, 4
    %v3225 = vmin.f32 %v3220, %v3224
    %v3226 = vrot.slane %v3225, 2
    %v3227 = vmin.f32 %v3225, %v3226
    %v3228 = vrot.slane %v3227, 1
    %v3229 = vmin.f32 %v3227, %v3228
    %vm3230 = vcmp.le.f32.partialorder %v3220, %v3229
    %v3231 = vsel %vm3230, %v3223, 8.0
    %v3232 = vrot.slane %v3231, 4
    %v3233 = vmin.f32 %v3231, %v3232
    %v3234 = vrot.slane %v3233, 2
    %v3235 = vmin.f32 %v3233, %v3234
    %v3236 = vrot.slane %v3235, 1
    %v3237 = vmin.f32 %v3235, %v3236
    %vm3238 = vcmp.eq.f32.partialorder %v3223, %v3237
    %v3239 = vsel %vm3238, 1.0, 0.0
    %v3240 = vsel %vm3238, inf, %v3220
    %v3241 = vrot.slane %v3240, 4
    %v3242 = vmin.f32 %v3240, %v3241
    %v3243 = vrot.slane %v3242, 2
    %v3244 = vmin.f32 %v3242, %v3243
    %v3245 = vrot.slane %v3244, 1
    %v3246 = vmin.f32 %v3244, %v3245
    %vm3247 = vcmp.le.f32.partialorder %v3240, %v3246
    %v3248 = vsel %vm3247, %v3223, 8.0
    %v3249 = vrot.slane %v3248, 4
    %v3250 = vmin.f32 %v3248, %v3249
    %v3251 = vrot.slane %v3250, 2
    %v3252 = vmin.f32 %v3250, %v3251
    %v3253 = vrot.slane %v3252, 1
    %v3254 = vmin.f32 %v3252, %v3253
    %vm3255 = vcmp.eq.f32.partialorder %v3223, %v3254
    %v3256 = vsel %vm3255, 1.0, %v3239
    %v3257 = vsel %vm3255, inf, %v3240
    %v3258 = vrot.slane %v3257, 4
    %v3259 = vmin.f32 %v3257, %v3258
    %v3260 = vrot.slane %v3259, 2
    %v3261 = vmin.f32 %v3259, %v3260
    %v3262 = vrot.slane %v3261, 1
    %v3263 = vmin.f32 %v3261, %v3262
    %vm3264 = vcmp.le.f32.partialorder %v3257, %v3263
    %v3265 = vsel %vm3264, %v3223, 8.0
    %v3266 = vrot.slane %v3265, 4
    %v3267 = vmin.f32 %v3265, %v3266
    %v3268 = vrot.slane %v3267, 2
    %v3269 = vmin.f32 %v3267, %v3268
    %v3270 = vrot.slane %v3269, 1
    %v3271 = vmin.f32 %v3269, %v3270
    %vm3272 = vcmp.eq.f32.partialorder %v3223, %v3271
    %v3273 = vsel %vm3272, 1.0, %v3256
    %v3274 = vsel %vm3272, inf, %v3257
    %v3275 = vrot.slane %v3274, 4
    %v3276 = vmin.f32 %v3274, %v3275
    %v3277 = vrot.slane %v3276, 2
    %v3278 = vmin.f32 %v3276, %v3277
    %v3279 = vrot.slane %v3278, 1
    %v3280 = vmin.f32 %v3278, %v3279
    %vm3281 = vcmp.le.f32.partialorder %v3274, %v3280
    %v3282 = vsel %vm3281, %v3223, 8.0
    %v3283 = vrot.slane %v3282, 4
    %v3284 = vmin.f32 %v3282, %v3283
    %v3285 = vrot.slane %v3284, 2
    %v3286 = vmin.f32 %v3284, %v3285
    %v3287 = vrot.slane %v3286, 1
    %v3288 = vmin.f32 %v3286, %v3287
    %vm3289 = vcmp.eq.f32.partialorder %v3223, %v3288
    %v3290 = vsel %vm3289, 1.0, %v3273
    %v3291 = vmin.f32 %v3237, %v3254
    %v3292 = vmax.f32 %v3237, %v3254
    %v3293 = vmin.f32 %v3271, %v3288
    %v3294 = vmax.f32 %v3271, %v3288
    %v3295 = vmin.f32 %v3291, %v3293
    %v3296 = vmax.f32 %v3291, %v3293
    %v3297 = vmin.f32 %v3292, %v3294
    %v3298 = vmax.f32 %v3292, %v3294
    %v3299 = vmin.f32 %v3296, %v3297
    %v3300 = vmax.f32 %v3296, %v3297
    %v3301 = vlaneseq
    %v3302 = vand.u32 %v3301, 127
    %vm3303 = vcmp.eq.s32.totalorder %v3302, 0
    %v3304 = vsel %vm3303, %v3295, 0.0
    %vm3305 = vcmp.eq.s32.totalorder %v3302, 1
    %v3306 = vsel %vm3305, %v3299, 0.0
    %v3307 = vadd.f32 %v3304, %v3306
    %vm3308 = vcmp.eq.s32.totalorder %v3302, 2
    %v3309 = vsel %vm3308, %v3300, 0.0
    %v3310 = vadd.f32 %v3307, %v3309
    %vm3311 = vcmp.eq.s32.totalorder %v3302, 3
    %v3312 = vsel %vm3311, %v3298, 0.0
    %v3313 = vadd.f32 %v3310, %v3312
    %v3314 = vcvt.f32.s32.to.zero.pseudo %v3313
    %vm3315 = vcmask 24576
    %3316 = vst.msk [vmem:[#allocation10] sm:$0x1] %vm3315, %v3314
    %v3317 = vmul.f32 %v3290, %v1467
    %v3318 = vmul.f32 %v3290, %v1469
    %v3319 = vmul.f32 %v3290, %v1508
    %v3320 = vmul.f32 %v3290, %v1510
    %v3321 = vmul.f32 %v3290, %v1549
    %v3322 = vmul.f32 %v3290, %v1551
    %v3323 = vrot.slane %v3317, 4
    %v3324 = vadd.f32 %v3317, %v3323
    %v3325 = vrot.slane %v3324, 2
    %v3326 = vadd.f32 %v3324, %v3325
    %v3327 = vrot.slane %v3326, 1
    %v3328 = vadd.f32 %v3326, %v3327
    %v3329 = vrot.slane %v3318, 4
    %v3330 = vadd.f32 %v3318, %v3329
    %v3331 = vrot.slane %v3330, 2
    %v3332 = vadd.f32 %v3330, %v3331
    %v3333 = vrot.slane %v3332, 1
    %v3334 = vadd.f32 %v3332, %v3333
    %v3335 = vrot.slane %v3319, 4
    %v3336 = vadd.f32 %v3319, %v3335
    %v3337 = vrot.slane %v3336, 2
    %v3338 = vadd.f32 %v3336, %v3337
    %v3339 = vrot.slane %v3338, 1
    %v3340 = vadd.f32 %v3338, %v3339
    %v3341 = vrot.slane %v3320, 4
    %v3342 = vadd.f32 %v3320, %v3341
    %v3343 = vrot.slane %v3342, 2
    %v3344 = vadd.f32 %v3342, %v3343
    %v3345 = vrot.slane %v3344, 1
    %v3346 = vadd.f32 %v3344, %v3345
    %v3347 = vrot.slane %v3321, 4
    %v3348 = vadd.f32 %v3321, %v3347
    %v3349 = vrot.slane %v3348, 2
    %v3350 = vadd.f32 %v3348, %v3349
    %v3351 = vrot.slane %v3350, 1
    %v3352 = vadd.f32 %v3350, %v3351
    %v3353 = vrot.slane %v3322, 4
    %v3354 = vadd.f32 %v3322, %v3353
    %v3355 = vrot.slane %v3354, 2
    %v3356 = vadd.f32 %v3354, %v3355
    %v3357 = vrot.slane %v3356, 1
    %v3358 = vadd.f32 %v3356, %v3357
    %v3359 = vmul.f32 %v3328, 0.25
    %v3360 = vmul.f32 %v3334, 0.25
    %v3361 = vmul.f32 %v3340, 0.25
    %v3362 = vmul.f32 %v3346, 0.25
    %v3363 = vmul.f32 %v3352, 0.25
    %v3364 = vmul.f32 %v3358, 0.25
    %v3365 = vld [vmem:[%s10] sm:$0xff]
    %v3366 = vld [vmem:[%s10 + $0x8] sm:$0xff]
    %v3367 = vld [vmem:[%s10 + $0x10] sm:$0xff]
    %v3368 = vld [vmem:[%s10 + $0x18] sm:$0xff]
    %v3369 = vld [vmem:[%s10 + $0x20] sm:$0xff]
    %v3370 = vld [vmem:[%s10 + $0x28] sm:$0xff]
    %v3371 = vld [vmem:[%s10 + $0x30] sm:$0xff]
    %v3372 = vld [vmem:[%s10 + $0x38] sm:$0xff]
    %v3373 = vld [vmem:[%s10 + $0x40] sm:$0xff]
    %v3374 = vld [vmem:[%s10 + $0x48] sm:$0xff]
    %v3375 = vld [vmem:[%s10 + $0x50] sm:$0xff]
    %v3376 = vld [vmem:[%s10 + $0x58] sm:$0xff]
    %v3377 = vld [vmem:[%s10 + $0x60] sm:$0xff]
    %v3378 = vld [vmem:[%s10 + $0x68] sm:$0xff]
    %v3379 = vld [vmem:[%s10 + $0x70] sm:$0xff]
    %v3380 = vld [vmem:[%s10 + $0x78] sm:$0xff]
    %v3381 = vld [vmem:[%s10 + $0x80] sm:$0xff]
    %v3382 = vld [vmem:[%s10 + $0x88] sm:$0xff]
    %v3383 = vld [vmem:[%s10 + $0x90] sm:$0xff]
    %v3384 = vld [vmem:[%s10 + $0x98] sm:$0xff]
    %v3385 = vld [vmem:[%s10 + $0xa0] sm:$0xff]
    %v3386 = vld [vmem:[%s10 + $0xa8] sm:$0xff]
    %v3387 = vld [vmem:[%s10 + $0xb0] sm:$0xff]
    %v3388 = vld [vmem:[%s10 + $0xb8] sm:$0xff]
    %v3389 = vld [vmem:[%s10 + $0xc0] sm:$0xff]
    %v3390 = vld [vmem:[%s10 + $0xc8] sm:$0xff]
    %v3391 = vld [vmem:[%s10 + $0xd0] sm:$0xff]
    %v3392 = vld [vmem:[%s10 + $0xd8] sm:$0xff]
    %v3393 = vld [vmem:[%s10 + $0xe0] sm:$0xff]
    %v3394 = vld [vmem:[%s10 + $0xe8] sm:$0xff]
    %v3395 = vld [vmem:[%s10 + $0xf0] sm:$0xff]
    %v3396 = vld [vmem:[%s10 + $0xf8] sm:$0xff]
    %v3397 = vld [vmem:[%s10 + $0x100] sm:$0xff]
    %v3398 = vld [vmem:[%s10 + $0x108] sm:$0xff]
    %v3399 = vld [vmem:[%s10 + $0x110] sm:$0xff]
    %v3400 = vld [vmem:[%s10 + $0x118] sm:$0xff]
    %v3401 = vld [vmem:[%s10 + $0x120] sm:$0xff]
    %v3402 = vld [vmem:[%s10 + $0x128] sm:$0xff]
    %v3403 = vld [vmem:[%s10 + $0x130] sm:$0xff]
    %v3404 = vld [vmem:[%s10 + $0x138] sm:$0xff]
    %v3405 = vld [vmem:[%s10 + $0x140] sm:$0xff]
    %v3406 = vld [vmem:[%s10 + $0x148] sm:$0xff]
    %v3407 = vld [vmem:[%s10 + $0x150] sm:$0xff]
    %v3408 = vld [vmem:[%s10 + $0x158] sm:$0xff]
    %v3409 = vld [vmem:[%s10 + $0x160] sm:$0xff]
    %v3410 = vld [vmem:[%s10 + $0x168] sm:$0xff]
    %v3411 = vld [vmem:[%s10 + $0x170] sm:$0xff]
    %v3412 = vld [vmem:[%s10 + $0x178] sm:$0xff]
    %v3413 = vld [vmem:[%s10 + $0x180] sm:$0xff]
    %v3414 = vld [vmem:[%s10 + $0x188] sm:$0xff]
    %v3415 = vld [vmem:[%s10 + $0x190] sm:$0xff]
    %v3416 = vld [vmem:[%s10 + $0x198] sm:$0xff]
    %v3417 = vld [vmem:[%s10 + $0x1a0] sm:$0xff]
    %v3418 = vld [vmem:[%s10 + $0x1a8] sm:$0xff]
    %v3419 = vld [vmem:[%s10 + $0x1b0] sm:$0xff]
    %v3420 = vld [vmem:[%s10 + $0x1b8] sm:$0xff]
    %v3421 = vld [vmem:[%s10 + $0x1c0] sm:$0xff]
    %v3422 = vld [vmem:[%s10 + $0x1c8] sm:$0xff]
    %v3423 = vld [vmem:[%s10 + $0x1d0] sm:$0xff]
    %v3424 = vld [vmem:[%s10 + $0x1d8] sm:$0xff]
    %v3425 = vld [vmem:[%s10 + $0x1e0] sm:$0xff]
    %v3426 = vld [vmem:[%s10 + $0x1e8] sm:$0xff]
    %v3427 = vld [vmem:[%s10 + $0x1f0] sm:$0xff]
    %v3428 = vld [vmem:[%s10 + $0x1f8] sm:$0xff]
    %v3429 = vld [vmem:[%s10 + $0x200] sm:$0xff]
    %v3430 = vld [vmem:[%s10 + $0x208] sm:$0xff]
    %v3431 = vld [vmem:[%s10 + $0x210] sm:$0xff]
    %v3432 = vld [vmem:[%s10 + $0x218] sm:$0xff]
    %v3433 = vld [vmem:[%s10 + $0x220] sm:$0xff]
    %v3434 = vld [vmem:[%s10 + $0x228] sm:$0xff]
    %v3435 = vld [vmem:[%s10 + $0x230] sm:$0xff]
    %v3436 = vld [vmem:[%s10 + $0x238] sm:$0xff]
    %v3437 = vld [vmem:[%s10 + $0x240] sm:$0xff]
    %v3438 = vld [vmem:[%s10 + $0x248] sm:$0xff]
    %v3439 = vld [vmem:[%s10 + $0x250] sm:$0xff]
    %v3440 = vld [vmem:[%s10 + $0x258] sm:$0xff]
    %v3441 = vld [vmem:[%s10 + $0x260] sm:$0xff]
    %v3442 = vld [vmem:[%s10 + $0x268] sm:$0xff]
    %v3443 = vld [vmem:[%s10 + $0x270] sm:$0xff]
    %v3444 = vld [vmem:[%s10 + $0x278] sm:$0xff]
    %v3445 = vld [vmem:[%s10 + $0x280] sm:$0xff]
    %v3446 = vld [vmem:[%s10 + $0x288] sm:$0xff]
    %v3447 = vld [vmem:[%s10 + $0x290] sm:$0xff]
    %v3448 = vld [vmem:[%s10 + $0x298] sm:$0xff]
    %v3449 = vld [vmem:[%s10 + $0x2a0] sm:$0xff]
    %v3450 = vld [vmem:[%s10 + $0x2a8] sm:$0xff]
    %v3451 = vld [vmem:[%s10 + $0x2b0] sm:$0xff]
    %v3452 = vld [vmem:[%s10 + $0x2b8] sm:$0xff]
    %v3453 = vld [vmem:[%s10 + $0x2c0] sm:$0xff]
    %v3454 = vld [vmem:[%s10 + $0x2c8] sm:$0xff]
    %v3455 = vld [vmem:[%s10 + $0x2d0] sm:$0xff]
    %v3456 = vld [vmem:[%s10 + $0x2d8] sm:$0xff]
    %v3457 = vld [vmem:[%s10 + $0x2e0] sm:$0xff]
    %v3458 = vld [vmem:[%s10 + $0x2e8] sm:$0xff]
    %v3459 = vld [vmem:[%s10 + $0x2f0] sm:$0xff]
    %v3460 = vld [vmem:[%s10 + $0x2f8] sm:$0xff]
    %v3461 = vld [vmem:[%s11] sm:$0x1]
    %3462 = vmatprep.subr.mxu0 0.0
    %3463 = vmatpush1.msra.mxu0 %v3365
    %3464 = vmatprep.subr.mxu0 0.0
    %3465 = vmatpush1.msra.mxu0 %v3366
    %3466 = vmatprep.subr.mxu0 0.0
    %3467 = vmatpush1.msra.mxu0 %v3367
    %3468 = vmatprep.subr.mxu0 0.0
    %3469 = vmatpush1.msra.mxu0 %v3368
    %3470 = vmatprep.subr.mxu0 0.0
    %3471 = vmatpush1.msra.mxu0 %v3369
    %3472 = vmatprep.subr.mxu0 0.0
    %3473 = vmatpush1.msra.mxu0 %v3370
    %3474 = vmatprep.subr.mxu0 0.0
    %3475 = vmatpush1.msra.mxu0 %v3371
    %3476 = vmatprep.subr.mxu0 0.0
    %3477 = vmatpush1.msra.mxu0 %v3372
    %3478 = vmatprep.subr.mxu0 0.0
    %3479 = vmatpush1.msra.mxu0 %v3373
    %3480 = vmatprep.subr.mxu0 0.0
    %3481 = vmatpush1.msra.mxu0 %v3374
    %3482 = vmatprep.subr.mxu0 0.0
    %3483 = vmatpush1.msra.mxu0 %v3375
    %3484 = vmatprep.subr.mxu0 0.0
    %3485 = vmatpush1.msra.mxu0 %v3376
    %3486 = vmatprep.subr.mxu0 0.0
    %3487 = vmatpush1.msra.mxu0 %v3377
    %3488 = vmatprep.subr.mxu0 0.0
    %3489 = vmatpush1.msra.mxu0 %v3378
    %3490 = vmatprep.subr.mxu0 0.0
    %3491 = vmatpush1.msra.mxu0 %v3379
    %3492 = vmatprep.subr.mxu0 0.0
    %3493 = vmatpush1.msra.mxu0 %v3380
    %3494 = vmatprep.subr.mxu0 0.0
    %3495 = vmatpush1.msra.mxu0 %v3381
    %3496 = vmatprep.subr.mxu0 0.0
    %3497 = vmatpush1.msra.mxu0 %v3382
    %3498 = vmatprep.subr.mxu0 0.0
    %3499 = vmatpush1.msra.mxu0 %v3383
    %3500 = vmatprep.subr.mxu0 0.0
    %3501 = vmatpush1.msra.mxu0 %v3384
    %3502 = vmatprep.subr.mxu0 0.0
    %3503 = vmatpush1.msra.mxu0 %v3385
    %3504 = vmatprep.subr.mxu0 0.0
    %3505 = vmatpush1.msra.mxu0 %v3386
    %3506 = vmatprep.subr.mxu0 0.0
    %3507 = vmatpush1.msra.mxu0 %v3387
    %3508 = vmatprep.subr.mxu0 0.0
    %3509 = vmatpush1.msra.mxu0 %v3388
    %3510 = vmatprep.subr.mxu0 0.0
    %3511 = vmatpush1.msra.mxu0 %v3389
    %3512 = vmatprep.subr.mxu0 0.0
    %3513 = vmatpush1.msra.mxu0 %v3390
    %3514 = vmatprep.subr.mxu0 0.0
    %3515 = vmatpush1.msra.mxu0 %v3391
    %3516 = vmatprep.subr.mxu0 0.0
    %3517 = vmatpush1.msra.mxu0 %v3392
    %3518 = vmatprep.subr.mxu0 0.0
    %3519 = vmatpush1.msra.mxu0 %v3393
    %3520 = vmatprep.subr.mxu0 0.0
    %3521 = vmatpush1.msra.mxu0 %v3394
    %3522 = vmatprep.subr.mxu0 0.0
    %3523 = vmatpush1.msra.mxu0 %v3395
    %3524 = vmatprep.subr.mxu0 0.0
    %3525 = vmatpush1.msra.mxu0 %v3396
    %3526 = vmatprep.mubr.f32.mxu0 %v3360
    %3527 = vmatmul.mubr.f32.gmra.mrb[0].mxu0 %v3359
    %v3528 = vpop.f32.mrb[0].mxu0
    %v3529 = vadd.f32 %v3461, %v3528
    %v3530 = vpop.f32.mrb[0].mxu0
    %3531 = vdwg.mxu0
    %3532 = vmatprep.subr.mxu0 0.0
    %3533 = vmatpush1.msra.mxu0 %v3397
    %3534 = vmatprep.subr.mxu0 0.0
    %3535 = vmatpush1.msra.mxu0 %v3398
    %3536 = vmatprep.subr.mxu0 0.0
    %3537 = vmatpush1.msra.mxu0 %v3399
    %3538 = vmatprep.subr.mxu0 0.0
    %3539 = vmatpush1.msra.mxu0 %v3400
    %3540 = vmatprep.subr.mxu0 0.0
    %3541 = vmatpush1.msra.mxu0 %v3401
    %3542 = vmatprep.subr.mxu0 0.0
    %3543 = vmatpush1.msra.mxu0 %v3402
    %3544 = vmatprep.subr.mxu0 0.0
    %3545 = vmatpush1.msra.mxu0 %v3403
    %3546 = vmatprep.subr.mxu0 0.0
    %3547 = vmatpush1.msra.mxu0 %v3404
    %3548 = vmatprep.subr.mxu0 0.0
    %3549 = vmatpush1.msra.mxu0 %v3405
    %3550 = vmatprep.subr.mxu0 0.0
    %3551 = vmatpush1.msra.mxu0 %v3406
    %3552 = vmatprep.subr.mxu0 0.0
    %3553 = vmatpush1.msra.mxu0 %v3407
    %3554 = vmatprep.subr.mxu0 0.0
    %3555 = vmatpush1.msra.mxu0 %v3408
    %3556 = vmatprep.subr.mxu0 0.0
    %3557 = vmatpush1.msra.mxu0 %v3409
    %3558 = vmatprep.subr.mxu0 0.0
    %3559 = vmatpush1.msra.mxu0 %v3410
    %3560 = vmatprep.subr.mxu0 0.0
    %3561 = vmatpush1.msra.mxu0 %v3411
    %3562 = vmatprep.subr.mxu0 0.0
    %3563 = vmatpush1.msra.mxu0 %v3412
    %3564 = vmatprep.subr.mxu0 0.0
    %3565 = vmatpush1.msra.mxu0 %v3413
    %3566 = vmatprep.subr.mxu0 0.0
    %3567 = vmatpush1.msra.mxu0 %v3414
    %3568 = vmatprep.subr.mxu0 0.0
    %3569 = vmatpush1.msra.mxu0 %v3415
    %3570 = vmatprep.subr.mxu0 0.0
    %3571 = vmatpush1.msra.mxu0 %v3416
    %3572 = vmatprep.subr.mxu0 0.0
    %3573 = vmatpush1.msra.mxu0 %v3417
    %3574 = vmatprep.subr.mxu0 0.0
    %3575 = vmatpush1.msra.mxu0 %v3418
    %3576 = vmatprep.subr.mxu0 0.0
    %3577 = vmatpush1.msra.mxu0 %v3419
    %3578 = vmatprep.subr.mxu0 0.0
    %3579 = vmatpush1.msra.mxu0 %v3420
    %3580 = vmatprep.subr.mxu0 0.0
    %3581 = vmatpush1.msra.mxu0 %v3421
    %3582 = vmatprep.subr.mxu0 0.0
    %3583 = vmatpush1.msra.mxu0 %v3422
    %3584 = vmatprep.subr.mxu0 0.0
    %3585 = vmatpush1.msra.mxu0 %v3423
    %3586 = vmatprep.subr.mxu0 0.0
    %3587 = vmatpush1.msra.mxu0 %v3424
    %3588 = vmatprep.subr.mxu0 0.0
    %3589 = vmatpush1.msra.mxu0 %v3425
    %3590 = vmatprep.subr.mxu0 0.0
    %3591 = vmatpush1.msra.mxu0 %v3426
    %3592 = vmatprep.subr.mxu0 0.0
    %3593 = vmatpush1.msra.mxu0 %v3427
    %3594 = vmatprep.subr.mxu0 0.0
    %3595 = vmatpush1.msra.mxu0 %v3428
    %3596 = vmatprep.mubr.f32.mxu0 %v3362
    %3597 = vmatmul.mubr.f32.gmra.mrb[0].mxu0 %v3361
    %v3598 = vpop.f32.mrb[0].mxu0
    %v3599 = vadd.f32 %v3529, %v3598
    %v3600 = vpop.f32.mrb[0].mxu0
    %3601 = vdwg.mxu0
    %3602 = vmatprep.subr.mxu0 0.0
    %3603 = vmatpush1.msra.mxu0 %v3429
    %3604 = vmatprep.subr.mxu0 0.0
    %3605 = vmatpush1.msra.mxu0 %v3430
    %3606 = vmatprep.subr.mxu0 0.0
    %3607 = vmatpush1.msra.mxu0 %v3431
    %3608 = vmatprep.subr.mxu0 0.0
    %3609 = vmatpush1.msra.mxu0 %v3432
    %3610 = vmatprep.subr.mxu0 0.0
    %3611 = vmatpush1.msra.mxu0 %v3433
    %3612 = vmatprep.subr.mxu0 0.0
    %3613 = vmatpush1.msra.mxu0 %v3434
    %3614 = vmatprep.subr.mxu0 0.0
    %3615 = vmatpush1.msra.mxu0 %v3435
    %3616 = vmatprep.subr.mxu0 0.0
    %3617 = vmatpush1.msra.mxu0 %v3436
    %3618 = vmatprep.subr.mxu0 0.0
    %3619 = vmatpush1.msra.mxu0 %v3437
    %3620 = vmatprep.subr.mxu0 0.0
    %3621 = vmatpush1.msra.mxu0 %v3438
    %3622 = vmatprep.subr.mxu0 0.0
    %3623 = vmatpush1.msra.mxu0 %v3439
    %3624 = vmatprep.subr.mxu0 0.0
    %3625 = vmatpush1.msra.mxu0 %v3440
    %3626 = vmatprep.subr.mxu0 0.0
    %3627 = vmatpush1.msra.mxu0 %v3441
    %3628 = vmatprep.subr.mxu0 0.0
    %3629 = vmatpush1.msra.mxu0 %v3442
    %3630 = vmatprep.subr.mxu0 0.0
    %3631 = vmatpush1.msra.mxu0 %v3443
    %3632 = vmatprep.subr.mxu0 0.0
    %3633 = vmatpush1.msra.mxu0 %v3444
    %3634 = vmatprep.subr.mxu0 0.0
    %3635 = vmatpush1.msra.mxu0 %v3445
    %3636 = vmatprep.subr.mxu0 0.0
    %3637 = vmatpush1.msra.mxu0 %v3446
    %3638 = vmatprep.subr.mxu0 0.0
    %3639 = vmatpush1.msra.mxu0 %v3447
    %3640 = vmatprep.subr.mxu0 0.0
    %3641 = vmatpush1.msra.mxu0 %v3448
    %3642 = vmatprep.subr.mxu0 0.0
    %3643 = vmatpush1.msra.mxu0 %v3449
    %3644 = vmatprep.subr.mxu0 0.0
    %3645 = vmatpush1.msra.mxu0 %v3450
    %3646 = vmatprep.subr.mxu0 0.0
    %3647 = vmatpush1.msra.mxu0 %v3451
    %3648 = vmatprep.subr.mxu0 0.0
    %3649 = vmatpush1.msra.mxu0 %v3452
    %3650 = vmatprep.subr.mxu0 0.0
    %3651 = vmatpush1.msra.mxu0 %v3453
    %3652 = vmatprep.subr.mxu0 0.0
    %3653 = vmatpush1.msra.mxu0 %v3454
    %3654 = vmatprep.subr.mxu0 0.0
    %3655 = vmatpush1.msra.mxu0 %v3455
    %3656 = vmatprep.subr.mxu0 0.0
    %3657 = vmatpush1.msra.mxu0 %v3456
    %3658 = vmatprep.subr.mxu0 0.0
    %3659 = vmatpush1.msra.mxu0 %v3457
    %3660 = vmatprep.subr.mxu0 0.0
    %3661 = vmatpush1.msra.mxu0 %v3458
    %3662 = vmatprep.subr.mxu0 0.0
    %3663 = vmatpush1.msra.mxu0 %v3459
    %3664 = vmatprep.subr.mxu0 0.0
    %3665 = vmatpush1.msra.mxu0 %v3460
    %3666 = vmatprep.mubr.f32.mxu0 %v3364
    %3667 = vmatmul.mubr.f32.gmra.mrb[0].mxu0 %v3363
    %v3668 = vpop.f32.mrb[0].mxu0
    %v3669 = vadd.f32 %v3599, %v3668
    %v3670 = vpop.f32.mrb[0].mxu0
    %3671 = vdwg.mxu0
    %3672 = vst.msk [vmem:[%s12] sm:$0x1] %vm3315, %v3669
    // Predicated region
    $region66: #{ntlbg_forward.1} parent=1 // pred_check
      _
    $region67: #{ntlbg_forward.1} parent=1 // pred_check_branch
      %3674 = sbr.rel (0) target = $region69
    $region68: #{ntlbg_forward.1} parent=1 // pred_region
      _
    $region69: #{ntlbg_forward.1} parent=1 // pred_fallthru
      _
    // Predicated region
    $region70: #{ntlbg_forward.1} parent=1 // pred_check
      _
    $region71: #{ntlbg_forward.1} parent=1 // pred_check_branch
      %3676 = sbr.rel (0) target = $region73
    $region72: #{ntlbg_forward.1} parent=1 // pred_region
      %s3678 = ssub.s32 16, 16
      %3679 = vsyncadd [#allocation4], %s3678
      %s3681 = sshll.u32 [#allocation10], 4
      %s3682 = int_to_ptr.vmem [resolvable:$true] %s3681
      %3684 = dma.vmem_to_hbm [thread:$0]  %s3682, 16, %s13, [#allocation4]
    $region73: #{ntlbg_forward.1} parent=1 // pred_fallthru
      _
    // Predicated region
    $region74: #{ntlbg_forward.1} parent=1 // pred_check
      _
    $region75: #{ntlbg_forward.1} parent=1 // pred_check_branch
      %3686 = sbr.rel (0) target = $region77
    $region76: #{ntlbg_forward.1} parent=1 // pred_region
      _
    $region77: #{ntlbg_forward.1} parent=1 // pred_fallthru
      _
    // Predicated region
    $region78: #{ntlbg_forward.1} parent=1 // pred_check
      _
    $region79: #{ntlbg_forward.1} parent=1 // pred_check_branch
      %3688 = sbr.rel (0) target = $region81
    $region80: #{ntlbg_forward.1} parent=1 // pred_region
      %3689 = dma.done [#allocation4], 16
    $region81: #{ntlbg_forward.1} parent=1 // pred_fallthru
      _
    %3690 = vsyncpa [#allocation3], 1
    %3691 = vsyncpa [#allocation6], 1
    %3692 = vsyncpa [#allocation9], 1
    %3693 = vsyncpa [#allocation4], 1

</llo_original>
